<compile_context>
chip_gen: v6e
topology: v6e:2x2x1
jax: 0.10.0
libtpu: 0.0.40
codegen_flags: <defaults>
</compile_context>

<pallas_src>
import functools

import jax
import jax.numpy as jnp
from jax.experimental import pallas as pl
from jax.experimental.pallas import tpu as pltpu


def _round_up(x, m):
    return (x + m - 1) // m * m


def _pad2d(a, rows, cols):
    r, c = a.shape
    if r == rows and c == cols:
        return a
    return jnp.pad(a, ((0, rows - r), (0, cols - c)))


# ----------------------------------------------------------------------------
# Tiled matmul kernel:  out = [relu](x @ w + b)
#   grid = (M/tm, N/tn, K/tk); f32 accumulator scratch; bf16 operands on MXU.
# ----------------------------------------------------------------------------
def _matmul_kernel(x_ref, w_ref, b_ref, o_ref, acc_ref, *, apply_relu):
    @pl.when(pl.program_id(2) == 0)
    def _():
        acc_ref[...] = jnp.zeros_like(acc_ref)

    acc_ref[...] += jnp.dot(x_ref[...], w_ref[...],
                            preferred_element_type=jnp.float32)

    @pl.when(pl.program_id(2) == pl.num_programs(2) - 1)
    def _():
        out = acc_ref[...] + b_ref[...]          # (1, tn) broadcasts over rows
        if apply_relu:
            out = jnp.maximum(out, 0.0)
        o_ref[...] = out.astype(o_ref.dtype)


def matmul_bias_act(x, w, b, *, relu, out_dtype=jnp.float32):
    """x: (M, K), w: (K, N), b: (N,)  ->  (M, N) = [relu](x @ w + b)."""
    M, K = x.shape
    K2, N = w.shape
    assert K == K2, (K, K2)

    tm = min(512, _round_up(M, 16))
    tk = min(256, _round_up(K, 128))
    tn = min(256, _round_up(N, 128))
    Mp, Kp, Np = _round_up(M, tm), _round_up(K, tk), _round_up(N, tn)

    xp = _pad2d(x.astype(jnp.bfloat16), Mp, Kp)
    wp = _pad2d(w.astype(jnp.bfloat16), Kp, Np)
    bp = _pad2d(b.reshape(1, N).astype(jnp.float32), 1, Np)

    ob = jnp.dtype(out_dtype).itemsize
    kernel = functools.partial(_matmul_kernel, apply_relu=relu)

    out = pl.pallas_call(
        kernel,
        out_shape=jax.ShapeDtypeStruct((Mp, Np), out_dtype),
        grid_spec=pltpu.PrefetchScalarGridSpec(
            num_scalar_prefetch=0,
            grid=(Mp // tm, Np // tn, Kp // tk),
            in_specs=[
                pl.BlockSpec((tm, tk), lambda i, j, k: (i, k)),
                pl.BlockSpec((tk, tn), lambda i, j, k: (k, j)),
                pl.BlockSpec((1, tn), lambda i, j, k: (0, j)),
            ],
            out_specs=pl.BlockSpec((tm, tn), lambda i, j, k: (i, j)),
            scratch_shapes=[pltpu.VMEM((tm, tn), jnp.float32)],
        ),
        compiler_params=pltpu.CompilerParams(
            dimension_semantics=("parallel", "parallel", "arbitrary"),
            vmem_limit_bytes=32 * 1024 * 1024,
        ),
        cost_estimate=pl.CostEstimate(
            flops=2 * M * K * N,
            transcendentals=0,
            bytes_accessed=(Mp * Kp + Kp * Np) * 2 + Mp * Np * ob),
    )(xp, wp, bp)
    return out[:M, :N]


# ----------------------------------------------------------------------------
# Fused FC head:  out = relu(x @ w1 + b1) @ w2 + b2
#   grid = (M/tm, K/tk); fc1 accumulated in VMEM; fc2 applied in the epilogue
#   (w2 is tiny and stays resident in VMEM).
# ----------------------------------------------------------------------------
def _fc_head_kernel(x_ref, w1_ref, b1_ref, w2_ref, b2_ref, o_ref, acc_ref):
    @pl.when(pl.program_id(1) == 0)
    def _():
        acc_ref[...] = jnp.zeros_like(acc_ref)

    acc_ref[...] += jnp.dot(x_ref[...], w1_ref[...],
                            preferred_element_type=jnp.float32)

    @pl.when(pl.program_id(1) == pl.num_programs(1) - 1)
    def _():
        h = jnp.maximum(acc_ref[...] + b1_ref[...], 0.0)
        o = jnp.dot(h.astype(w2_ref.dtype), w2_ref[...],
                    preferred_element_type=jnp.float32) + b2_ref[...]
        o_ref[...] = o.astype(o_ref.dtype)


def fc_head_pallas(x, w1, b1, w2, b2):
    """x: (M, K), w1: (K, H), w2: (H, N)  ->  relu(x@w1+b1) @ w2 + b2."""
    M, K = x.shape
    K2, H = w1.shape
    H2, N = w2.shape
    assert K == K2 and H == H2

    tm = min(512, _round_up(M, 16))
    tk = min(256, _round_up(K, 128))
    Hp = _round_up(H, 128)
    Np = _round_up(N, 128)          # lane-dense output, real columns sliced out
    Mp, Kp = _round_up(M, tm), _round_up(K, tk)

    xp = _pad2d(x.astype(jnp.bfloat16), Mp, Kp)
    w1p = _pad2d(w1.astype(jnp.bfloat16), Kp, Hp)
    b1p = _pad2d(b1.reshape(1, H).astype(jnp.float32), 1, Hp)
    w2p = _pad2d(w2.astype(jnp.bfloat16), Hp, Np)
    b2p = _pad2d(b2.reshape(1, N).astype(jnp.float32), 1, Np)

    out = pl.pallas_call(
        _fc_head_kernel,
        out_shape=jax.ShapeDtypeStruct((Mp, Np), jnp.float32),
        grid_spec=pltpu.PrefetchScalarGridSpec(
            num_scalar_prefetch=0,
            grid=(Mp // tm, Kp // tk),
            in_specs=[
                pl.BlockSpec((tm, tk), lambda i, k: (i, k)),
                pl.BlockSpec((tk, Hp), lambda i, k: (k, 0)),
                pl.BlockSpec((1, Hp), lambda i, k: (0, 0)),
                pl.BlockSpec((Hp, Np), lambda i, k: (0, 0)),
                pl.BlockSpec((1, Np), lambda i, k: (0, 0)),
            ],
            out_specs=pl.BlockSpec((tm, Np), lambda i, k: (i, 0)),
            scratch_shapes=[pltpu.VMEM((tm, Hp), jnp.float32)],
        ),
        compiler_params=pltpu.CompilerParams(
            dimension_semantics=("parallel", "arbitrary"),
            vmem_limit_bytes=32 * 1024 * 1024,
        ),
        cost_estimate=pl.CostEstimate(
            flops=2 * M * K * H + 2 * M * H * N,
            transcendentals=0,
            bytes_accessed=(Mp * Kp + Kp * Hp + Hp * Np) * 2 + Mp * Np * 4),
    )(xp, w1p, b1p, w2p, b2p)
    return out[:M, :N]


# ----------------------------------------------------------------------------
# Conv2d (valid padding, square stride) via im2col + tiled Pallas matmul
# ----------------------------------------------------------------------------
def conv2d_relu(x_nhwc, w_oihw, b, stride):
    """x_nhwc: (B,H,W,C), w_oihw: (O,C,KH,KW) (PyTorch layout), b: (O,)."""
    B, H, W, C = x_nhwc.shape
    O, Ci, KH, KW = w_oihw.shape
    assert Ci == C
    OH = (H - KH) // stride + 1
    OW = (W - KW) // stride + 1

    # im2col (XLA glue) in bf16: halves the HBM bytes of the expanded copy.
    # TODO(synk): fuse patch extraction into the Pallas kernel (strided-window
    # DMA over the NHWC HBM ref) to avoid materializing im2col entirely.
    xb = x_nhwc.astype(jnp.bfloat16)
    patches = []
    for i in range(KH):
        for j in range(KW):
            patches.append(
                jax.lax.slice(
                    xb,
                    (0, i, j, 0),
                    (B, i + (OH - 1) * stride + 1, j + (OW - 1) * stride + 1, C),
                    (1, stride, stride, 1),
                )
            )
    cols = jnp.stack(patches, axis=3)                 # (B, OH, OW, KH*KW, C)
    cols = cols.reshape(B * OH * OW, KH * KW * C)     # (M, K), order (kh,kw,c)

    # weights: (O, C, KH, KW) -> (KH, KW, C, O) -> (K, N) matching patch order
    w2 = jnp.transpose(w_oihw, (2, 3, 1, 0)).reshape(KH * KW * C, O)

    y = matmul_bias_act(cols, w2, b, relu=True, out_dtype=jnp.bfloat16)
    return y.reshape(B, OH, OW, O)


# ----------------------------------------------------------------------------
# CNN_DQN model
# ----------------------------------------------------------------------------
def conv_out_hw(input_size):
    _, h, w = input_size
    h1, w1 = (h - 8) // 4 + 1, (w - 8) // 4 + 1    # conv1 k8 s4
    h2, w2 = (h1 - 4) // 2 + 1, (w1 - 4) // 2 + 1  # conv2 k4 s2
    h3, w3 = (h2 - 3) // 1 + 1, (w2 - 3) // 1 + 1  # conv3 k3 s1
    return h3, w3


def init_params(key, input_size, n_actions):
    c = input_size[0]
    h3, w3 = conv_out_hw(input_size)
    flat = 64 * h3 * w3
    ks = jax.random.split(key, 10)

    def w_init(k, shape, fan_in):
        return jax.random.normal(k, shape, jnp.float32) / jnp.sqrt(fan_in)

    # fc1 weight generated in PyTorch layout (rows = NCHW-flattened conv out),
    # then its rows are permuted ONCE so the forward pass can feed the
    # NHWC-flattened conv3 activation directly (no per-forward transpose).
    fc1_w_nchw = w_init(ks[6], (flat, 512), flat)
    perm = jnp.arange(flat).reshape(64, h3, w3).transpose(1, 2, 0).reshape(-1)
    fc1_w_nhwc = fc1_w_nchw[perm]

    params = {
        "conv1_w": w_init(ks[0], (32, c, 8, 8), c * 8 * 8),
        "conv1_b": w_init(ks[1], (32,), c * 8 * 8),
        "conv2_w": w_init(ks[2], (64, 32, 4, 4), 32 * 4 * 4),
        "conv2_b": w_init(ks[3], (64,), 32 * 4 * 4),
        "conv3_w": w_init(ks[4], (64, 64, 3, 3), 64 * 3 * 3),
        "conv3_b": w_init(ks[5], (64,), 64 * 3 * 3),
        "fc1_w": fc1_w_nhwc,                 # (flat, 512), NHWC row order
        "fc1_b": w_init(ks[7], (512,), flat),
        "fc2_w": w_init(ks[8], (512, n_actions), 512),   # (in, out) for x @ W
        "fc2_b": w_init(ks[9], (n_actions,), 512),
    }
    return params


@jax.jit
def cnn_dqn_forward(params, x_nchw):
    # NCHW (PyTorch convention) -> NHWC internal layout
    x = jnp.transpose(x_nchw, (0, 2, 3, 1)).astype(jnp.float32)
    x = conv2d_relu(x, params["conv1_w"], params["conv1_b"], stride=4)
    x = conv2d_relu(x, params["conv2_w"], params["conv2_b"], stride=2)
    x = conv2d_relu(x, params["conv3_w"], params["conv3_b"], stride=1)
    B = x.shape[0]
    # fc1_w rows were permuted at init to accept the NHWC-flattened activation,
    # so this flatten matches PyTorch's NCHW `.view(B, -1)` without a transpose.
    x = x.reshape(B, -1)
    return fc_head_pallas(x, params["fc1_w"], params["fc1_b"],
                          params["fc2_w"], params["fc2_b"])


if __name__ == "__main__":
    # small but conv-valid spatial size: 52 -> 12 -> 5 -> 3 (conv_out = 64*3*3)
    input_size = (4, 52, 52)   # (C, H, W)
    n_actions = 6
    batch = 2

    key = jax.random.PRNGKey(0)
    pkey, xkey = jax.random.split(key)
    params = init_params(pkey, input_size, n_actions)
    x = jax.random.normal(xkey, (batch,) + input_size, jnp.float32)  # NCHW

    out = cnn_dqn_forward(params, x)
    out = jax.block_until_ready(out)
    assert out.shape == (batch, n_actions), out.shape
    assert out.dtype == jnp.float32
    assert bool(jnp.all(jnp.isfinite(out)))
    print("KERNEL_OK")
</pallas_src>

<mosaic_0001>
module attributes {stable_mosaic.version = 11 : i64} {
  func.func @_matmul_kernel(%arg0: i32, %arg1: i32, %arg2: i32, %arg3: memref<288x256xbf16, #tpu.memory_space<vmem>>, %arg4: memref<256x128xbf16, #tpu.memory_space<vmem>>, %arg5: memref<1x128xf32, #tpu.memory_space<vmem>>, %arg6: memref<288x128xbf16, #tpu.memory_space<vmem>>, %arg7: memref<288x128xf32, #tpu.memory_space<vmem>>) attributes {dimension_semantics = [#tpu.dimension_semantics<parallel>, #tpu.dimension_semantics<parallel>, #tpu.dimension_semantics<arbitrary>], iteration_bounds = array<i64: 1, 1, 1>, scalar_prefetch = 0 : i64, scratch_operands = 1 : i64, tpu.core_type = #tpu.core_type<tc>, window_params = [{transform_indices = @transform_0, window_bounds = array<i64: 288, 256>}, {transform_indices = @transform_1, window_bounds = array<i64: 256, 128>}, {transform_indices = @transform_2, window_bounds = array<i64: 1, 128>}, {transform_indices = @transform_3, window_bounds = array<i64: 288, 128>}]} {
    %c0_i32 = arith.constant 0 : i32
    %0 = arith.cmpi eq, %arg2, %c0_i32 : i32
    %1 = arith.extui %0 : i1 to i32
    %c0_i32_0 = arith.constant 0 : i32
    %2 = arith.cmpi ne, %1, %c0_i32_0 : i32
    scf.if %2 {
      %cst_10 = arith.constant 0.000000e+00 : f32
      %12 = vector.broadcast %cst_10 : f32 to vector<288x128xf32>
      %c0_11 = arith.constant 0 : index
      %c0_12 = arith.constant 0 : index
      %13 = vector.load %arg7[%c0_11, %c0_12] : memref<288x128xf32, #tpu.memory_space<vmem>>, vector<288x128xf32>
      tpu.vector_store %arg7[%c0_11, %c0_12], %12 {strides = array<i32>} : memref<288x128xf32, #tpu.memory_space<vmem>>, vector<288x128xf32>,
    } else {
    }
    %c0 = arith.constant 0 : index
    %c0_1 = arith.constant 0 : index
    %3 = vector.load %arg7[%c0, %c0_1] : memref<288x128xf32, #tpu.memory_space<vmem>>, vector<288x128xf32>
    %c0_2 = arith.constant 0 : index
    %c0_3 = arith.constant 0 : index
    %4 = vector.load %arg3[%c0_2, %c0_3] : memref<288x256xbf16, #tpu.memory_space<vmem>>, vector<288x256xbf16>
    %c0_4 = arith.constant 0 : index
    %c0_5 = arith.constant 0 : index
    %5 = vector.load %arg4[%c0_4, %c0_5] : memref<256x128xbf16, #tpu.memory_space<vmem>>, vector<256x128xbf16>
    %cst = arith.constant dense<0.000000e+00> : vector<288x128xf32>
    %6 = tpu.matmul %4, %5, %cst {dimension_numbers = #tpu.dot_dimension_numbers<[1], [0], [0], [1], [0, 0, 1, 1], [], []>} : vector<288x256xbf16>, vector<256x128xbf16>, vector<288x128xf32> -> vector<288x128xf32>
    %7 = arith.addf %3, %6 : vector<288x128xf32>
    %c0_6 = arith.constant 0 : index
    %c0_7 = arith.constant 0 : index
    %8 = vector.load %arg7[%c0_6, %c0_7] : memref<288x128xf32, #tpu.memory_space<vmem>>, vector<288x128xf32>
    tpu.vector_store %arg7[%c0_6, %c0_7], %7 {strides = array<i32>} : memref<288x128xf32, #tpu.memory_space<vmem>>, vector<288x128xf32>,
    %c0_i32_8 = arith.constant 0 : i32
    %9 = arith.cmpi eq, %arg2, %c0_i32_8 : i32
    %10 = arith.extui %9 : i1 to i32
    %c0_i32_9 = arith.constant 0 : i32
    %11 = arith.cmpi ne, %10, %c0_i32_9 : i32
    scf.if %11 {
      %c0_10 = arith.constant 0 : index
      %c0_11 = arith.constant 0 : index
      %12 = vector.load %arg7[%c0_10, %c0_11] : memref<288x128xf32, #tpu.memory_space<vmem>>, vector<288x128xf32>
      %c0_12 = arith.constant 0 : index
      %c0_13 = arith.constant 0 : index
      %13 = vector.load %arg5[%c0_12, %c0_13] : memref<1x128xf32, #tpu.memory_space<vmem>>, vector<1x128xf32>
      %14 = vector.broadcast %13 : vector<1x128xf32> to vector<288x128xf32>
      %15 = arith.addf %12, %14 : vector<288x128xf32>
      %cst_14 = arith.constant 0.000000e+00 : f32
      %16 = vector.broadcast %cst_14 : f32 to vector<288x128xf32>
      %17 = arith.maximumf %15, %16 : vector<288x128xf32>
      %18 = arith.truncf %17 : vector<288x128xf32> to vector<288x128xbf16>
      %c0_15 = arith.constant 0 : index
      %c0_16 = arith.constant 0 : index
      %19 = vector.load %arg6[%c0_15, %c0_16] : memref<288x128xbf16, #tpu.memory_space<vmem>>, vector<288x128xbf16>
      tpu.vector_store %arg6[%c0_15, %c0_16], %18 {strides = array<i32>} : memref<288x128xbf16, #tpu.memory_space<vmem>>, vector<288x128xbf16>,
    } else {
    }
    return
  }
  func.func @transform_0(%arg0: i32, %arg1: i32, %arg2: i32) -> (i32, i32) {
    %c0_i32 = arith.constant 0 : i32
    return %arg0, %arg2 : i32, i32
  }
  func.func @transform_1(%arg0: i32, %arg1: i32, %arg2: i32) -> (i32, i32) {
    %c0_i32 = arith.constant 0 : i32
    return %arg2, %arg1 : i32, i32
  }
  func.func @transform_2(%arg0: i32, %arg1: i32, %arg2: i32) -> (i32, i32) {
    %c0_i32 = arith.constant 0 : i32
    %c0_i32_0 = arith.constant 0 : i32
    return %c0_i32, %arg1 : i32, i32
  }
  func.func @transform_3(%arg0: i32, %arg1: i32, %arg2: i32) -> (i32, i32) {
    %c0_i32 = arith.constant 0 : i32
    return %arg0, %arg1 : i32, i32
  }
}

module attributes {stable_mosaic.version = 11 : i64} {
  func.func @_matmul_kernel(%arg0: i32, %arg1: i32, %arg2: i32, %arg3: memref<64x256xbf16, #tpu.memory_space<vmem>>, %arg4: memref<256x128xbf16, #tpu.memory_space<vmem>>, %arg5: memref<1x128xf32, #tpu.memory_space<vmem>>, %arg6: memref<64x128xbf16, #tpu.memory_space<vmem>>, %arg7: memref<64x128xf32, #tpu.memory_space<vmem>>) attributes {dimension_semantics = [#tpu.dimension_semantics<parallel>, #tpu.dimension_semantics<parallel>, #tpu.dimension_semantics<arbitrary>], iteration_bounds = array<i64: 1, 1, 2>, scalar_prefetch = 0 : i64, scratch_operands = 1 : i64, tpu.core_type = #tpu.core_type<tc>, window_params = [{transform_indices = @transform_0, window_bounds = array<i64: 64, 256>}, {transform_indices = @transform_1, window_bounds = array<i64: 256, 128>}, {transform_indices = @transform_2, window_bounds = array<i64: 1, 128>}, {transform_indices = @transform_3, window_bounds = array<i64: 64, 128>}]} {
    %c0_i32 = arith.constant 0 : i32
    %0 = arith.cmpi eq, %arg2, %c0_i32 : i32
    %1 = arith.extui %0 : i1 to i32
    %c0_i32_0 = arith.constant 0 : i32
    %2 = arith.cmpi ne, %1, %c0_i32_0 : i32
    scf.if %2 {
      %cst_9 = arith.constant 0.000000e+00 : f32
      %12 = vector.broadcast %cst_9 : f32 to vector<64x128xf32>
      %c0_10 = arith.constant 0 : index
      %c0_11 = arith.constant 0 : index
      %13 = vector.load %arg7[%c0_10, %c0_11] : memref<64x128xf32, #tpu.memory_space<vmem>>, vector<64x128xf32>
      tpu.vector_store %arg7[%c0_10, %c0_11], %12 {strides = array<i32>} : memref<64x128xf32, #tpu.memory_space<vmem>>, vector<64x128xf32>,
    } else {
    }
    %c0 = arith.constant 0 : index
    %c0_1 = arith.constant 0 : index
    %3 = vector.load %arg7[%c0, %c0_1] : memref<64x128xf32, #tpu.memory_space<vmem>>, vector<64x128xf32>
    %c0_2 = arith.constant 0 : index
    %c0_3 = arith.constant 0 : index
    %4 = vector.load %arg3[%c0_2, %c0_3] : memref<64x256xbf16, #tpu.memory_space<vmem>>, vector<64x256xbf16>
    %c0_4 = arith.constant 0 : index
    %c0_5 = arith.constant 0 : index
    %5 = vector.load %arg4[%c0_4, %c0_5] : memref<256x128xbf16, #tpu.memory_space<vmem>>, vector<256x128xbf16>
    %cst = arith.constant dense<0.000000e+00> : vector<64x128xf32>
    %6 = tpu.matmul %4, %5, %cst {dimension_numbers = #tpu.dot_dimension_numbers<[1], [0], [0], [1], [0, 0, 1, 1], [], []>} : vector<64x256xbf16>, vector<256x128xbf16>, vector<64x128xf32> -> vector<64x128xf32>
    %7 = arith.addf %3, %6 : vector<64x128xf32>
    %c0_6 = arith.constant 0 : index
    %c0_7 = arith.constant 0 : index
    %8 = vector.load %arg7[%c0_6, %c0_7] : memref<64x128xf32, #tpu.memory_space<vmem>>, vector<64x128xf32>
    tpu.vector_store %arg7[%c0_6, %c0_7], %7 {strides = array<i32>} : memref<64x128xf32, #tpu.memory_space<vmem>>, vector<64x128xf32>,
    %c1_i32 = arith.constant 1 : i32
    %9 = arith.cmpi eq, %arg2, %c1_i32 : i32
    %10 = arith.extui %9 : i1 to i32
    %c0_i32_8 = arith.constant 0 : i32
    %11 = arith.cmpi ne, %10, %c0_i32_8 : i32
    scf.if %11 {
      %c0_9 = arith.constant 0 : index
      %c0_10 = arith.constant 0 : index
      %12 = vector.load %arg7[%c0_9, %c0_10] : memref<64x128xf32, #tpu.memory_space<vmem>>, vector<64x128xf32>
      %c0_11 = arith.constant 0 : index
      %c0_12 = arith.constant 0 : index
      %13 = vector.load %arg5[%c0_11, %c0_12] : memref<1x128xf32, #tpu.memory_space<vmem>>, vector<1x128xf32>
      %14 = vector.broadcast %13 : vector<1x128xf32> to vector<64x128xf32>
      %15 = arith.addf %12, %14 : vector<64x128xf32>
      %cst_13 = arith.constant 0.000000e+00 : f32
      %16 = vector.broadcast %cst_13 : f32 to vector<64x128xf32>
      %17 = arith.maximumf %15, %16 : vector<64x128xf32>
      %18 = arith.truncf %17 : vector<64x128xf32> to vector<64x128xbf16>
      %c0_14 = arith.constant 0 : index
      %c0_15 = arith.constant 0 : index
      %19 = vector.load %arg6[%c0_14, %c0_15] : memref<64x128xbf16, #tpu.memory_space<vmem>>, vector<64x128xbf16>
      tpu.vector_store %arg6[%c0_14, %c0_15], %18 {strides = array<i32>} : memref<64x128xbf16, #tpu.memory_space<vmem>>, vector<64x128xbf16>,
    } else {
    }
    return
  }
  func.func @transform_0(%arg0: i32, %arg1: i32, %arg2: i32) -> (i32, i32) {
    %c0_i32 = arith.constant 0 : i32
    return %arg0, %arg2 : i32, i32
  }
  func.func @transform_1(%arg0: i32, %arg1: i32, %arg2: i32) -> (i32, i32) {
    %c0_i32 = arith.constant 0 : i32
    return %arg2, %arg1 : i32, i32
  }
  func.func @transform_2(%arg0: i32, %arg1: i32, %arg2: i32) -> (i32, i32) {
    %c0_i32 = arith.constant 0 : i32
    %c0_i32_0 = arith.constant 0 : i32
    return %c0_i32, %arg1 : i32, i32
  }
  func.func @transform_3(%arg0: i32, %arg1: i32, %arg2: i32) -> (i32, i32) {
    %c0_i32 = arith.constant 0 : i32
    return %arg0, %arg1 : i32, i32
  }
}

module attributes {stable_mosaic.version = 11 : i64} {
  func.func @_matmul_kernel(%arg0: i32, %arg1: i32, %arg2: i32, %arg3: memref<32x256xbf16, #tpu.memory_space<vmem>>, %arg4: memref<256x128xbf16, #tpu.memory_space<vmem>>, %arg5: memref<1x128xf32, #tpu.memory_space<vmem>>, %arg6: memref<32x128xbf16, #tpu.memory_space<vmem>>, %arg7: memref<32x128xf32, #tpu.memory_space<vmem>>) attributes {dimension_semantics = [#tpu.dimension_semantics<parallel>, #tpu.dimension_semantics<parallel>, #tpu.dimension_semantics<arbitrary>], iteration_bounds = array<i64: 1, 1, 3>, scalar_prefetch = 0 : i64, scratch_operands = 1 : i64, tpu.core_type = #tpu.core_type<tc>, window_params = [{transform_indices = @transform_0, window_bounds = array<i64: 32, 256>}, {transform_indices = @transform_1, window_bounds = array<i64: 256, 128>}, {transform_indices = @transform_2, window_bounds = array<i64: 1, 128>}, {transform_indices = @transform_3, window_bounds = array<i64: 32, 128>}]} {
    %c0_i32 = arith.constant 0 : i32
    %0 = arith.cmpi eq, %arg2, %c0_i32 : i32
    %1 = arith.extui %0 : i1 to i32
    %c0_i32_0 = arith.constant 0 : i32
    %2 = arith.cmpi ne, %1, %c0_i32_0 : i32
    scf.if %2 {
      %cst_9 = arith.constant 0.000000e+00 : f32
      %12 = vector.broadcast %cst_9 : f32 to vector<32x128xf32>
      %c0_10 = arith.constant 0 : index
      %c0_11 = arith.constant 0 : index
      %13 = vector.load %arg7[%c0_10, %c0_11] : memref<32x128xf32, #tpu.memory_space<vmem>>, vector<32x128xf32>
      tpu.vector_store %arg7[%c0_10, %c0_11], %12 {strides = array<i32>} : memref<32x128xf32, #tpu.memory_space<vmem>>, vector<32x128xf32>,
    } else {
    }
    %c0 = arith.constant 0 : index
    %c0_1 = arith.constant 0 : index
    %3 = vector.load %arg7[%c0, %c0_1] : memref<32x128xf32, #tpu.memory_space<vmem>>, vector<32x128xf32>
    %c0_2 = arith.constant 0 : index
    %c0_3 = arith.constant 0 : index
    %4 = vector.load %arg3[%c0_2, %c0_3] : memref<32x256xbf16, #tpu.memory_space<vmem>>, vector<32x256xbf16>
    %c0_4 = arith.constant 0 : index
    %c0_5 = arith.constant 0 : index
    %5 = vector.load %arg4[%c0_4, %c0_5] : memref<256x128xbf16, #tpu.memory_space<vmem>>, vector<256x128xbf16>
    %cst = arith.constant dense<0.000000e+00> : vector<32x128xf32>
    %6 = tpu.matmul %4, %5, %cst {dimension_numbers = #tpu.dot_dimension_numbers<[1], [0], [0], [1], [0, 0, 1, 1], [], []>} : vector<32x256xbf16>, vector<256x128xbf16>, vector<32x128xf32> -> vector<32x128xf32>
    %7 = arith.addf %3, %6 : vector<32x128xf32>
    %c0_6 = arith.constant 0 : index
    %c0_7 = arith.constant 0 : index
    %8 = vector.load %arg7[%c0_6, %c0_7] : memref<32x128xf32, #tpu.memory_space<vmem>>, vector<32x128xf32>
    tpu.vector_store %arg7[%c0_6, %c0_7], %7 {strides = array<i32>} : memref<32x128xf32, #tpu.memory_space<vmem>>, vector<32x128xf32>,
    %c2_i32 = arith.constant 2 : i32
    %9 = arith.cmpi eq, %arg2, %c2_i32 : i32
    %10 = arith.extui %9 : i1 to i32
    %c0_i32_8 = arith.constant 0 : i32
    %11 = arith.cmpi ne, %10, %c0_i32_8 : i32
    scf.if %11 {
      %c0_9 = arith.constant 0 : index
      %c0_10 = arith.constant 0 : index
      %12 = vector.load %arg7[%c0_9, %c0_10] : memref<32x128xf32, #tpu.memory_space<vmem>>, vector<32x128xf32>
      %c0_11 = arith.constant 0 : index
      %c0_12 = arith.constant 0 : index
      %13 = vector.load %arg5[%c0_11, %c0_12] : memref<1x128xf32, #tpu.memory_space<vmem>>, vector<1x128xf32>
      %14 = vector.broadcast %13 : vector<1x128xf32> to vector<32x128xf32>
      %15 = arith.addf %12, %14 : vector<32x128xf32>
      %cst_13 = arith.constant 0.000000e+00 : f32
      %16 = vector.broadcast %cst_13 : f32 to vector<32x128xf32>
      %17 = arith.maximumf %15, %16 : vector<32x128xf32>
      %18 = arith.truncf %17 : vector<32x128xf32> to vector<32x128xbf16>
      %c0_14 = arith.constant 0 : index
      %c0_15 = arith.constant 0 : index
      %19 = vector.load %arg6[%c0_14, %c0_15] : memref<32x128xbf16, #tpu.memory_space<vmem>>, vector<32x128xbf16>
      tpu.vector_store %arg6[%c0_14, %c0_15], %18 {strides = array<i32>} : memref<32x128xbf16, #tpu.memory_space<vmem>>, vector<32x128xbf16>,
    } else {
    }
    return
  }
  func.func @transform_0(%arg0: i32, %arg1: i32, %arg2: i32) -> (i32, i32) {
    %c0_i32 = arith.constant 0 : i32
    return %arg0, %arg2 : i32, i32
  }
  func.func @transform_1(%arg0: i32, %arg1: i32, %arg2: i32) -> (i32, i32) {
    %c0_i32 = arith.constant 0 : i32
    return %arg2, %arg1 : i32, i32
  }
  func.func @transform_2(%arg0: i32, %arg1: i32, %arg2: i32) -> (i32, i32) {
    %c0_i32 = arith.constant 0 : i32
    %c0_i32_0 = arith.constant 0 : i32
    return %c0_i32, %arg1 : i32, i32
  }
  func.func @transform_3(%arg0: i32, %arg1: i32, %arg2: i32) -> (i32, i32) {
    %c0_i32 = arith.constant 0 : i32
    return %arg0, %arg1 : i32, i32
  }
}

module attributes {stable_mosaic.version = 11 : i64} {
  func.func @_fc_head_kernel(%arg0: i32, %arg1: i32, %arg2: memref<16x256xbf16, #tpu.memory_space<vmem>>, %arg3: memref<256x512xbf16, #tpu.memory_space<vmem>>, %arg4: memref<1x512xf32, #tpu.memory_space<vmem>>, %arg5: memref<512x128xbf16, #tpu.memory_space<vmem>>, %arg6: memref<1x128xf32, #tpu.memory_space<vmem>>, %arg7: memref<16x128xf32, #tpu.memory_space<vmem>>, %arg8: memref<16x512xf32, #tpu.memory_space<vmem>>) attributes {dimension_semantics = [#tpu.dimension_semantics<parallel>, #tpu.dimension_semantics<arbitrary>], iteration_bounds = array<i64: 1, 3>, scalar_prefetch = 0 : i64, scratch_operands = 1 : i64, tpu.core_type = #tpu.core_type<tc>, window_params = [{transform_indices = @transform_0, window_bounds = array<i64: 16, 256>}, {transform_indices = @transform_1, window_bounds = array<i64: 256, 512>}, {pipeline_mode = #tpu.pipeline_mode<synchronous>, transform_indices = @transform_2, window_bounds = array<i64: 1, 512>}, {pipeline_mode = #tpu.pipeline_mode<synchronous>, transform_indices = @transform_3, window_bounds = array<i64: 512, 128>}, {pipeline_mode = #tpu.pipeline_mode<synchronous>, transform_indices = @transform_4, window_bounds = array<i64: 1, 128>}, {transform_indices = @transform_5, window_bounds = array<i64: 16, 128>}]} {
    %c0_i32 = arith.constant 0 : i32
    %0 = arith.cmpi eq, %arg1, %c0_i32 : i32
    %1 = arith.extui %0 : i1 to i32
    %c0_i32_0 = arith.constant 0 : i32
    %2 = arith.cmpi ne, %1, %c0_i32_0 : i32
    scf.if %2 {
      %cst_9 = arith.constant 0.000000e+00 : f32
      %12 = vector.broadcast %cst_9 : f32 to vector<16x512xf32>
      %c0_10 = arith.constant 0 : index
      %c0_11 = arith.constant 0 : index
      %13 = vector.load %arg8[%c0_10, %c0_11] : memref<16x512xf32, #tpu.memory_space<vmem>>, vector<16x512xf32>
      tpu.vector_store %arg8[%c0_10, %c0_11], %12 {strides = array<i32>} : memref<16x512xf32, #tpu.memory_space<vmem>>, vector<16x512xf32>,
    } else {
    }
    %c0 = arith.constant 0 : index
    %c0_1 = arith.constant 0 : index
    %3 = vector.load %arg8[%c0, %c0_1] : memref<16x512xf32, #tpu.memory_space<vmem>>, vector<16x512xf32>
    %c0_2 = arith.constant 0 : index
    %c0_3 = arith.constant 0 : index
    %4 = vector.load %arg2[%c0_2, %c0_3] : memref<16x256xbf16, #tpu.memory_space<vmem>>, vector<16x256xbf16>
    %c0_4 = arith.constant 0 : index
    %c0_5 = arith.constant 0 : index
    %5 = vector.load %arg3[%c0_4, %c0_5] : memref<256x512xbf16, #tpu.memory_space<vmem>>, vector<256x512xbf16>
    %cst = arith.constant dense<0.000000e+00> : vector<16x512xf32>
    %6 = tpu.matmul %4, %5, %cst {dimension_numbers = #tpu.dot_dimension_numbers<[1], [0], [0], [1], [0, 0, 1, 1], [], []>} : vector<16x256xbf16>, vector<256x512xbf16>, vector<16x512xf32> -> vector<16x512xf32>
    %7 = arith.addf %3, %6 : vector<16x512xf32>
    %c0_6 = arith.constant 0 : index
    %c0_7 = arith.constant 0 : index
    %8 = vector.load %arg8[%c0_6, %c0_7] : memref<16x512xf32, #tpu.memory_space<vmem>>, vector<16x512xf32>
    tpu.vector_store %arg8[%c0_6, %c0_7], %7 {strides = array<i32>} : memref<16x512xf32, #tpu.memory_space<vmem>>, vector<16x512xf32>,
    %c2_i32 = arith.constant 2 : i32
    %9 = arith.cmpi eq, %arg1, %c2_i32 : i32
    %10 = arith.extui %9 : i1 to i32
    %c0_i32_8 = arith.constant 0 : i32
    %11 = arith.cmpi ne, %10, %c0_i32_8 : i32
    scf.if %11 {
      %c0_9 = arith.constant 0 : index
      %c0_10 = arith.constant 0 : index
      %12 = vector.load %arg8[%c0_9, %c0_10] : memref<16x512xf32, #tpu.memory_space<vmem>>, vector<16x512xf32>
      %c0_11 = arith.constant 0 : index
      %c0_12 = arith.constant 0 : index
      %13 = vector.load %arg4[%c0_11, %c0_12] : memref<1x512xf32, #tpu.memory_space<vmem>>, vector<1x512xf32>
      %14 = vector.broadcast %13 : vector<1x512xf32> to vector<16x512xf32>
      %15 = arith.addf %12, %14 : vector<16x512xf32>
      %cst_13 = arith.constant 0.000000e+00 : f32
      %16 = vector.broadcast %cst_13 : f32 to vector<16x512xf32>
      %17 = arith.maximumf %15, %16 : vector<16x512xf32>
      %18 = arith.truncf %17 : vector<16x512xf32> to vector<16x512xbf16>
      %c0_14 = arith.constant 0 : index
      %c0_15 = arith.constant 0 : index
      %19 = vector.load %arg5[%c0_14, %c0_15] : memref<512x128xbf16, #tpu.memory_space<vmem>>, vector<512x128xbf16>
      %cst_16 = arith.constant dense<0.000000e+00> : vector<16x128xf32>
      %20 = tpu.matmul %18, %19, %cst_16 {dimension_numbers = #tpu.dot_dimension_numbers<[1], [0], [0], [1], [0, 0, 1, 1], [], []>} : vector<16x512xbf16>, vector<512x128xbf16>, vector<16x128xf32> -> vector<16x128xf32>
      %c0_17 = arith.constant 0 : index
      %c0_18 = arith.constant 0 : index
      %21 = vector.load %arg6[%c0_17, %c0_18] : memref<1x128xf32, #tpu.memory_space<vmem>>, vector<1x128xf32>
      %22 = vector.broadcast %21 : vector<1x128xf32> to vector<16x128xf32>
      %23 = arith.addf %20, %22 : vector<16x128xf32>
      %c0_19 = arith.constant 0 : index
      %c0_20 = arith.constant 0 : index
      %24 = vector.load %arg7[%c0_19, %c0_20] : memref<16x128xf32, #tpu.memory_space<vmem>>, vector<16x128xf32>
      tpu.vector_store %arg7[%c0_19, %c0_20], %23 {strides = array<i32>} : memref<16x128xf32, #tpu.memory_space<vmem>>, vector<16x128xf32>,
    } else {
    }
    return
  }
  func.func @transform_0(%arg0: i32, %arg1: i32) -> (i32, i32) {
    %c0_i32 = arith.constant 0 : i32
    return %arg0, %arg1 : i32, i32
  }
  func.func @transform_1(%arg0: i32, %arg1: i32) -> (i32, i32) {
    %c0_i32 = arith.constant 0 : i32
    %c0_i32_0 = arith.constant 0 : i32
    return %arg1, %c0_i32 : i32, i32
  }
  func.func @transform_2(%arg0: i32, %arg1: i32) -> (i32, i32) {
    %c0_i32 = arith.constant 0 : i32
    %c0_i32_0 = arith.constant 0 : i32
    %c0_i32_1 = arith.constant 0 : i32
    return %c0_i32, %c0_i32_0 : i32, i32
  }
  func.func @transform_3(%arg0: i32, %arg1: i32) -> (i32, i32) {
    %c0_i32 = arith.constant 0 : i32
    %c0_i32_0 = arith.constant 0 : i32
    %c0_i32_1 = arith.constant 0 : i32
    return %c0_i32, %c0_i32_0 : i32, i32
  }
  func.func @transform_4(%arg0: i32, %arg1: i32) -> (i32, i32) {
    %c0_i32 = arith.constant 0 : i32
    %c0_i32_0 = arith.constant 0 : i32
    %c0_i32_1 = arith.constant 0 : i32
    return %c0_i32, %c0_i32_0 : i32, i32
  }
  func.func @transform_5(%arg0: i32, %arg1: i32) -> (i32, i32) {
    %c0_i32 = arith.constant 0 : i32
    %c0_i32_0 = arith.constant 0 : i32
    return %arg0, %c0_i32 : i32, i32
  }
}

</mosaic_0001>

<llo_original>
// kernel: cnn_dqn_forward.4
$region0: #{cnn_dqn_forward.4}
  #allocation0 [shape = 'u32[]', space=smem, size = 0x4, offset = 0x4, fixed_abs, tag = 'smem constant byte address 0x4 - core index']
  #allocation1 [shape = 'u32[144,128]{1,0:T(1,128)}', space=vmem, size = 0x12000, scoped, tag = 'internal scratch']
  #allocation2 [shape = 'f32[288,128]{1,0:T(8,128)}', space=vmem, size = 0x24000, scoped, tag = 'scratch operand']
  %s0 = inlined_call_operand.vmem [shape: bf16[288,256], index: 0, kind: input, shape index: {}]
  %s1 = inlined_call_operand.vmem [shape: bf16[256,128], index: 1, kind: input, shape index: {}]
  %s2 = inlined_call_operand.vmem [shape: f32[1,128], index: 2, kind: input, shape index: {}]
  %s3 = inlined_call_operand.vmem [shape: bf16[288,128], index: 3, kind: output, shape index: {}]
  %s4 = sld [smem:[#allocation0]]
  $region30: #{cnn_dqn_forward.4} parent=0
    _
  %s6 = ssub.s32 1, %s4
  %s7 = scalar_select 0, %s6, %s4
  // Predicated region
  $region2: #{cnn_dqn_forward.4} parent=0 // pred_check
    _
  $region3: #{cnn_dqn_forward.4} parent=0 // pred_check_branch
    %9 = sbr.rel (0) target = $region5
  $region4: #{cnn_dqn_forward.4} parent=0 // pred_region
    _
  $region5: #{cnn_dqn_forward.4} parent=0 // pred_fallthru
    _
  // Predicated region
  $region6: #{cnn_dqn_forward.4} parent=0 // pred_check
    _
  $region7: #{cnn_dqn_forward.4} parent=0 // pred_check_branch
    %11 = sbr.rel (0) target = $region9
  $region8: #{cnn_dqn_forward.4} parent=0 // pred_region
    _
  $region9: #{cnn_dqn_forward.4} parent=0 // pred_fallthru
    _
  // Predicated region
  $region10: #{cnn_dqn_forward.4} parent=0 // pred_check
    _
  $region11: #{cnn_dqn_forward.4} parent=0 // pred_check_branch
    %13 = sbr.rel (0) target = $region13
  $region12: #{cnn_dqn_forward.4} parent=0 // pred_region
    _
  $region13: #{cnn_dqn_forward.4} parent=0 // pred_fallthru
    _
  %p15 = scmp.eq.s32.totalorder 0, 0
  // Predicated region
  $region14: #{cnn_dqn_forward.4} parent=0 // pred_check
    %p16 = pneg %p15
  $region15: #{cnn_dqn_forward.4} parent=0 // pred_check_branch
    %18 = sbr.rel (%p16) target = $region17
  $region16: #{cnn_dqn_forward.4} parent=0 // pred_region
    %19 = vst [vmem:[#allocation2] sm:$0xff] 0.0
    %20 = vst [vmem:[#allocation2 + $0x8] sm:$0xff] 0.0
    %21 = vst [vmem:[#allocation2 + $0x10] sm:$0xff] 0.0
    %22 = vst [vmem:[#allocation2 + $0x18] sm:$0xff] 0.0
    %23 = vst [vmem:[#allocation2 + $0x20] sm:$0xff] 0.0
    %24 = vst [vmem:[#allocation2 + $0x28] sm:$0xff] 0.0
    %25 = vst [vmem:[#allocation2 + $0x30] sm:$0xff] 0.0
    %26 = vst [vmem:[#allocation2 + $0x38] sm:$0xff] 0.0
    %27 = vst [vmem:[#allocation2 + $0x40] sm:$0xff] 0.0
    %28 = vst [vmem:[#allocation2 + $0x48] sm:$0xff] 0.0
    %29 = vst [vmem:[#allocation2 + $0x50] sm:$0xff] 0.0
    %30 = vst [vmem:[#allocation2 + $0x58] sm:$0xff] 0.0
    %31 = vst [vmem:[#allocation2 + $0x60] sm:$0xff] 0.0
    %32 = vst [vmem:[#allocation2 + $0x68] sm:$0xff] 0.0
    %33 = vst [vmem:[#allocation2 + $0x70] sm:$0xff] 0.0
    %34 = vst [vmem:[#allocation2 + $0x78] sm:$0xff] 0.0
    %35 = vst [vmem:[#allocation2 + $0x80] sm:$0xff] 0.0
    %36 = vst [vmem:[#allocation2 + $0x88] sm:$0xff] 0.0
    %37 = vst [vmem:[#allocation2 + $0x90] sm:$0xff] 0.0
    %38 = vst [vmem:[#allocation2 + $0x98] sm:$0xff] 0.0
    %39 = vst [vmem:[#allocation2 + $0xa0] sm:$0xff] 0.0
    %40 = vst [vmem:[#allocation2 + $0xa8] sm:$0xff] 0.0
    %41 = vst [vmem:[#allocation2 + $0xb0] sm:$0xff] 0.0
    %42 = vst [vmem:[#allocation2 + $0xb8] sm:$0xff] 0.0
    %43 = vst [vmem:[#allocation2 + $0xc0] sm:$0xff] 0.0
    %44 = vst [vmem:[#allocation2 + $0xc8] sm:$0xff] 0.0
    %45 = vst [vmem:[#allocation2 + $0xd0] sm:$0xff] 0.0
    %46 = vst [vmem:[#allocation2 + $0xd8] sm:$0xff] 0.0
    %47 = vst [vmem:[#allocation2 + $0xe0] sm:$0xff] 0.0
    %48 = vst [vmem:[#allocation2 + $0xe8] sm:$0xff] 0.0
    %49 = vst [vmem:[#allocation2 + $0xf0] sm:$0xff] 0.0
    %50 = vst [vmem:[#allocation2 + $0xf8] sm:$0xff] 0.0
    %51 = vst [vmem:[#allocation2 + $0x100] sm:$0xff] 0.0
    %52 = vst [vmem:[#allocation2 + $0x108] sm:$0xff] 0.0
    %53 = vst [vmem:[#allocation2 + $0x110] sm:$0xff] 0.0
    %54 = vst [vmem:[#allocation2 + $0x118] sm:$0xff] 0.0
  $region17: #{cnn_dqn_forward.4} parent=0 // pred_fallthru
    _
  %v55 = vld [vmem:[#allocation2] sm:$0xff]
  %v56 = vld [vmem:[#allocation2 + $0x8] sm:$0xff]
  %v57 = vld [vmem:[#allocation2 + $0x10] sm:$0xff]
  %v58 = vld [vmem:[#allocation2 + $0x18] sm:$0xff]
  %v59 = vld [vmem:[#allocation2 + $0x20] sm:$0xff]
  %v60 = vld [vmem:[#allocation2 + $0x28] sm:$0xff]
  %v61 = vld [vmem:[#allocation2 + $0x30] sm:$0xff]
  %v62 = vld [vmem:[#allocation2 + $0x38] sm:$0xff]
  %v63 = vld [vmem:[#allocation2 + $0x40] sm:$0xff]
  %v64 = vld [vmem:[#allocation2 + $0x48] sm:$0xff]
  %v65 = vld [vmem:[#allocation2 + $0x50] sm:$0xff]
  %v66 = vld [vmem:[#allocation2 + $0x58] sm:$0xff]
  %v67 = vld [vmem:[#allocation2 + $0x60] sm:$0xff]
  %v68 = vld [vmem:[#allocation2 + $0x68] sm:$0xff]
  %v69 = vld [vmem:[#allocation2 + $0x70] sm:$0xff]
  %v70 = vld [vmem:[#allocation2 + $0x78] sm:$0xff]
  %v71 = vld [vmem:[#allocation2 + $0x80] sm:$0xff]
  %v72 = vld [vmem:[#allocation2 + $0x88] sm:$0xff]
  %v73 = vld [vmem:[#allocation2 + $0x90] sm:$0xff]
  %v74 = vld [vmem:[#allocation2 + $0x98] sm:$0xff]
  %v75 = vld [vmem:[#allocation2 + $0xa0] sm:$0xff]
  %v76 = vld [vmem:[#allocation2 + $0xa8] sm:$0xff]
  %v77 = vld [vmem:[#allocation2 + $0xb0] sm:$0xff]
  %v78 = vld [vmem:[#allocation2 + $0xb8] sm:$0xff]
  %v79 = vld [vmem:[#allocation2 + $0xc0] sm:$0xff]
  %v80 = vld [vmem:[#allocation2 + $0xc8] sm:$0xff]
  %v81 = vld [vmem:[#allocation2 + $0xd0] sm:$0xff]
  %v82 = vld [vmem:[#allocation2 + $0xd8] sm:$0xff]
  %v83 = vld [vmem:[#allocation2 + $0xe0] sm:$0xff]
  %v84 = vld [vmem:[#allocation2 + $0xe8] sm:$0xff]
  %v85 = vld [vmem:[#allocation2 + $0xf0] sm:$0xff]
  %v86 = vld [vmem:[#allocation2 + $0xf8] sm:$0xff]
  %v87 = vld [vmem:[#allocation2 + $0x100] sm:$0xff]
  %v88 = vld [vmem:[#allocation2 + $0x108] sm:$0xff]
  %v89 = vld [vmem:[#allocation2 + $0x110] sm:$0xff]
  %v90 = vld [vmem:[#allocation2 + $0x118] sm:$0xff]
  %v91 = vld [vmem:[%s0] sm:$0xff]
  %v92 = vld [vmem:[%s0 + $0x8] sm:$0xff]
  %v93 = vld [vmem:[%s0 + $0x10] sm:$0xff]
  %v94 = vld [vmem:[%s0 + $0x18] sm:$0xff]
  %v95 = vld [vmem:[%s0 + $0x20] sm:$0xff]
  %v96 = vld [vmem:[%s0 + $0x28] sm:$0xff]
  %v97 = vld [vmem:[%s0 + $0x30] sm:$0xff]
  %v98 = vld [vmem:[%s0 + $0x38] sm:$0xff]
  %v99 = vld [vmem:[%s0 + $0x40] sm:$0xff]
  %v100 = vld [vmem:[%s0 + $0x48] sm:$0xff]
  %v101 = vld [vmem:[%s0 + $0x50] sm:$0xff]
  %v102 = vld [vmem:[%s0 + $0x58] sm:$0xff]
  %v103 = vld [vmem:[%s0 + $0x60] sm:$0xff]
  %v104 = vld [vmem:[%s0 + $0x68] sm:$0xff]
  %v105 = vld [vmem:[%s0 + $0x70] sm:$0xff]
  %v106 = vld [vmem:[%s0 + $0x78] sm:$0xff]
  %v107 = vld [vmem:[%s0 + $0x80] sm:$0xff]
  %v108 = vld [vmem:[%s0 + $0x88] sm:$0xff]
  %v109 = vld [vmem:[%s0 + $0x90] sm:$0xff]
  %v110 = vld [vmem:[%s0 + $0x98] sm:$0xff]
  %v111 = vld [vmem:[%s0 + $0xa0] sm:$0xff]
  %v112 = vld [vmem:[%s0 + $0xa8] sm:$0xff]
  %v113 = vld [vmem:[%s0 + $0xb0] sm:$0xff]
  %v114 = vld [vmem:[%s0 + $0xb8] sm:$0xff]
  %v115 = vld [vmem:[%s0 + $0xc0] sm:$0xff]
  %v116 = vld [vmem:[%s0 + $0xc8] sm:$0xff]
  %v117 = vld [vmem:[%s0 + $0xd0] sm:$0xff]
  %v118 = vld [vmem:[%s0 + $0xd8] sm:$0xff]
  %v119 = vld [vmem:[%s0 + $0xe0] sm:$0xff]
  %v120 = vld [vmem:[%s0 + $0xe8] sm:$0xff]
  %v121 = vld [vmem:[%s0 + $0xf0] sm:$0xff]
  %v122 = vld [vmem:[%s0 + $0xf8] sm:$0xff]
  %v123 = vld [vmem:[%s0 + $0x100] sm:$0xff]
  %v124 = vld [vmem:[%s0 + $0x108] sm:$0xff]
  %v125 = vld [vmem:[%s0 + $0x110] sm:$0xff]
  %v126 = vld [vmem:[%s0 + $0x118] sm:$0xff]
  %v127 = vld [vmem:[%s1] sm:$0xf]
  %v128 = vld [vmem:[%s1 + $0x4] sm:$0xf]
  %v129 = vld [vmem:[%s1 + $0x8] sm:$0xf]
  %v130 = vld [vmem:[%s1 + $0xc] sm:$0xf]
  %v131 = vld [vmem:[%s1 + $0x10] sm:$0xf]
  %v132 = vld [vmem:[%s1 + $0x14] sm:$0xf]
  %v133 = vld [vmem:[%s1 + $0x18] sm:$0xf]
  %v134 = vld [vmem:[%s1 + $0x1c] sm:$0xf]
  %v135 = vld [vmem:[%s1 + $0x20] sm:$0xf]
  %v136 = vld [vmem:[%s1 + $0x24] sm:$0xf]
  %v137 = vld [vmem:[%s1 + $0x28] sm:$0xf]
  %v138 = vld [vmem:[%s1 + $0x2c] sm:$0xf]
  %v139 = vld [vmem:[%s1 + $0x30] sm:$0xf]
  %v140 = vld [vmem:[%s1 + $0x34] sm:$0xf]
  %v141 = vld [vmem:[%s1 + $0x38] sm:$0xf]
  %v142 = vld [vmem:[%s1 + $0x3c] sm:$0xf]
  %v143 = vld [vmem:[%s1 + $0x40] sm:$0xf]
  %v144 = vld [vmem:[%s1 + $0x44] sm:$0xf]
  %v145 = vld [vmem:[%s1 + $0x48] sm:$0xf]
  %v146 = vld [vmem:[%s1 + $0x4c] sm:$0xf]
  %v147 = vld [vmem:[%s1 + $0x50] sm:$0xf]
  %v148 = vld [vmem:[%s1 + $0x54] sm:$0xf]
  %v149 = vld [vmem:[%s1 + $0x58] sm:$0xf]
  %v150 = vld [vmem:[%s1 + $0x5c] sm:$0xf]
  %v151 = vld [vmem:[%s1 + $0x60] sm:$0xf]
  %v152 = vld [vmem:[%s1 + $0x64] sm:$0xf]
  %v153 = vld [vmem:[%s1 + $0x68] sm:$0xf]
  %v154 = vld [vmem:[%s1 + $0x6c] sm:$0xf]
  %v155 = vld [vmem:[%s1 + $0x70] sm:$0xf]
  %v156 = vld [vmem:[%s1 + $0x74] sm:$0xf]
  %v157 = vld [vmem:[%s1 + $0x78] sm:$0xf]
  %v158 = vld [vmem:[%s1 + $0x7c] sm:$0xf]
  %v195 = vunpack.c.l.b16 %v91
  %v196 = vunpack.c.h.b16 %v91
  %v197 = vunpack.c.l.b16 %v92
  %v198 = vunpack.c.h.b16 %v92
  %v199 = vunpack.c.l.b16 %v93
  %v200 = vunpack.c.h.b16 %v93
  %v201 = vunpack.c.l.b16 %v94
  %v202 = vunpack.c.h.b16 %v94
  %v203 = vunpack.c.l.b16 %v95
  %v204 = vunpack.c.h.b16 %v95
  %v205 = vunpack.c.l.b16 %v96
  %v206 = vunpack.c.h.b16 %v96
  %v207 = vunpack.c.l.b16 %v97
  %v208 = vunpack.c.h.b16 %v97
  %v209 = vunpack.c.l.b16 %v98
  %v210 = vunpack.c.h.b16 %v98
  %v211 = vunpack.c.l.b16 %v99
  %v212 = vunpack.c.h.b16 %v99
  %v213 = vunpack.c.l.b16 %v100
  %v214 = vunpack.c.h.b16 %v100
  %v215 = vunpack.c.l.b16 %v101
  %v216 = vunpack.c.h.b16 %v101
  %v217 = vunpack.c.l.b16 %v102
  %v218 = vunpack.c.h.b16 %v102
  %v219 = vunpack.c.l.b16 %v103
  %v220 = vunpack.c.h.b16 %v103
  %v221 = vunpack.c.l.b16 %v104
  %v222 = vunpack.c.h.b16 %v104
  %v223 = vunpack.c.l.b16 %v105
  %v224 = vunpack.c.h.b16 %v105
  %v225 = vunpack.c.l.b16 %v106
  %v226 = vunpack.c.h.b16 %v106
  %v227 = vunpack.c.l.b16 %v107
  %v228 = vunpack.c.h.b16 %v107
  %v229 = vunpack.c.l.b16 %v108
  %v230 = vunpack.c.h.b16 %v108
  %v231 = vunpack.c.l.b16 %v109
  %v232 = vunpack.c.h.b16 %v109
  %v233 = vunpack.c.l.b16 %v110
  %v234 = vunpack.c.h.b16 %v110
  %v235 = vunpack.c.l.b16 %v111
  %v236 = vunpack.c.h.b16 %v111
  %v237 = vunpack.c.l.b16 %v112
  %v238 = vunpack.c.h.b16 %v112
  %v239 = vunpack.c.l.b16 %v113
  %v240 = vunpack.c.h.b16 %v113
  %v241 = vunpack.c.l.b16 %v114
  %v242 = vunpack.c.h.b16 %v114
  %v243 = vunpack.c.l.b16 %v115
  %v244 = vunpack.c.h.b16 %v115
  %v245 = vunpack.c.l.b16 %v116
  %v246 = vunpack.c.h.b16 %v116
  %v247 = vunpack.c.l.b16 %v117
  %v248 = vunpack.c.h.b16 %v117
  %v249 = vunpack.c.l.b16 %v118
  %v250 = vunpack.c.h.b16 %v118
  %v251 = vunpack.c.l.b16 %v119
  %v252 = vunpack.c.h.b16 %v119
  %v253 = vunpack.c.l.b16 %v120
  %v254 = vunpack.c.h.b16 %v120
  %v255 = vunpack.c.l.b16 %v121
  %v256 = vunpack.c.h.b16 %v121
  %v257 = vunpack.c.l.b16 %v122
  %v258 = vunpack.c.h.b16 %v122
  %v259 = vunpack.c.l.b16 %v123
  %v260 = vunpack.c.h.b16 %v123
  %v261 = vunpack.c.l.b16 %v124
  %v262 = vunpack.c.h.b16 %v124
  %v263 = vunpack.c.l.b16 %v125
  %v264 = vunpack.c.h.b16 %v125
  %v265 = vunpack.c.l.b16 %v126
  %v266 = vunpack.c.h.b16 %v126
  %v267 = vpack.c.b16 %v197, %v195
  %v268 = vpack.c.b16 %v198, %v196
  %v269 = vpack.c.b16 %v201, %v199
  %v270 = vpack.c.b16 %v202, %v200
  %v271 = vpack.c.b16 %v205, %v203
  %v272 = vpack.c.b16 %v206, %v204
  %v273 = vpack.c.b16 %v209, %v207
  %v274 = vpack.c.b16 %v210, %v208
  %v275 = vpack.c.b16 %v213, %v211
  %v276 = vpack.c.b16 %v214, %v212
  %v277 = vpack.c.b16 %v217, %v215
  %v278 = vpack.c.b16 %v218, %v216
  %v279 = vpack.c.b16 %v221, %v219
  %v280 = vpack.c.b16 %v222, %v220
  %v281 = vpack.c.b16 %v225, %v223
  %v282 = vpack.c.b16 %v226, %v224
  %v283 = vpack.c.b16 %v229, %v227
  %v284 = vpack.c.b16 %v230, %v228
  %v285 = vpack.c.b16 %v233, %v231
  %v286 = vpack.c.b16 %v234, %v232
  %v287 = vpack.c.b16 %v237, %v235
  %v288 = vpack.c.b16 %v238, %v236
  %v289 = vpack.c.b16 %v241, %v239
  %v290 = vpack.c.b16 %v242, %v240
  %v291 = vpack.c.b16 %v245, %v243
  %v292 = vpack.c.b16 %v246, %v244
  %v293 = vpack.c.b16 %v249, %v247
  %v294 = vpack.c.b16 %v250, %v248
  %v295 = vpack.c.b16 %v253, %v251
  %v296 = vpack.c.b16 %v254, %v252
  %v297 = vpack.c.b16 %v257, %v255
  %v298 = vpack.c.b16 %v258, %v256
  %v299 = vpack.c.b16 %v261, %v259
  %v300 = vpack.c.b16 %v262, %v260
  %v301 = vpack.c.b16 %v265, %v263
  %v302 = vpack.c.b16 %v266, %v264
  %v371 = vunpack.c.l.b16 %v127
  %v372 = vunpack.c.l.b16 %v128
  %v373 = vunpack.c.l.b16 %v129
  %v374 = vunpack.c.l.b16 %v130
  %v375 = vunpack.c.l.b16 %v131
  %v376 = vunpack.c.l.b16 %v132
  %v377 = vunpack.c.l.b16 %v133
  %v378 = vunpack.c.l.b16 %v134
  %v379 = vunpack.c.l.b16 %v135
  %v380 = vunpack.c.l.b16 %v136
  %v381 = vunpack.c.l.b16 %v137
  %v382 = vunpack.c.l.b16 %v138
  %v383 = vunpack.c.l.b16 %v139
  %v384 = vunpack.c.l.b16 %v140
  %v385 = vunpack.c.l.b16 %v141
  %v386 = vunpack.c.l.b16 %v142
  %v387 = vunpack.c.l.b16 %v143
  %v388 = vunpack.c.l.b16 %v144
  %v389 = vunpack.c.l.b16 %v145
  %v390 = vunpack.c.l.b16 %v146
  %v391 = vunpack.c.l.b16 %v147
  %v392 = vunpack.c.l.b16 %v148
  %v393 = vunpack.c.l.b16 %v149
  %v394 = vunpack.c.l.b16 %v150
  %v395 = vunpack.c.l.b16 %v151
  %v396 = vunpack.c.l.b16 %v152
  %v397 = vunpack.c.l.b16 %v153
  %v398 = vunpack.c.l.b16 %v154
  %v399 = vunpack.c.l.b16 %v155
  %v400 = vunpack.c.l.b16 %v156
  %v401 = vunpack.c.l.b16 %v157
  %v402 = vunpack.c.l.b16 %v158
  %v403 = vpack.c.b16 %v372, %v371
  %v404 = vpack.c.b16 %v374, %v373
  %v405 = vpack.c.b16 %v376, %v375
  %v406 = vpack.c.b16 %v378, %v377
  %v407 = vpack.c.b16 %v380, %v379
  %v408 = vpack.c.b16 %v382, %v381
  %v409 = vpack.c.b16 %v384, %v383
  %v410 = vpack.c.b16 %v386, %v385
  %v411 = vpack.c.b16 %v388, %v387
  %v412 = vpack.c.b16 %v390, %v389
  %v413 = vpack.c.b16 %v392, %v391
  %v414 = vpack.c.b16 %v394, %v393
  %v415 = vpack.c.b16 %v396, %v395
  %v416 = vpack.c.b16 %v398, %v397
  %v417 = vpack.c.b16 %v400, %v399
  %v418 = vpack.c.b16 %v402, %v401
  %435 = vmatprep.subr.bf16.mxu0 0
  %436 = vmatpush1.bf16.msra.mxu0 %v410
  %437 = vmatprep.subr.bf16.mxu0 0
  %438 = vmatpush1.bf16.msra.mxu0 %v409
  %439 = vmatprep.subr.bf16.mxu0 0
  %440 = vmatpush1.bf16.msra.mxu0 %v408
  %441 = vmatprep.subr.bf16.mxu0 0
  %442 = vmatpush1.bf16.msra.mxu0 %v407
  %443 = vmatprep.subr.bf16.mxu0 0
  %444 = vmatpush1.bf16.msra.mxu0 %v406
  %445 = vmatprep.subr.bf16.mxu0 0
  %446 = vmatpush1.bf16.msra.mxu0 %v405
  %447 = vmatprep.subr.bf16.mxu0 0
  %448 = vmatpush1.bf16.msra.mxu0 %v404
  %449 = vmatprep.subr.bf16.mxu0 0
  %450 = vmatpush1.bf16.msra.mxu0 %v403
  %451 = vmatprep.subr.bf16.mxu0 0
  %452 = vmatpush2.bf16.msra.mxu0 %v418
  %453 = vmatprep.subr.bf16.mxu0 0
  %454 = vmatpush2.bf16.msra.mxu0 %v417
  %455 = vmatprep.subr.bf16.mxu0 0
  %456 = vmatpush2.bf16.msra.mxu0 %v416
  %457 = vmatprep.subr.bf16.mxu0 0
  %458 = vmatpush2.bf16.msra.mxu0 %v415
  %459 = vmatprep.subr.bf16.mxu0 0
  %460 = vmatpush2.bf16.msra.mxu0 %v414
  %461 = vmatprep.subr.bf16.mxu0 0
  %462 = vmatpush2.bf16.msra.mxu0 %v413
  %463 = vmatprep.subr.bf16.mxu0 0
  %464 = vmatpush2.bf16.msra.mxu0 %v412
  %465 = vmatprep.subr.bf16.mxu0 0
  %466 = vmatpush2.bf16.msra.mxu0 %v411
  %467 = vmatprep.mubr.bf16.mxu0 %v268
  %468 = vmatmul.mubr.bf16.gmra.mxu0 %v267
  %v469 = vpop.f32.mrf.mxu0
  %v470 = vadd.f32 0.0, %v469
  %v471 = vpop.f32.mrf.mxu0
  %v472 = vpop.f32.mrf.mxu0
  %v473 = vadd.f32 0.0, %v472
  %v474 = vpop.f32.mrf.mxu0
  %475 = vmatprep.mubr.bf16.mxu0 %v270
  %476 = vmatmul.mubr.bf16.gmra.mxu0 %v269
  %v477 = vpop.f32.mrf.mxu0
  %v478 = vadd.f32 0.0, %v477
  %v479 = vpop.f32.mrf.mxu0
  %v480 = vpop.f32.mrf.mxu0
  %v481 = vadd.f32 0.0, %v480
  %v482 = vpop.f32.mrf.mxu0
  %483 = vmatprep.mubr.bf16.mxu0 %v272
  %484 = vmatmul.mubr.bf16.gmra.mxu0 %v271
  %v485 = vpop.f32.mrf.mxu0
  %v486 = vadd.f32 0.0, %v485
  %v487 = vpop.f32.mrf.mxu0
  %v488 = vpop.f32.mrf.mxu0
  %v489 = vadd.f32 0.0, %v488
  %v490 = vpop.f32.mrf.mxu0
  %491 = vmatprep.mubr.bf16.mxu0 %v274
  %492 = vmatmul.mubr.bf16.gmra.mxu0 %v273
  %v493 = vpop.f32.mrf.mxu0
  %v494 = vadd.f32 0.0, %v493
  %v495 = vpop.f32.mrf.mxu0
  %v496 = vpop.f32.mrf.mxu0
  %v497 = vadd.f32 0.0, %v496
  %v498 = vpop.f32.mrf.mxu0
  %499 = vmatprep.mubr.bf16.mxu0 %v276
  %500 = vmatmul.mubr.bf16.gmra.mxu0 %v275
  %v501 = vpop.f32.mrf.mxu0
  %v502 = vadd.f32 0.0, %v501
  %v503 = vpop.f32.mrf.mxu0
  %v504 = vpop.f32.mrf.mxu0
  %v505 = vadd.f32 0.0, %v504
  %v506 = vpop.f32.mrf.mxu0
  %507 = vmatprep.mubr.bf16.mxu0 %v278
  %508 = vmatmul.mubr.bf16.gmra.mxu0 %v277
  %v509 = vpop.f32.mrf.mxu0
  %v510 = vadd.f32 0.0, %v509
  %v511 = vpop.f32.mrf.mxu0
  %v512 = vpop.f32.mrf.mxu0
  %v513 = vadd.f32 0.0, %v512
  %v514 = vpop.f32.mrf.mxu0
  %515 = vmatprep.mubr.bf16.mxu0 %v280
  %516 = vmatmul.mubr.bf16.gmra.mxu0 %v279
  %v517 = vpop.f32.mrf.mxu0
  %v518 = vadd.f32 0.0, %v517
  %v519 = vpop.f32.mrf.mxu0
  %v520 = vpop.f32.mrf.mxu0
  %v521 = vadd.f32 0.0, %v520
  %v522 = vpop.f32.mrf.mxu0
  %523 = vmatprep.mubr.bf16.mxu0 %v282
  %524 = vmatmul.mubr.bf16.gmra.mxu0 %v281
  %v525 = vpop.f32.mrf.mxu0
  %v526 = vadd.f32 0.0, %v525
  %v527 = vpop.f32.mrf.mxu0
  %v528 = vpop.f32.mrf.mxu0
  %v529 = vadd.f32 0.0, %v528
  %v530 = vpop.f32.mrf.mxu0
  %531 = vmatprep.mubr.bf16.mxu0 %v284
  %532 = vmatmul.mubr.bf16.gmra.mxu0 %v283
  %v533 = vpop.f32.mrf.mxu0
  %v534 = vadd.f32 0.0, %v533
  %v535 = vpop.f32.mrf.mxu0
  %v536 = vpop.f32.mrf.mxu0
  %v537 = vadd.f32 0.0, %v536
  %v538 = vpop.f32.mrf.mxu0
  %539 = vmatprep.mubr.bf16.mxu0 %v286
  %540 = vmatmul.mubr.bf16.gmra.mxu0 %v285
  %v541 = vpop.f32.mrf.mxu0
  %v542 = vadd.f32 0.0, %v541
  %v543 = vpop.f32.mrf.mxu0
  %v544 = vpop.f32.mrf.mxu0
  %v545 = vadd.f32 0.0, %v544
  %v546 = vpop.f32.mrf.mxu0
  %547 = vmatprep.mubr.bf16.mxu0 %v288
  %548 = vmatmul.mubr.bf16.gmra.mxu0 %v287
  %v549 = vpop.f32.mrf.mxu0
  %v550 = vadd.f32 0.0, %v549
  %v551 = vpop.f32.mrf.mxu0
  %v552 = vpop.f32.mrf.mxu0
  %v553 = vadd.f32 0.0, %v552
  %v554 = vpop.f32.mrf.mxu0
  %555 = vmatprep.mubr.bf16.mxu0 %v290
  %556 = vmatmul.mubr.bf16.gmra.mxu0 %v289
  %v557 = vpop.f32.mrf.mxu0
  %v558 = vadd.f32 0.0, %v557
  %v559 = vpop.f32.mrf.mxu0
  %v560 = vpop.f32.mrf.mxu0
  %v561 = vadd.f32 0.0, %v560
  %v562 = vpop.f32.mrf.mxu0
  %563 = vmatprep.mubr.bf16.mxu0 %v292
  %564 = vmatmul.mubr.bf16.gmra.mxu0 %v291
  %v565 = vpop.f32.mrf.mxu0
  %v566 = vadd.f32 0.0, %v565
  %v567 = vpop.f32.mrf.mxu0
  %v568 = vpop.f32.mrf.mxu0
  %v569 = vadd.f32 0.0, %v568
  %v570 = vpop.f32.mrf.mxu0
  %571 = vmatprep.mubr.bf16.mxu0 %v294
  %572 = vmatmul.mubr.bf16.gmra.mxu0 %v293
  %v573 = vpop.f32.mrf.mxu0
  %v574 = vadd.f32 0.0, %v573
  %v575 = vpop.f32.mrf.mxu0
  %v576 = vpop.f32.mrf.mxu0
  %v577 = vadd.f32 0.0, %v576
  %v578 = vpop.f32.mrf.mxu0
  %579 = vmatprep.mubr.bf16.mxu0 %v296
  %580 = vmatmul.mubr.bf16.gmra.mxu0 %v295
  %v581 = vpop.f32.mrf.mxu0
  %v582 = vadd.f32 0.0, %v581
  %v583 = vpop.f32.mrf.mxu0
  %v584 = vpop.f32.mrf.mxu0
  %v585 = vadd.f32 0.0, %v584
  %v586 = vpop.f32.mrf.mxu0
  %587 = vmatprep.mubr.bf16.mxu0 %v298
  %588 = vmatmul.mubr.bf16.gmra.mxu0 %v297
  %v589 = vpop.f32.mrf.mxu0
  %v590 = vadd.f32 0.0, %v589
  %v591 = vpop.f32.mrf.mxu0
  %v592 = vpop.f32.mrf.mxu0
  %v593 = vadd.f32 0.0, %v592
  %v594 = vpop.f32.mrf.mxu0
  %595 = vmatprep.mubr.bf16.mxu0 %v300
  %596 = vmatmul.mubr.bf16.gmra.mxu0 %v299
  %v597 = vpop.f32.mrf.mxu0
  %v598 = vadd.f32 0.0, %v597
  %v599 = vpop.f32.mrf.mxu0
  %v600 = vpop.f32.mrf.mxu0
  %v601 = vadd.f32 0.0, %v600
  %v602 = vpop.f32.mrf.mxu0
  %603 = vmatprep.mubr.bf16.mxu0 %v302
  %604 = vmatmul.mubr.bf16.gmra.mxu0 %v301
  %v605 = vpop.f32.mrf.mxu0
  %v606 = vadd.f32 0.0, %v605
  %v607 = vpop.f32.mrf.mxu0
  %v608 = vpop.f32.mrf.mxu0
  %v609 = vadd.f32 0.0, %v608
  %v610 = vpop.f32.mrf.mxu0
  %611 = vdwg.mxu0
  %v612 = vadd.f32 %v55, %v470
  %v613 = vadd.f32 %v56, %v473
  %v614 = vadd.f32 %v57, %v478
  %v615 = vadd.f32 %v58, %v481
  %v616 = vadd.f32 %v59, %v486
  %v617 = vadd.f32 %v60, %v489
  %v618 = vadd.f32 %v61, %v494
  %v619 = vadd.f32 %v62, %v497
  %v620 = vadd.f32 %v63, %v502
  %v621 = vadd.f32 %v64, %v505
  %v622 = vadd.f32 %v65, %v510
  %v623 = vadd.f32 %v66, %v513
  %v624 = vadd.f32 %v67, %v518
  %v625 = vadd.f32 %v68, %v521
  %v626 = vadd.f32 %v69, %v526
  %v627 = vadd.f32 %v70, %v529
  %v628 = vadd.f32 %v71, %v534
  %v629 = vadd.f32 %v72, %v537
  %v630 = vadd.f32 %v73, %v542
  %v631 = vadd.f32 %v74, %v545
  %v632 = vadd.f32 %v75, %v550
  %v633 = vadd.f32 %v76, %v553
  %v634 = vadd.f32 %v77, %v558
  %v635 = vadd.f32 %v78, %v561
  %v636 = vadd.f32 %v79, %v566
  %v637 = vadd.f32 %v80, %v569
  %v638 = vadd.f32 %v81, %v574
  %v639 = vadd.f32 %v82, %v577
  %v640 = vadd.f32 %v83, %v582
  %v641 = vadd.f32 %v84, %v585
  %v642 = vadd.f32 %v85, %v590
  %v643 = vadd.f32 %v86, %v593
  %v644 = vadd.f32 %v87, %v598
  %v645 = vadd.f32 %v88, %v601
  %v646 = vadd.f32 %v89, %v606
  %v647 = vadd.f32 %v90, %v609
  %648 = vst [vmem:[#allocation2] sm:$0xff] %v612
  %649 = vst [vmem:[#allocation2 + $0x8] sm:$0xff] %v613
  %650 = vst [vmem:[#allocation2 + $0x10] sm:$0xff] %v614
  %651 = vst [vmem:[#allocation2 + $0x18] sm:$0xff] %v615
  %652 = vst [vmem:[#allocation2 + $0x20] sm:$0xff] %v616
  %653 = vst [vmem:[#allocation2 + $0x28] sm:$0xff] %v617
  %654 = vst [vmem:[#allocation2 + $0x30] sm:$0xff] %v618
  %655 = vst [vmem:[#allocation2 + $0x38] sm:$0xff] %v619
  %656 = vst [vmem:[#allocation2 + $0x40] sm:$0xff] %v620
  %657 = vst [vmem:[#allocation2 + $0x48] sm:$0xff] %v621
  %658 = vst [vmem:[#allocation2 + $0x50] sm:$0xff] %v622
  %659 = vst [vmem:[#allocation2 + $0x58] sm:$0xff] %v623
  %660 = vst [vmem:[#allocation2 + $0x60] sm:$0xff] %v624
  %661 = vst [vmem:[#allocation2 + $0x68] sm:$0xff] %v625
  %662 = vst [vmem:[#allocation2 + $0x70] sm:$0xff] %v626
  %663 = vst [vmem:[#allocation2 + $0x78] sm:$0xff] %v627
  %664 = vst [vmem:[#allocation2 + $0x80] sm:$0xff] %v628
  %665 = vst [vmem:[#allocation2 + $0x88] sm:$0xff] %v629
  %666 = vst [vmem:[#allocation2 + $0x90] sm:$0xff] %v630
  %667 = vst [vmem:[#allocation2 + $0x98] sm:$0xff] %v631
  %668 = vst [vmem:[#allocation2 + $0xa0] sm:$0xff] %v632
  %669 = vst [vmem:[#allocation2 + $0xa8] sm:$0xff] %v633
  %670 = vst [vmem:[#allocation2 + $0xb0] sm:$0xff] %v634
  %671 = vst [vmem:[#allocation2 + $0xb8] sm:$0xff] %v635
  %672 = vst [vmem:[#allocation2 + $0xc0] sm:$0xff] %v636
  %673 = vst [vmem:[#allocation2 + $0xc8] sm:$0xff] %v637
  %674 = vst [vmem:[#allocation2 + $0xd0] sm:$0xff] %v638
  %675 = vst [vmem:[#allocation2 + $0xd8] sm:$0xff] %v639
  %676 = vst [vmem:[#allocation2 + $0xe0] sm:$0xff] %v640
  %677 = vst [vmem:[#allocation2 + $0xe8] sm:$0xff] %v641
  %678 = vst [vmem:[#allocation2 + $0xf0] sm:$0xff] %v642
  %679 = vst [vmem:[#allocation2 + $0xf8] sm:$0xff] %v643
  %680 = vst [vmem:[#allocation2 + $0x100] sm:$0xff] %v644
  %681 = vst [vmem:[#allocation2 + $0x108] sm:$0xff] %v645
  %682 = vst [vmem:[#allocation2 + $0x110] sm:$0xff] %v646
  %683 = vst [vmem:[#allocation2 + $0x118] sm:$0xff] %v647
  // Predicated region
  $region18: #{cnn_dqn_forward.4} parent=0 // pred_check
    %p684 = pneg %p15
  $region19: #{cnn_dqn_forward.4} parent=0 // pred_check_branch
    %686 = sbr.rel (%p684) target = $region21
  $region20: #{cnn_dqn_forward.4} parent=0 // pred_region
    %v687 = vld [vmem:[#allocation2] sm:$0xff]
    %v688 = vld [vmem:[#allocation2 + $0x8] sm:$0xff]
    %v689 = vld [vmem:[#allocation2 + $0x10] sm:$0xff]
    %v690 = vld [vmem:[#allocation2 + $0x18] sm:$0xff]
    %v691 = vld [vmem:[#allocation2 + $0x20] sm:$0xff]
    %v692 = vld [vmem:[#allocation2 + $0x28] sm:$0xff]
    %v693 = vld [vmem:[#allocation2 + $0x30] sm:$0xff]
    %v694 = vld [vmem:[#allocation2 + $0x38] sm:$0xff]
    %v695 = vld [vmem:[#allocation2 + $0x40] sm:$0xff]
    %v696 = vld [vmem:[#allocation2 + $0x48] sm:$0xff]
    %v697 = vld [vmem:[#allocation2 + $0x50] sm:$0xff]
    %v698 = vld [vmem:[#allocation2 + $0x58] sm:$0xff]
    %v699 = vld [vmem:[#allocation2 + $0x60] sm:$0xff]
    %v700 = vld [vmem:[#allocation2 + $0x68] sm:$0xff]
    %v701 = vld [vmem:[#allocation2 + $0x70] sm:$0xff]
    %v702 = vld [vmem:[#allocation2 + $0x78] sm:$0xff]
    %v703 = vld [vmem:[#allocation2 + $0x80] sm:$0xff]
    %v704 = vld [vmem:[#allocation2 + $0x88] sm:$0xff]
    %v705 = vld [vmem:[#allocation2 + $0x90] sm:$0xff]
    %v706 = vld [vmem:[#allocation2 + $0x98] sm:$0xff]
    %v707 = vld [vmem:[#allocation2 + $0xa0] sm:$0xff]
    %v708 = vld [vmem:[#allocation2 + $0xa8] sm:$0xff]
    %v709 = vld [vmem:[#allocation2 + $0xb0] sm:$0xff]
    %v710 = vld [vmem:[#allocation2 + $0xb8] sm:$0xff]
    %v711 = vld [vmem:[#allocation2 + $0xc0] sm:$0xff]
    %v712 = vld [vmem:[#allocation2 + $0xc8] sm:$0xff]
    %v713 = vld [vmem:[#allocation2 + $0xd0] sm:$0xff]
    %v714 = vld [vmem:[#allocation2 + $0xd8] sm:$0xff]
    %v715 = vld [vmem:[#allocation2 + $0xe0] sm:$0xff]
    %v716 = vld [vmem:[#allocation2 + $0xe8] sm:$0xff]
    %v717 = vld [vmem:[#allocation2 + $0xf0] sm:$0xff]
    %v718 = vld [vmem:[#allocation2 + $0xf8] sm:$0xff]
    %v719 = vld [vmem:[#allocation2 + $0x100] sm:$0xff]
    %v720 = vld [vmem:[#allocation2 + $0x108] sm:$0xff]
    %v721 = vld [vmem:[#allocation2 + $0x110] sm:$0xff]
    %v722 = vld [vmem:[#allocation2 + $0x118] sm:$0xff]
    %v723 = vld [vmem:[%s2] sm:$0x1]
    %v725 = vlaneseq
    %v726 = vshrl.u32 %v725, 7
    %v727 = vsub.s32 0, %v726
    %v728 = vrot.slane %v723, %v727
    %v730 = vadd.f32 %v687, %v728
    %v731 = vadd.f32 %v688, %v728
    %v732 = vadd.f32 %v689, %v728
    %v733 = vadd.f32 %v690, %v728
    %v734 = vadd.f32 %v691, %v728
    %v735 = vadd.f32 %v692, %v728
    %v736 = vadd.f32 %v693, %v728
    %v737 = vadd.f32 %v694, %v728
    %v738 = vadd.f32 %v695, %v728
    %v739 = vadd.f32 %v696, %v728
    %v740 = vadd.f32 %v697, %v728
    %v741 = vadd.f32 %v698, %v728
    %v742 = vadd.f32 %v699, %v728
    %v743 = vadd.f32 %v700, %v728
    %v744 = vadd.f32 %v701, %v728
    %v745 = vadd.f32 %v702, %v728
    %v746 = vadd.f32 %v703, %v728
    %v747 = vadd.f32 %v704, %v728
    %v748 = vadd.f32 %v705, %v728
    %v749 = vadd.f32 %v706, %v728
    %v750 = vadd.f32 %v707, %v728
    %v751 = vadd.f32 %v708, %v728
    %v752 = vadd.f32 %v709, %v728
    %v753 = vadd.f32 %v710, %v728
    %v754 = vadd.f32 %v711, %v728
    %v755 = vadd.f32 %v712, %v728
    %v756 = vadd.f32 %v713, %v728
    %v757 = vadd.f32 %v714, %v728
    %v758 = vadd.f32 %v715, %v728
    %v759 = vadd.f32 %v716, %v728
    %v760 = vadd.f32 %v717, %v728
    %v761 = vadd.f32 %v718, %v728
    %v762 = vadd.f32 %v719, %v728
    %v763 = vadd.f32 %v720, %v728
    %v764 = vadd.f32 %v721, %v728
    %v765 = vadd.f32 %v722, %v728
    %v766 = vmax.f32 %v730, 0.0
    %v767 = vmax.f32 %v731, 0.0
    %v768 = vmax.f32 %v732, 0.0
    %v769 = vmax.f32 %v733, 0.0
    %v770 = vmax.f32 %v734, 0.0
    %v771 = vmax.f32 %v735, 0.0
    %v772 = vmax.f32 %v736, 0.0
    %v773 = vmax.f32 %v737, 0.0
    %v774 = vmax.f32 %v738, 0.0
    %v775 = vmax.f32 %v739, 0.0
    %v776 = vmax.f32 %v740, 0.0
    %v777 = vmax.f32 %v741, 0.0
    %v778 = vmax.f32 %v742, 0.0
    %v779 = vmax.f32 %v743, 0.0
    %v780 = vmax.f32 %v744, 0.0
    %v781 = vmax.f32 %v745, 0.0
    %v782 = vmax.f32 %v746, 0.0
    %v783 = vmax.f32 %v747, 0.0
    %v784 = vmax.f32 %v748, 0.0
    %v785 = vmax.f32 %v749, 0.0
    %v786 = vmax.f32 %v750, 0.0
    %v787 = vmax.f32 %v751, 0.0
    %v788 = vmax.f32 %v752, 0.0
    %v789 = vmax.f32 %v753, 0.0
    %v790 = vmax.f32 %v754, 0.0
    %v791 = vmax.f32 %v755, 0.0
    %v792 = vmax.f32 %v756, 0.0
    %v793 = vmax.f32 %v757, 0.0
    %v794 = vmax.f32 %v758, 0.0
    %v795 = vmax.f32 %v759, 0.0
    %v796 = vmax.f32 %v760, 0.0
    %v797 = vmax.f32 %v761, 0.0
    %v798 = vmax.f32 %v762, 0.0
    %v799 = vmax.f32 %v763, 0.0
    %v800 = vmax.f32 %v764, 0.0
    %v801 = vmax.f32 %v765, 0.0
    %v802 = vpack.c.bf16 %v767, %v766
    %v803 = vpack.c.bf16 %v769, %v768
    %v804 = vpack.c.bf16 %v771, %v770
    %v805 = vpack.c.bf16 %v773, %v772
    %v806 = vpack.c.bf16 %v775, %v774
    %v807 = vpack.c.bf16 %v777, %v776
    %v808 = vpack.c.bf16 %v779, %v778
    %v809 = vpack.c.bf16 %v781, %v780
    %v810 = vpack.c.bf16 %v783, %v782
    %v811 = vpack.c.bf16 %v785, %v784
    %v812 = vpack.c.bf16 %v787, %v786
    %v813 = vpack.c.bf16 %v789, %v788
    %v814 = vpack.c.bf16 %v791, %v790
    %v815 = vpack.c.bf16 %v793, %v792
    %v816 = vpack.c.bf16 %v795, %v794
    %v817 = vpack.c.bf16 %v797, %v796
    %v818 = vpack.c.bf16 %v799, %v798
    %v819 = vpack.c.bf16 %v801, %v800
    %v838 = vunpack.c.l.b16 %v802
    %v839 = vunpack.c.h.b16 %v802
    %v840 = vunpack.c.l.b16 %v803
    %v841 = vunpack.c.h.b16 %v803
    %v842 = vunpack.c.l.b16 %v804
    %v843 = vunpack.c.h.b16 %v804
    %v844 = vunpack.c.l.b16 %v805
    %v845 = vunpack.c.h.b16 %v805
    %v846 = vunpack.c.l.b16 %v806
    %v847 = vunpack.c.h.b16 %v806
    %v848 = vunpack.c.l.b16 %v807
    %v849 = vunpack.c.h.b16 %v807
    %v850 = vunpack.c.l.b16 %v808
    %v851 = vunpack.c.h.b16 %v808
    %v852 = vunpack.c.l.b16 %v809
    %v853 = vunpack.c.h.b16 %v809
    %v854 = vunpack.c.l.b16 %v810
    %v855 = vunpack.c.h.b16 %v810
    %v856 = vunpack.c.l.b16 %v811
    %v857 = vunpack.c.h.b16 %v811
    %v858 = vunpack.c.l.b16 %v812
    %v859 = vunpack.c.h.b16 %v812
    %v860 = vunpack.c.l.b16 %v813
    %v861 = vunpack.c.h.b16 %v813
    %v862 = vunpack.c.l.b16 %v814
    %v863 = vunpack.c.h.b16 %v814
    %v864 = vunpack.c.l.b16 %v815
    %v865 = vunpack.c.h.b16 %v815
    %v866 = vunpack.c.l.b16 %v816
    %v867 = vunpack.c.h.b16 %v816
    %v868 = vunpack.c.l.b16 %v817
    %v869 = vunpack.c.h.b16 %v817
    %v870 = vunpack.c.l.b16 %v818
    %v871 = vunpack.c.h.b16 %v818
    %v872 = vunpack.c.l.b16 %v819
    %v873 = vunpack.c.h.b16 %v819
    %v874 = vpack.c.b16 %v838, %v838
    %v875 = vpack.c.b16 %v839, %v839
    %v876 = vpack.c.b16 %v840, %v840
    %v877 = vpack.c.b16 %v841, %v841
    %v878 = vpack.c.b16 %v842, %v842
    %v879 = vpack.c.b16 %v843, %v843
    %v880 = vpack.c.b16 %v844, %v844
    %v881 = vpack.c.b16 %v845, %v845
    %v882 = vpack.c.b16 %v846, %v846
    %v883 = vpack.c.b16 %v847, %v847
    %v884 = vpack.c.b16 %v848, %v848
    %v885 = vpack.c.b16 %v849, %v849
    %v886 = vpack.c.b16 %v850, %v850
    %v887 = vpack.c.b16 %v851, %v851
    %v888 = vpack.c.b16 %v852, %v852
    %v889 = vpack.c.b16 %v853, %v853
    %v890 = vpack.c.b16 %v854, %v854
    %v891 = vpack.c.b16 %v855, %v855
    %v892 = vpack.c.b16 %v856, %v856
    %v893 = vpack.c.b16 %v857, %v857
    %v894 = vpack.c.b16 %v858, %v858
    %v895 = vpack.c.b16 %v859, %v859
    %v896 = vpack.c.b16 %v860, %v860
    %v897 = vpack.c.b16 %v861, %v861
    %v898 = vpack.c.b16 %v862, %v862
    %v899 = vpack.c.b16 %v863, %v863
    %v900 = vpack.c.b16 %v864, %v864
    %v901 = vpack.c.b16 %v865, %v865
    %v902 = vpack.c.b16 %v866, %v866
    %v903 = vpack.c.b16 %v867, %v867
    %v904 = vpack.c.b16 %v868, %v868
    %v905 = vpack.c.b16 %v869, %v869
    %v906 = vpack.c.b16 %v870, %v870
    %v907 = vpack.c.b16 %v871, %v871
    %v908 = vpack.c.b16 %v872, %v872
    %v909 = vpack.c.b16 %v873, %v873
    %946 = vst [vmem:[%s3] sm:$0xf] %v874
    %947 = vst [vmem:[%s3 + $0x4] sm:$0xf] %v875
    %948 = vst [vmem:[%s3 + $0x8] sm:$0xf] %v876
    %949 = vst [vmem:[%s3 + $0xc] sm:$0xf] %v877
    %950 = vst [vmem:[%s3 + $0x10] sm:$0xf] %v878
    %951 = vst [vmem:[%s3 + $0x14] sm:$0xf] %v879
    %952 = vst [vmem:[%s3 + $0x18] sm:$0xf] %v880
    %953 = vst [vmem:[%s3 + $0x1c] sm:$0xf] %v881
    %954 = vst [vmem:[%s3 + $0x20] sm:$0xf] %v882
    %955 = vst [vmem:[%s3 + $0x24] sm:$0xf] %v883
    %956 = vst [vmem:[%s3 + $0x28] sm:$0xf] %v884
    %957 = vst [vmem:[%s3 + $0x2c] sm:$0xf] %v885
    %958 = vst [vmem:[%s3 + $0x30] sm:$0xf] %v886
    %959 = vst [vmem:[%s3 + $0x34] sm:$0xf] %v887
    %960 = vst [vmem:[%s3 + $0x38] sm:$0xf] %v888
    %961 = vst [vmem:[%s3 + $0x3c] sm:$0xf] %v889
    %962 = vst [vmem:[%s3 + $0x40] sm:$0xf] %v890
    %963 = vst [vmem:[%s3 + $0x44] sm:$0xf] %v891
    %964 = vst [vmem:[%s3 + $0x48] sm:$0xf] %v892
    %965 = vst [vmem:[%s3 + $0x4c] sm:$0xf] %v893
    %966 = vst [vmem:[%s3 + $0x50] sm:$0xf] %v894
    %967 = vst [vmem:[%s3 + $0x54] sm:$0xf] %v895
    %968 = vst [vmem:[%s3 + $0x58] sm:$0xf] %v896
    %969 = vst [vmem:[%s3 + $0x5c] sm:$0xf] %v897
    %970 = vst [vmem:[%s3 + $0x60] sm:$0xf] %v898
    %971 = vst [vmem:[%s3 + $0x64] sm:$0xf] %v899
    %972 = vst [vmem:[%s3 + $0x68] sm:$0xf] %v900
    %973 = vst [vmem:[%s3 + $0x6c] sm:$0xf] %v901
    %974 = vst [vmem:[%s3 + $0x70] sm:$0xf] %v902
    %975 = vst [vmem:[%s3 + $0x74] sm:$0xf] %v903
    %976 = vst [vmem:[%s3 + $0x78] sm:$0xf] %v904
    %977 = vst [vmem:[%s3 + $0x7c] sm:$0xf] %v905
    %978 = vst [vmem:[%s3 + $0x80] sm:$0xf] %v906
    %979 = vst [vmem:[%s3 + $0x84] sm:$0xf] %v907
    %980 = vst [vmem:[%s3 + $0x88] sm:$0xf] %v908
    %981 = vst [vmem:[%s3 + $0x8c] sm:$0xf] %v909
  $region21: #{cnn_dqn_forward.4} parent=0 // pred_fallthru
    _
  // Predicated region
  $region22: #{cnn_dqn_forward.4} parent=0 // pred_check
    _
  $region23: #{cnn_dqn_forward.4} parent=0 // pred_check_branch
    %983 = sbr.rel (0) target = $region25
  $region24: #{cnn_dqn_forward.4} parent=0 // pred_region
    _
  $region25: #{cnn_dqn_forward.4} parent=0 // pred_fallthru
    _
  // Predicated region
  $region26: #{cnn_dqn_forward.4} parent=0 // pred_check
    _
  $region27: #{cnn_dqn_forward.4} parent=0 // pred_check_branch
    %985 = sbr.rel (0) target = $region29
  $region28: #{cnn_dqn_forward.4} parent=0 // pred_region
    _
  $region29: #{cnn_dqn_forward.4} parent=0 // pred_fallthru
    _

// kernel: cnn_dqn_forward.5
$region0: #{cnn_dqn_forward.5}
  #allocation0 [shape = 'u32[]', space=smem, size = 0x4, offset = 0x4, fixed_abs, tag = 'smem constant byte address 0x4 - core index']
  #allocation1 [shape = 'u32[144,128]{1,0:T(1,128)}', space=vmem, size = 0x12000, scoped, tag = 'internal scratch']
  #allocation2 [shape = 'f32[64,128]{1,0:T(8,128)}', space=vmem, size = 0x8000, scoped, tag = 'scratch operand']
  %s0 = inlined_call_operand.vmem [shape: bf16[64,512], index: 0, kind: input, shape index: {}]
  %s1 = inlined_call_operand.vmem [shape: bf16[512,128], index: 1, kind: input, shape index: {}]
  %s2 = inlined_call_operand.vmem [shape: f32[1,128], index: 2, kind: input, shape index: {}]
  %s3 = inlined_call_operand.vmem [shape: bf16[64,128], index: 3, kind: output, shape index: {}]
  %s4 = sld [smem:[#allocation0]]
  $region91: #{cnn_dqn_forward.5} parent=0
    _
  %s6 = ssub.s32 1, %s4
  %s7 = scalar_select 0, %s6, %s4
  $region1: #{cnn_dqn_forward.5} parent=0
    #allocation3 [shape = 'u8[65536]{0}', space=vmem, size = 0x10000, scoped, tag = 'input window, operand 0']
    loop: start=0, step=1, limit=4
    $region2: #{cnn_dqn_forward.5} parent=1 // loop_pre_header
      _
    $region3: #{cnn_dqn_forward.5} parent=1 // loop_header
      %s9 = sphi 0, %s13
      %p10 = scmp.ge.s32.totalorder %s9, 4
      %s16 = sphi 0, %s35
      %s17 = sphi 0, %s31
      %s18 = sphi 0, %s27
      %s19 = sphi 0, %s16
      %s20 = sphi 0, %s17
      %s21 = sphi 0, %s18
      %s22 = sphi 0, %s19
      %s23 = sphi 0, %s20
      %s24 = sphi 0, %s21
      %s40 = sphi 0, %s42
      %s43 = sphi 0, %s40
      %s44 = sphi 0, %s43
      %s60 = sphi 0, %s44
      %s68 = sphi 0, %s70
      %s71 = sphi 0, %s68
      %s72 = sphi 0, %s71
      %s88 = sphi 0, %s72
      %s94 = sphi 0, %s96
      %s97 = sphi 0, %s94
      %s98 = sphi 0, %s97
      %s114 = sphi 0, %s98
      %s122 = sphi 0, %s124
      %s125 = sphi 0, %s122
      %s126 = sphi 0, %s125
      %s142 = sphi 0, %s126
    $region4: #{cnn_dqn_forward.5} parent=1 // loop_header_branch
      %12 = sbr.rel (%p10) target = $region8
    $region5: #{cnn_dqn_forward.5} parent=1 // loop_body
      %s14 = ssub.s32 %s9, 1
      %s15 = ssub.s32 %s9, 2
      %s25 = sadd.s32 1, %s18
      %p26 = scmp.ge.s32.totalorder %s25, 2
      %s27 = scalar_select %p26, 0, %s25
      %s28 = sadd.s32 1, %s17
      %s29 = scalar_select %p26, %s28, %s17
      %p30 = scmp.ge.s32.totalorder %s29, 1
      %s31 = scalar_select %p30, 0, %s29
      %s32 = sadd.s32 1, %s16
      %s33 = scalar_select %p30, %s32, %s16
      %p34 = scmp.ge.s32.totalorder %s33, 1
      %s35 = scalar_select %p34, 0, %s33
      %s36 = ssub.s32 %s16, %s35
      %s37 = ssub.s32 %s18, %s27
      %s38 = sor.u32 %s36, %s37
      %p39 = scmp.eq.s32.totalorder %s38, 0
      %s41 = sadd.s32 %s40, 1
      %s42 = scalar_select %p39, %s40, %s41
      %p45 = pneg %p39
      %p46 = scmp.eq.s32.totalorder %s9, 1
      %p47 = por %p45, %p46
      %p48 = scmp.ne.s32.totalorder %s40, %s43
      %p49 = scmp.eq.s32.totalorder %s9, 0
      %p50 = por %p48, %p49
      %p51 = scmp.ne.s32.totalorder %s40, %s43
      %p52 = scmp.eq.s32.totalorder %s14, 1
      %p53 = por %p51, %p52
      %p54 = scmp.ne.s32.totalorder %s43, %s44
      %p55 = scmp.eq.s32.totalorder %s14, 0
      %p56 = por %p54, %p55
      %p57 = scmp.ne.s32.totalorder %s43, %s44
      %p58 = scmp.eq.s32.totalorder %s15, 1
      %p59 = por %p57, %p58
      %p61 = scmp.ne.s32.totalorder %s44, %s60
      %p62 = scmp.eq.s32.totalorder %s15, 0
      %p63 = por %p61, %p62
      %s64 = ssub.s32 %s18, %s27
      %s65 = ssub.s32 %s17, %s31
      %s66 = sor.u32 %s64, %s65
      %p67 = scmp.eq.s32.totalorder %s66, 0
      %s69 = sadd.s32 %s68, 1
      %s70 = scalar_select %p67, %s68, %s69
      %p73 = pneg %p67
      %p74 = scmp.eq.s32.totalorder %s9, 1
      %p75 = por %p73, %p74
      %p76 = scmp.ne.s32.totalorder %s68, %s71
      %p77 = scmp.eq.s32.totalorder %s9, 0
      %p78 = por %p76, %p77
      %p79 = scmp.ne.s32.totalorder %s68, %s71
      %p80 = scmp.eq.s32.totalorder %s14, 1
      %p81 = por %p79, %p80
      %p82 = scmp.ne.s32.totalorder %s71, %s72
      %p83 = scmp.eq.s32.totalorder %s14, 0
      %p84 = por %p82, %p83
      %p85 = scmp.ne.s32.totalorder %s71, %s72
      %p86 = scmp.eq.s32.totalorder %s15, 1
      %p87 = por %p85, %p86
      %p89 = scmp.ne.s32.totalorder %s72, %s88
      %p90 = scmp.eq.s32.totalorder %s15, 0
      %p91 = por %p89, %p90
      %s92 = ssub.s32 %s17, %s31
      %p93 = scmp.eq.s32.totalorder %s92, 0
      %s95 = sadd.s32 %s94, 1
      %s96 = scalar_select %p93, %s94, %s95
      %p99 = pneg %p93
      %p100 = scmp.eq.s32.totalorder %s9, 1
      %p101 = por %p99, %p100
      %p102 = scmp.ne.s32.totalorder %s94, %s97
      %p103 = scmp.eq.s32.totalorder %s9, 0
      %p104 = por %p102, %p103
      %p105 = scmp.ne.s32.totalorder %s94, %s97
      %p106 = scmp.eq.s32.totalorder %s14, 1
      %p107 = por %p105, %p106
      %p108 = scmp.ne.s32.totalorder %s97, %s98
      %p109 = scmp.eq.s32.totalorder %s14, 0
      %p110 = por %p108, %p109
      %p111 = scmp.ne.s32.totalorder %s97, %s98
      %p112 = scmp.eq.s32.totalorder %s15, 1
      %p113 = por %p111, %p112
      %p115 = scmp.ne.s32.totalorder %s98, %s114
      %p116 = scmp.eq.s32.totalorder %s15, 0
      %p117 = por %p115, %p116
      %s118 = ssub.s32 %s16, %s35
      %s119 = ssub.s32 %s17, %s31
      %s120 = sor.u32 %s118, %s119
      %p121 = scmp.eq.s32.totalorder %s120, 0
      %s123 = sadd.s32 %s122, 1
      %s124 = scalar_select %p121, %s122, %s123
      %p127 = pneg %p121
      %p128 = scmp.eq.s32.totalorder %s9, 1
      %p129 = por %p127, %p128
      %p130 = scmp.ne.s32.totalorder %s122, %s125
      %p131 = scmp.eq.s32.totalorder %s9, 0
      %p132 = por %p130, %p131
      %p133 = scmp.ne.s32.totalorder %s122, %s125
      %p134 = scmp.eq.s32.totalorder %s14, 1
      %p135 = por %p133, %p134
      %p136 = scmp.ne.s32.totalorder %s125, %s126
      %p137 = scmp.eq.s32.totalorder %s14, 0
      %p138 = por %p136, %p137
      %p139 = scmp.ne.s32.totalorder %s125, %s126
      %p140 = scmp.eq.s32.totalorder %s15, 1
      %p141 = por %p139, %p140
      %p143 = scmp.ne.s32.totalorder %s126, %s142
      %p144 = scmp.eq.s32.totalorder %s15, 0
      %p145 = por %p143, %p144
      %p146 = scmp.le.s32.totalorder 1, %s9
      %p147 = scmp.lt.s32.totalorder %s9, 3
      %p148 = pnand %p146, %p147
      %p149 = pneg %p148
      // Predicated region
      $region9: #{cnn_dqn_forward.5} parent=5 // pred_check
        _
      $region10: #{cnn_dqn_forward.5} parent=5 // pred_check_branch
        %151 = sbr.rel (%p148) target = $region12
      $region11: #{cnn_dqn_forward.5} parent=5 // pred_region
        %s152 = ssub.s32 %s9, 1
        // Predicated region
        $region13: #{cnn_dqn_forward.5} parent=11 // pred_check
          %p153 = pneg %p110
        $region14: #{cnn_dqn_forward.5} parent=11 // pred_check_branch
          %155 = sbr.rel (%p153) target = $region16
        $region15: #{cnn_dqn_forward.5} parent=11 // pred_region
          %p156 = scmp.lt.s32.totalorder %s20, 0
          %s157 = scalar_select %p156, %s20, 0
          %s158 = scalar_lea.vmem %s2, %s157
        $region16: #{cnn_dqn_forward.5} parent=11 // pred_fallthru
          _
      $region12: #{cnn_dqn_forward.5} parent=5 // pred_fallthru
        _
      %p159 = scmp.lt.s32.totalorder %s9, 2
      // Predicated region
      $region17: #{cnn_dqn_forward.5} parent=5 // pred_check
        %p160 = pneg %p159
      $region18: #{cnn_dqn_forward.5} parent=5 // pred_check_branch
        %162 = sbr.rel (%p160) target = $region20
      $region19: #{cnn_dqn_forward.5} parent=5 // pred_region
        // Predicated region
        $region21: #{cnn_dqn_forward.5} parent=19 // pred_check
          %p163 = pneg %p50
        $region22: #{cnn_dqn_forward.5} parent=19 // pred_check_branch
          %165 = sbr.rel (%p163) target = $region24
        $region23: #{cnn_dqn_forward.5} parent=19 // pred_region
          %s166 = sand.u32 %s40, 1
          %s167 = sand.u32 %s40, 1
          %s168 = smul.addr %s167, 64
          %s169 = scalar_lea.vmem [#allocation3], %s168
          %s170 = smul.u32 8, %s16
          %s171 = smul.u32 2, %s18
          %s172 = smul.addr %s170, 4
          %s173 = sadd.s32 %s171, %s172
          %s174 = smul.addr %s173, 4
          %s175 = scalar_lea.vmem %s0, %s174
          // Predicated region
          $region25: #{cnn_dqn_forward.5} parent=23 // pred_check
            _
          $region26: #{cnn_dqn_forward.5} parent=23 // pred_check_branch
            %177 = sbr.rel (0) target = $region28
          $region27: #{cnn_dqn_forward.5} parent=23 // pred_region
            // Predicated region
            $region29: #{cnn_dqn_forward.5} parent=27 // pred_check
              _
            $region30: #{cnn_dqn_forward.5} parent=27 // pred_check_branch
              %179 = sbr.rel (0) target = $region32
            $region31: #{cnn_dqn_forward.5} parent=27 // pred_region
              // Predicated region
              $region44: #{cnn_dqn_forward.5} parent=31 // pred_check
                _
              $region45: #{cnn_dqn_forward.5} parent=31 // pred_check_branch
                %209 = sbr.rel (0) target = $region47
              $region46: #{cnn_dqn_forward.5} parent=31 // pred_region
                loop: start=0, step=1, limit=1
                $region48: #{cnn_dqn_forward.5} parent=46 // loop_pre_header
                  _
                $region49: #{cnn_dqn_forward.5} parent=46 // loop_header
                  %s211 = sphi 0, %s215
                  %p212 = scmp.ge.s32.totalorder %s211, 1
                  %s216 = sphi %s175, %s175
                  %s217 = sphi %s169, %s169
                $region50: #{cnn_dqn_forward.5} parent=46 // loop_header_branch
                  %214 = sbr.rel (%p212) target = $region54
                $region51: #{cnn_dqn_forward.5} parent=46 // loop_body
                  %v218 = vld [vmem:[%s216] sm:$0xff]
                  %219 = vst [vmem:[%s217] sm:$0xff] %v218
                  %v220 = vld [vmem:[%s216 + $0x10] sm:$0xff]
                  %221 = vst [vmem:[%s217 + $0x8] sm:$0xff] %v220
                  %v222 = vld [vmem:[%s216 + $0x20] sm:$0xff]
                  %223 = vst [vmem:[%s217 + $0x10] sm:$0xff] %v222
                  %v224 = vld [vmem:[%s216 + $0x30] sm:$0xff]
                  %225 = vst [vmem:[%s217 + $0x18] sm:$0xff] %v224
                  %v226 = vld [vmem:[%s216 + $0x40] sm:$0xff]
                  %227 = vst [vmem:[%s217 + $0x20] sm:$0xff] %v226
                  %v228 = vld [vmem:[%s216 + $0x50] sm:$0xff]
                  %229 = vst [vmem:[%s217 + $0x28] sm:$0xff] %v228
                  %v230 = vld [vmem:[%s216 + $0x60] sm:$0xff]
                  %231 = vst [vmem:[%s217 + $0x30] sm:$0xff] %v230
                  %v232 = vld [vmem:[%s216 + $0x70] sm:$0xff]
                  %233 = vst [vmem:[%s217 + $0x38] sm:$0xff] %v232
                $region52: #{cnn_dqn_forward.5} parent=46 // loop_footer
                  %s215 = sadd.s32 1, %s211
                $region53: #{cnn_dqn_forward.5} parent=46 // loop_footer_branch
                  %210 = sbr.rel target = $region49
                $region54: #{cnn_dqn_forward.5} parent=46 // loop_exit
                  _
              $region47: #{cnn_dqn_forward.5} parent=31 // pred_fallthru
                _
              // Predicated region
              $region55: #{cnn_dqn_forward.5} parent=31 // pred_check
                _
              $region56: #{cnn_dqn_forward.5} parent=31 // pred_check_branch
                %235 = sbr.rel target = $region58
              $region57: #{cnn_dqn_forward.5} parent=31 // pred_region
                _
              $region58: #{cnn_dqn_forward.5} parent=31 // pred_fallthru
                _
            $region32: #{cnn_dqn_forward.5} parent=27 // pred_fallthru
              _
            // Predicated region
            $region33: #{cnn_dqn_forward.5} parent=27 // pred_check
              _
            $region34: #{cnn_dqn_forward.5} parent=27 // pred_check_branch
              %181 = sbr.rel target = $region36
            $region35: #{cnn_dqn_forward.5} parent=27 // pred_region
              %s183 = ssub.s32 256, 1
              loop: start=0, step=1, limit=1
              $region37: #{cnn_dqn_forward.5} parent=35 // loop_pre_header
                _
              $region38: #{cnn_dqn_forward.5} parent=35 // loop_header
                %s185 = sphi 0, %s189
                %p186 = scmp.ge.s32.totalorder %s185, 1
                %s190 = sphi %s175, %s175
                %s191 = sphi %s169, %s169
              $region39: #{cnn_dqn_forward.5} parent=35 // loop_header_branch
                %188 = sbr.rel (%p186) target = $region43
              $region40: #{cnn_dqn_forward.5} parent=35 // loop_body
                %v192 = vld [vmem:[%s190] sm:%s183]
                %193 = vst [vmem:[%s191] sm:%s183] %v192
                %v194 = vld [vmem:[%s190 + $0x10] sm:%s183]
                %195 = vst [vmem:[%s191 + $0x8] sm:%s183] %v194
                %v196 = vld [vmem:[%s190 + $0x20] sm:%s183]
                %197 = vst [vmem:[%s191 + $0x10] sm:%s183] %v196
                %v198 = vld [vmem:[%s190 + $0x30] sm:%s183]
                %199 = vst [vmem:[%s191 + $0x18] sm:%s183] %v198
                %v200 = vld [vmem:[%s190 + $0x40] sm:%s183]
                %201 = vst [vmem:[%s191 + $0x20] sm:%s183] %v200
                %v202 = vld [vmem:[%s190 + $0x50] sm:%s183]
                %203 = vst [vmem:[%s191 + $0x28] sm:%s183] %v202
                %v204 = vld [vmem:[%s190 + $0x60] sm:%s183]
                %205 = vst [vmem:[%s191 + $0x30] sm:%s183] %v204
                %v206 = vld [vmem:[%s190 + $0x70] sm:%s183]
                %207 = vst [vmem:[%s191 + $0x38] sm:%s183] %v206
              $region41: #{cnn_dqn_forward.5} parent=35 // loop_footer
                %s189 = sadd.s32 1, %s185
              $region42: #{cnn_dqn_forward.5} parent=35 // loop_footer_branch
                %184 = sbr.rel target = $region38
              $region43: #{cnn_dqn_forward.5} parent=35 // loop_exit
                _
            $region36: #{cnn_dqn_forward.5} parent=27 // pred_fallthru
              _
          $region28: #{cnn_dqn_forward.5} parent=23 // pred_fallthru
            _
          %236 = vnop
        $region24: #{cnn_dqn_forward.5} parent=19 // pred_fallthru
          _
        // Predicated region
        $region59: #{cnn_dqn_forward.5} parent=19 // pred_check
          %p237 = pneg %p78
        $region60: #{cnn_dqn_forward.5} parent=19 // pred_check_branch
          %239 = sbr.rel (%p237) target = $region62
        $region61: #{cnn_dqn_forward.5} parent=19 // pred_region
          %s240 = smul.u32 32, %s18
          %p241 = scmp.lt.s32.totalorder %s240, 63
          %s242 = scalar_select %p241, %s240, 63
          %p243 = scmp.lt.s32.totalorder %s17, 0
          %s244 = scalar_select %p243, %s17, 0
          %s245 = sadd.s32 %s244, %s242
          %s246 = smul.addr %s245, 4
          %s247 = scalar_lea.vmem %s1, %s246
          %s248 = smul.u32 32, %s18
        $region62: #{cnn_dqn_forward.5} parent=19 // pred_fallthru
          _
      $region20: #{cnn_dqn_forward.5} parent=5 // pred_fallthru
        _
      %p249 = scmp.le.s32.totalorder 1, %s9
      %p250 = scmp.lt.s32.totalorder %s9, 3
      %p251 = pnand %p249, %p250
      %p252 = pneg %p251
      // Predicated region
      $region63: #{cnn_dqn_forward.5} parent=5 // pred_check
        _
      $region64: #{cnn_dqn_forward.5} parent=5 // pred_check_branch
        %254 = sbr.rel (%p251) target = $region66
      $region65: #{cnn_dqn_forward.5} parent=5 // pred_region
        %s255 = ssub.s32 %s9, 1
        %s256 = sand.u32 %s43, 1
        %s257 = sand.u32 %s43, 1
        %s258 = smul.addr %s257, 64
        %s259 = scalar_lea.vmem [#allocation3], %s258
        // Predicated region
        $region67: #{cnn_dqn_forward.5} parent=65 // pred_check
          %p260 = pneg %p56
        $region68: #{cnn_dqn_forward.5} parent=65 // pred_check_branch
          %262 = sbr.rel (%p260) target = $region70
        $region69: #{cnn_dqn_forward.5} parent=65 // pred_region
          _
        $region70: #{cnn_dqn_forward.5} parent=65 // pred_fallthru
          _
        %s263 = sand.u32 %s43, 1
        %s264 = sand.u32 %s43, 1
        %s265 = smul.addr %s264, 64
        %s266 = scalar_lea.vmem [#allocation3], %s265
        %p267 = pneg %p56
        %p268 = pneg %p53
        %s269 = smul.u32 32, %s21
        %p270 = scmp.lt.s32.totalorder %s269, 63
        %s271 = scalar_select %p270, %s269, 63
        %p272 = scmp.lt.s32.totalorder %s20, 0
        %s273 = scalar_select %p272, %s20, 0
        %s274 = sadd.s32 %s273, %s271
        %s275 = smul.addr %s274, 4
        %s276 = scalar_lea.vmem %s1, %s275
        %p277 = pneg %p84
        %p278 = pneg %p81
        %p279 = scmp.lt.s32.totalorder %s20, 0
        %s280 = scalar_select %p279, %s20, 0
        %s281 = scalar_lea.vmem %s2, %s280
        %p282 = pneg %p110
        %p283 = pneg %p107
        %p284 = pneg %p138
        %p285 = pneg %p135
        %s286 = smul.u32 8, %s19
        %p287 = scmp.lt.s32.totalorder %s286, 7
        %s288 = scalar_select %p287, %s286, 7
        %p289 = scmp.lt.s32.totalorder %s20, 0
        %s290 = scalar_select %p289, %s20, 0
        %s291 = sadd.s32 %s290, %s288
        %s292 = smul.addr %s291, 4
        %s293 = scalar_lea.vmem %s3, %s292
        %s294 = smul.u32 8, %s19
        %s295 = smul.u32 2, %s21
        %s296 = smul.u32 32, %s21
        %p297 = scmp.lt.s32.totalorder %s296, 63
        %s298 = scalar_select %p297, %s296, 63
        %p299 = scmp.lt.s32.totalorder %s20, 0
        %s300 = scalar_select %p299, %s20, 0
        %s301 = sadd.s32 %s300, %s298
        %s302 = smul.addr %s301, 4
        %s303 = scalar_lea.vmem %s1, %s302
        %s304 = smul.u32 32, %s21
        %p305 = scmp.lt.s32.totalorder %s20, 0
        %s306 = scalar_select %p305, %s20, 0
        %s307 = scalar_lea.vmem %s2, %s306
        %s308 = smul.u32 8, %s19
        %p309 = scmp.lt.s32.totalorder %s308, 7
        %s310 = scalar_select %p309, %s308, 7
        %p311 = scmp.lt.s32.totalorder %s20, 0
        %s312 = scalar_select %p311, %s20, 0
        %s313 = sadd.s32 %s312, %s310
        %s314 = smul.addr %s313, 4
        %s315 = scalar_lea.vmem %s3, %s314
        %s316 = smul.u32 8, %s19
        %p318 = scmp.eq.s32.totalorder %s21, 0
        // Predicated region
        $region71: #{cnn_dqn_forward.5} parent=65 // pred_check
          %p319 = pneg %p318
        $region72: #{cnn_dqn_forward.5} parent=65 // pred_check_branch
          %321 = sbr.rel (%p319) target = $region74
        $region73: #{cnn_dqn_forward.5} parent=65 // pred_region
          %322 = vst [vmem:[#allocation2] sm:$0xff] 0.0
          %323 = vst [vmem:[#allocation2 + $0x8] sm:$0xff] 0.0
          %324 = vst [vmem:[#allocation2 + $0x10] sm:$0xff] 0.0
          %325 = vst [vmem:[#allocation2 + $0x18] sm:$0xff] 0.0
          %326 = vst [vmem:[#allocation2 + $0x20] sm:$0xff] 0.0
          %327 = vst [vmem:[#allocation2 + $0x28] sm:$0xff] 0.0
          %328 = vst [vmem:[#allocation2 + $0x30] sm:$0xff] 0.0
          %329 = vst [vmem:[#allocation2 + $0x38] sm:$0xff] 0.0
        $region74: #{cnn_dqn_forward.5} parent=65 // pred_fallthru
          _
        %v330 = vld [vmem:[#allocation2] sm:$0xff]
        %v331 = vld [vmem:[#allocation2 + $0x8] sm:$0xff]
        %v332 = vld [vmem:[#allocation2 + $0x10] sm:$0xff]
        %v333 = vld [vmem:[#allocation2 + $0x18] sm:$0xff]
        %v334 = vld [vmem:[#allocation2 + $0x20] sm:$0xff]
        %v335 = vld [vmem:[#allocation2 + $0x28] sm:$0xff]
        %v336 = vld [vmem:[#allocation2 + $0x30] sm:$0xff]
        %v337 = vld [vmem:[#allocation2 + $0x38] sm:$0xff]
        %v338 = vld [vmem:[%s259] sm:$0xff]
        %v339 = vld [vmem:[%s259 + $0x8] sm:$0xff]
        %v340 = vld [vmem:[%s259 + $0x10] sm:$0xff]
        %v341 = vld [vmem:[%s259 + $0x18] sm:$0xff]
        %v342 = vld [vmem:[%s259 + $0x20] sm:$0xff]
        %v343 = vld [vmem:[%s259 + $0x28] sm:$0xff]
        %v344 = vld [vmem:[%s259 + $0x30] sm:$0xff]
        %v345 = vld [vmem:[%s259 + $0x38] sm:$0xff]
        %v346 = vld [vmem:[%s303] sm:$0xf]
        %v347 = vld [vmem:[%s303 + $0x4] sm:$0xf]
        %v348 = vld [vmem:[%s303 + $0x8] sm:$0xf]
        %v349 = vld [vmem:[%s303 + $0xc] sm:$0xf]
        %v350 = vld [vmem:[%s303 + $0x10] sm:$0xf]
        %v351 = vld [vmem:[%s303 + $0x14] sm:$0xf]
        %v352 = vld [vmem:[%s303 + $0x18] sm:$0xf]
        %v353 = vld [vmem:[%s303 + $0x1c] sm:$0xf]
        %v354 = vld [vmem:[%s303 + $0x20] sm:$0xf]
        %v355 = vld [vmem:[%s303 + $0x24] sm:$0xf]
        %v356 = vld [vmem:[%s303 + $0x28] sm:$0xf]
        %v357 = vld [vmem:[%s303 + $0x2c] sm:$0xf]
        %v358 = vld [vmem:[%s303 + $0x30] sm:$0xf]
        %v359 = vld [vmem:[%s303 + $0x34] sm:$0xf]
        %v360 = vld [vmem:[%s303 + $0x38] sm:$0xf]
        %v361 = vld [vmem:[%s303 + $0x3c] sm:$0xf]
        %v362 = vld [vmem:[%s303 + $0x40] sm:$0xf]
        %v363 = vld [vmem:[%s303 + $0x44] sm:$0xf]
        %v364 = vld [vmem:[%s303 + $0x48] sm:$0xf]
        %v365 = vld [vmem:[%s303 + $0x4c] sm:$0xf]
        %v366 = vld [vmem:[%s303 + $0x50] sm:$0xf]
        %v367 = vld [vmem:[%s303 + $0x54] sm:$0xf]
        %v368 = vld [vmem:[%s303 + $0x58] sm:$0xf]
        %v369 = vld [vmem:[%s303 + $0x5c] sm:$0xf]
        %v370 = vld [vmem:[%s303 + $0x60] sm:$0xf]
        %v371 = vld [vmem:[%s303 + $0x64] sm:$0xf]
        %v372 = vld [vmem:[%s303 + $0x68] sm:$0xf]
        %v373 = vld [vmem:[%s303 + $0x6c] sm:$0xf]
        %v374 = vld [vmem:[%s303 + $0x70] sm:$0xf]
        %v375 = vld [vmem:[%s303 + $0x74] sm:$0xf]
        %v376 = vld [vmem:[%s303 + $0x78] sm:$0xf]
        %v377 = vld [vmem:[%s303 + $0x7c] sm:$0xf]
        %v386 = vunpack.c.l.b16 %v338
        %v387 = vunpack.c.h.b16 %v338
        %v388 = vunpack.c.l.b16 %v339
        %v389 = vunpack.c.h.b16 %v339
        %v390 = vunpack.c.l.b16 %v340
        %v391 = vunpack.c.h.b16 %v340
        %v392 = vunpack.c.l.b16 %v341
        %v393 = vunpack.c.h.b16 %v341
        %v394 = vunpack.c.l.b16 %v342
        %v395 = vunpack.c.h.b16 %v342
        %v396 = vunpack.c.l.b16 %v343
        %v397 = vunpack.c.h.b16 %v343
        %v398 = vunpack.c.l.b16 %v344
        %v399 = vunpack.c.h.b16 %v344
        %v400 = vunpack.c.l.b16 %v345
        %v401 = vunpack.c.h.b16 %v345
        %v402 = vpack.c.b16 %v388, %v386
        %v403 = vpack.c.b16 %v389, %v387
        %v404 = vpack.c.b16 %v392, %v390
        %v405 = vpack.c.b16 %v393, %v391
        %v406 = vpack.c.b16 %v396, %v394
        %v407 = vpack.c.b16 %v397, %v395
        %v408 = vpack.c.b16 %v400, %v398
        %v409 = vpack.c.b16 %v401, %v399
        %v450 = vunpack.c.l.b16 %v346
        %v451 = vunpack.c.l.b16 %v347
        %v452 = vunpack.c.l.b16 %v348
        %v453 = vunpack.c.l.b16 %v349
        %v454 = vunpack.c.l.b16 %v350
        %v455 = vunpack.c.l.b16 %v351
        %v456 = vunpack.c.l.b16 %v352
        %v457 = vunpack.c.l.b16 %v353
        %v458 = vunpack.c.l.b16 %v354
        %v459 = vunpack.c.l.b16 %v355
        %v460 = vunpack.c.l.b16 %v356
        %v461 = vunpack.c.l.b16 %v357
        %v462 = vunpack.c.l.b16 %v358
        %v463 = vunpack.c.l.b16 %v359
        %v464 = vunpack.c.l.b16 %v360
        %v465 = vunpack.c.l.b16 %v361
        %v466 = vunpack.c.l.b16 %v362
        %v467 = vunpack.c.l.b16 %v363
        %v468 = vunpack.c.l.b16 %v364
        %v469 = vunpack.c.l.b16 %v365
        %v470 = vunpack.c.l.b16 %v366
        %v471 = vunpack.c.l.b16 %v367
        %v472 = vunpack.c.l.b16 %v368
        %v473 = vunpack.c.l.b16 %v369
        %v474 = vunpack.c.l.b16 %v370
        %v475 = vunpack.c.l.b16 %v371
        %v476 = vunpack.c.l.b16 %v372
        %v477 = vunpack.c.l.b16 %v373
        %v478 = vunpack.c.l.b16 %v374
        %v479 = vunpack.c.l.b16 %v375
        %v480 = vunpack.c.l.b16 %v376
        %v481 = vunpack.c.l.b16 %v377
        %v482 = vpack.c.b16 %v451, %v450
        %v483 = vpack.c.b16 %v453, %v452
        %v484 = vpack.c.b16 %v455, %v454
        %v485 = vpack.c.b16 %v457, %v456
        %v486 = vpack.c.b16 %v459, %v458
        %v487 = vpack.c.b16 %v461, %v460
        %v488 = vpack.c.b16 %v463, %v462
        %v489 = vpack.c.b16 %v465, %v464
        %v490 = vpack.c.b16 %v467, %v466
        %v491 = vpack.c.b16 %v469, %v468
        %v492 = vpack.c.b16 %v471, %v470
        %v493 = vpack.c.b16 %v473, %v472
        %v494 = vpack.c.b16 %v475, %v474
        %v495 = vpack.c.b16 %v477, %v476
        %v496 = vpack.c.b16 %v479, %v478
        %v497 = vpack.c.b16 %v481, %v480
        %514 = vmatprep.subr.bf16.mxu0 0
        %515 = vmatpush1.bf16.msra.mxu0 %v489
        %516 = vmatprep.subr.bf16.mxu0 0
        %517 = vmatpush1.bf16.msra.mxu0 %v488
        %518 = vmatprep.subr.bf16.mxu0 0
        %519 = vmatpush1.bf16.msra.mxu0 %v487
        %520 = vmatprep.subr.bf16.mxu0 0
        %521 = vmatpush1.bf16.msra.mxu0 %v486
        %522 = vmatprep.subr.bf16.mxu0 0
        %523 = vmatpush1.bf16.msra.mxu0 %v485
        %524 = vmatprep.subr.bf16.mxu0 0
        %525 = vmatpush1.bf16.msra.mxu0 %v484
        %526 = vmatprep.subr.bf16.mxu0 0
        %527 = vmatpush1.bf16.msra.mxu0 %v483
        %528 = vmatprep.subr.bf16.mxu0 0
        %529 = vmatpush1.bf16.msra.mxu0 %v482
        %530 = vmatprep.subr.bf16.mxu0 0
        %531 = vmatpush2.bf16.msra.mxu0 %v497
        %532 = vmatprep.subr.bf16.mxu0 0
        %533 = vmatpush2.bf16.msra.mxu0 %v496
        %534 = vmatprep.subr.bf16.mxu0 0
        %535 = vmatpush2.bf16.msra.mxu0 %v495
        %536 = vmatprep.subr.bf16.mxu0 0
        %537 = vmatpush2.bf16.msra.mxu0 %v494
        %538 = vmatprep.subr.bf16.mxu0 0
        %539 = vmatpush2.bf16.msra.mxu0 %v493
        %540 = vmatprep.subr.bf16.mxu0 0
        %541 = vmatpush2.bf16.msra.mxu0 %v492
        %542 = vmatprep.subr.bf16.mxu0 0
        %543 = vmatpush2.bf16.msra.mxu0 %v491
        %544 = vmatprep.subr.bf16.mxu0 0
        %545 = vmatpush2.bf16.msra.mxu0 %v490
        %546 = vmatprep.mubr.bf16.mxu0 %v403
        %547 = vmatmul.mubr.bf16.gmra.mxu0 %v402
        %v548 = vpop.f32.mrf.mxu0
        %v549 = vadd.f32 0.0, %v548
        %v550 = vpop.f32.mrf.mxu0
        %v551 = vpop.f32.mrf.mxu0
        %v552 = vadd.f32 0.0, %v551
        %v553 = vpop.f32.mrf.mxu0
        %554 = vmatprep.mubr.bf16.mxu0 %v405
        %555 = vmatmul.mubr.bf16.gmra.mxu0 %v404
        %v556 = vpop.f32.mrf.mxu0
        %v557 = vadd.f32 0.0, %v556
        %v558 = vpop.f32.mrf.mxu0
        %v559 = vpop.f32.mrf.mxu0
        %v560 = vadd.f32 0.0, %v559
        %v561 = vpop.f32.mrf.mxu0
        %562 = vmatprep.mubr.bf16.mxu0 %v407
        %563 = vmatmul.mubr.bf16.gmra.mxu0 %v406
        %v564 = vpop.f32.mrf.mxu0
        %v565 = vadd.f32 0.0, %v564
        %v566 = vpop.f32.mrf.mxu0
        %v567 = vpop.f32.mrf.mxu0
        %v568 = vadd.f32 0.0, %v567
        %v569 = vpop.f32.mrf.mxu0
        %570 = vmatprep.mubr.bf16.mxu0 %v409
        %571 = vmatmul.mubr.bf16.gmra.mxu0 %v408
        %v572 = vpop.f32.mrf.mxu0
        %v573 = vadd.f32 0.0, %v572
        %v574 = vpop.f32.mrf.mxu0
        %v575 = vpop.f32.mrf.mxu0
        %v576 = vadd.f32 0.0, %v575
        %v577 = vpop.f32.mrf.mxu0
        %578 = vdwg.mxu0
        %v579 = vadd.f32 %v330, %v549
        %v580 = vadd.f32 %v331, %v552
        %v581 = vadd.f32 %v332, %v557
        %v582 = vadd.f32 %v333, %v560
        %v583 = vadd.f32 %v334, %v565
        %v584 = vadd.f32 %v335, %v568
        %v585 = vadd.f32 %v336, %v573
        %v586 = vadd.f32 %v337, %v576
        %587 = vst [vmem:[#allocation2] sm:$0xff] %v579
        %588 = vst [vmem:[#allocation2 + $0x8] sm:$0xff] %v580
        %589 = vst [vmem:[#allocation2 + $0x10] sm:$0xff] %v581
        %590 = vst [vmem:[#allocation2 + $0x18] sm:$0xff] %v582
        %591 = vst [vmem:[#allocation2 + $0x20] sm:$0xff] %v583
        %592 = vst [vmem:[#allocation2 + $0x28] sm:$0xff] %v584
        %593 = vst [vmem:[#allocation2 + $0x30] sm:$0xff] %v585
        %594 = vst [vmem:[#allocation2 + $0x38] sm:$0xff] %v586
        %p595 = scmp.eq.s32.totalorder %s21, 1
        // Predicated region
        $region75: #{cnn_dqn_forward.5} parent=65 // pred_check
          %p596 = pneg %p595
        $region76: #{cnn_dqn_forward.5} parent=65 // pred_check_branch
          %598 = sbr.rel (%p596) target = $region78
        $region77: #{cnn_dqn_forward.5} parent=65 // pred_region
          %v599 = vld [vmem:[#allocation2] sm:$0xff]
          %v600 = vld [vmem:[#allocation2 + $0x8] sm:$0xff]
          %v601 = vld [vmem:[#allocation2 + $0x10] sm:$0xff]
          %v602 = vld [vmem:[#allocation2 + $0x18] sm:$0xff]
          %v603 = vld [vmem:[#allocation2 + $0x20] sm:$0xff]
          %v604 = vld [vmem:[#allocation2 + $0x28] sm:$0xff]
          %v605 = vld [vmem:[#allocation2 + $0x30] sm:$0xff]
          %v606 = vld [vmem:[#allocation2 + $0x38] sm:$0xff]
          %v607 = vld [vmem:[%s307] sm:$0x1]
          %v609 = vlaneseq
          %v610 = vshrl.u32 %v609, 7
          %v611 = vsub.s32 0, %v610
          %v612 = vrot.slane %v607, %v611
          %v614 = vadd.f32 %v599, %v612
          %v615 = vadd.f32 %v600, %v612
          %v616 = vadd.f32 %v601, %v612
          %v617 = vadd.f32 %v602, %v612
          %v618 = vadd.f32 %v603, %v612
          %v619 = vadd.f32 %v604, %v612
          %v620 = vadd.f32 %v605, %v612
          %v621 = vadd.f32 %v606, %v612
          %v622 = vmax.f32 %v614, 0.0
          %v623 = vmax.f32 %v615, 0.0
          %v624 = vmax.f32 %v616, 0.0
          %v625 = vmax.f32 %v617, 0.0
          %v626 = vmax.f32 %v618, 0.0
          %v627 = vmax.f32 %v619, 0.0
          %v628 = vmax.f32 %v620, 0.0
          %v629 = vmax.f32 %v621, 0.0
          %v630 = vpack.c.bf16 %v623, %v622
          %v631 = vpack.c.bf16 %v625, %v624
          %v632 = vpack.c.bf16 %v627, %v626
          %v633 = vpack.c.bf16 %v629, %v628
          %v638 = vunpack.c.l.b16 %v630
          %v639 = vunpack.c.h.b16 %v630
          %v640 = vunpack.c.l.b16 %v631
          %v641 = vunpack.c.h.b16 %v631
          %v642 = vunpack.c.l.b16 %v632
          %v643 = vunpack.c.h.b16 %v632
          %v644 = vunpack.c.l.b16 %v633
          %v645 = vunpack.c.h.b16 %v633
          %v646 = vpack.c.b16 %v638, %v638
          %v647 = vpack.c.b16 %v639, %v639
          %v648 = vpack.c.b16 %v640, %v640
          %v649 = vpack.c.b16 %v641, %v641
          %v650 = vpack.c.b16 %v642, %v642
          %v651 = vpack.c.b16 %v643, %v643
          %v652 = vpack.c.b16 %v644, %v644
          %v653 = vpack.c.b16 %v645, %v645
          %662 = vst [vmem:[%s315] sm:$0xf] %v646
          %663 = vst [vmem:[%s315 + $0x4] sm:$0xf] %v647
          %664 = vst [vmem:[%s315 + $0x8] sm:$0xf] %v648
          %665 = vst [vmem:[%s315 + $0xc] sm:$0xf] %v649
          %666 = vst [vmem:[%s315 + $0x10] sm:$0xf] %v650
          %667 = vst [vmem:[%s315 + $0x14] sm:$0xf] %v651
          %668 = vst [vmem:[%s315 + $0x18] sm:$0xf] %v652
          %669 = vst [vmem:[%s315 + $0x1c] sm:$0xf] %v653
        $region78: #{cnn_dqn_forward.5} parent=65 // pred_fallthru
          _
        %s670 = smul.u32 8, %s19
        %p671 = scmp.lt.s32.totalorder %s670, 7
        %s672 = scalar_select %p671, %s670, 7
        %p673 = scmp.lt.s32.totalorder %s20, 0
        %s674 = scalar_select %p673, %s20, 0
        %s675 = sadd.s32 %s674, %s672
        %s676 = smul.addr %s675, 4
        %s677 = scalar_lea.vmem %s3, %s676
        // Predicated region
        $region79: #{cnn_dqn_forward.5} parent=65 // pred_check
          %p678 = pneg %p135
        $region80: #{cnn_dqn_forward.5} parent=65 // pred_check_branch
          %680 = sbr.rel (%p678) target = $region82
        $region81: #{cnn_dqn_forward.5} parent=65 // pred_region
          %s681 = smul.u32 8, %s19
        $region82: #{cnn_dqn_forward.5} parent=65 // pred_fallthru
          _
        // Predicated region
        $region83: #{cnn_dqn_forward.5} parent=65 // pred_check
          %p682 = pneg %p135
        $region84: #{cnn_dqn_forward.5} parent=65 // pred_check_branch
          %684 = sbr.rel (%p682) target = $region86
        $region85: #{cnn_dqn_forward.5} parent=65 // pred_region
          %s685 = smul.u32 8, %s19
          %p686 = scmp.lt.s32.totalorder %s685, 7
          %s687 = scalar_select %p686, %s685, 7
          %p688 = scmp.lt.s32.totalorder %s20, 0
          %s689 = scalar_select %p688, %s20, 0
          %s690 = sadd.s32 %s689, %s687
          %s691 = smul.addr %s690, 4
          %s692 = scalar_lea.vmem %s3, %s691
        $region86: #{cnn_dqn_forward.5} parent=65 // pred_fallthru
          _
      $region66: #{cnn_dqn_forward.5} parent=5 // pred_fallthru
        _
      %p693 = scmp.le.s32.totalorder 2, %s9
      // Predicated region
      $region87: #{cnn_dqn_forward.5} parent=5 // pred_check
        %p694 = pneg %p693
      $region88: #{cnn_dqn_forward.5} parent=5 // pred_check_branch
        %696 = sbr.rel (%p694) target = $region90
      $region89: #{cnn_dqn_forward.5} parent=5 // pred_region
        %s697 = ssub.s32 %s9, 2
      $region90: #{cnn_dqn_forward.5} parent=5 // pred_fallthru
        _
    $region6: #{cnn_dqn_forward.5} parent=1 // loop_footer
      %s13 = sadd.s32 1, %s9
    $region7: #{cnn_dqn_forward.5} parent=1 // loop_footer_branch
      %8 = sbr.rel target = $region3
    $region8: #{cnn_dqn_forward.5} parent=1 // loop_exit
      _

// kernel: cnn_dqn_forward.6
$region0: #{cnn_dqn_forward.6}
  #allocation0 [shape = 'u32[]', space=smem, size = 0x4, offset = 0x4, fixed_abs, tag = 'smem constant byte address 0x4 - core index']
  #allocation1 [shape = 'u32[144,128]{1,0:T(1,128)}', space=vmem, size = 0x12000, scoped, tag = 'internal scratch']
  #allocation2 [shape = 'f32[32,128]{1,0:T(8,128)}', space=vmem, size = 0x4000, scoped, tag = 'scratch operand']
  %s0 = inlined_call_operand.vmem [shape: bf16[32,768], index: 0, kind: input, shape index: {}]
  %s1 = inlined_call_operand.vmem [shape: bf16[768,128], index: 1, kind: input, shape index: {}]
  %s2 = inlined_call_operand.vmem [shape: f32[1,128], index: 2, kind: input, shape index: {}]
  %s3 = inlined_call_operand.vmem [shape: bf16[32,128], index: 3, kind: output, shape index: {}]
  %s4 = sld [smem:[#allocation0]]
  $region91: #{cnn_dqn_forward.6} parent=0
    _
  %s6 = ssub.s32 1, %s4
  %s7 = scalar_select 0, %s6, %s4
  $region1: #{cnn_dqn_forward.6} parent=0
    #allocation3 [shape = 'u8[32768]{0}', space=vmem, size = 0x8000, scoped, tag = 'input window, operand 0']
    loop: start=0, step=1, limit=5
    $region2: #{cnn_dqn_forward.6} parent=1 // loop_pre_header
      _
    $region3: #{cnn_dqn_forward.6} parent=1 // loop_header
      %s9 = sphi 0, %s13
      %p10 = scmp.ge.s32.totalorder %s9, 5
      %s16 = sphi 0, %s35
      %s17 = sphi 0, %s31
      %s18 = sphi 0, %s27
      %s19 = sphi 0, %s16
      %s20 = sphi 0, %s17
      %s21 = sphi 0, %s18
      %s22 = sphi 0, %s19
      %s23 = sphi 0, %s20
      %s24 = sphi 0, %s21
      %s40 = sphi 0, %s42
      %s43 = sphi 0, %s40
      %s44 = sphi 0, %s43
      %s60 = sphi 0, %s44
      %s68 = sphi 0, %s70
      %s71 = sphi 0, %s68
      %s72 = sphi 0, %s71
      %s88 = sphi 0, %s72
      %s94 = sphi 0, %s96
      %s97 = sphi 0, %s94
      %s98 = sphi 0, %s97
      %s114 = sphi 0, %s98
      %s122 = sphi 0, %s124
      %s125 = sphi 0, %s122
      %s126 = sphi 0, %s125
      %s142 = sphi 0, %s126
    $region4: #{cnn_dqn_forward.6} parent=1 // loop_header_branch
      %12 = sbr.rel (%p10) target = $region8
    $region5: #{cnn_dqn_forward.6} parent=1 // loop_body
      %s14 = ssub.s32 %s9, 1
      %s15 = ssub.s32 %s9, 2
      %s25 = sadd.s32 1, %s18
      %p26 = scmp.ge.s32.totalorder %s25, 3
      %s27 = scalar_select %p26, 0, %s25
      %s28 = sadd.s32 1, %s17
      %s29 = scalar_select %p26, %s28, %s17
      %p30 = scmp.ge.s32.totalorder %s29, 1
      %s31 = scalar_select %p30, 0, %s29
      %s32 = sadd.s32 1, %s16
      %s33 = scalar_select %p30, %s32, %s16
      %p34 = scmp.ge.s32.totalorder %s33, 1
      %s35 = scalar_select %p34, 0, %s33
      %s36 = ssub.s32 %s16, %s35
      %s37 = ssub.s32 %s18, %s27
      %s38 = sor.u32 %s36, %s37
      %p39 = scmp.eq.s32.totalorder %s38, 0
      %s41 = sadd.s32 %s40, 1
      %s42 = scalar_select %p39, %s40, %s41
      %p45 = pneg %p39
      %p46 = scmp.eq.s32.totalorder %s9, 2
      %p47 = por %p45, %p46
      %p48 = scmp.ne.s32.totalorder %s40, %s43
      %p49 = scmp.eq.s32.totalorder %s9, 0
      %p50 = por %p48, %p49
      %p51 = scmp.ne.s32.totalorder %s40, %s43
      %p52 = scmp.eq.s32.totalorder %s14, 2
      %p53 = por %p51, %p52
      %p54 = scmp.ne.s32.totalorder %s43, %s44
      %p55 = scmp.eq.s32.totalorder %s14, 0
      %p56 = por %p54, %p55
      %p57 = scmp.ne.s32.totalorder %s43, %s44
      %p58 = scmp.eq.s32.totalorder %s15, 2
      %p59 = por %p57, %p58
      %p61 = scmp.ne.s32.totalorder %s44, %s60
      %p62 = scmp.eq.s32.totalorder %s15, 0
      %p63 = por %p61, %p62
      %s64 = ssub.s32 %s18, %s27
      %s65 = ssub.s32 %s17, %s31
      %s66 = sor.u32 %s64, %s65
      %p67 = scmp.eq.s32.totalorder %s66, 0
      %s69 = sadd.s32 %s68, 1
      %s70 = scalar_select %p67, %s68, %s69
      %p73 = pneg %p67
      %p74 = scmp.eq.s32.totalorder %s9, 2
      %p75 = por %p73, %p74
      %p76 = scmp.ne.s32.totalorder %s68, %s71
      %p77 = scmp.eq.s32.totalorder %s9, 0
      %p78 = por %p76, %p77
      %p79 = scmp.ne.s32.totalorder %s68, %s71
      %p80 = scmp.eq.s32.totalorder %s14, 2
      %p81 = por %p79, %p80
      %p82 = scmp.ne.s32.totalorder %s71, %s72
      %p83 = scmp.eq.s32.totalorder %s14, 0
      %p84 = por %p82, %p83
      %p85 = scmp.ne.s32.totalorder %s71, %s72
      %p86 = scmp.eq.s32.totalorder %s15, 2
      %p87 = por %p85, %p86
      %p89 = scmp.ne.s32.totalorder %s72, %s88
      %p90 = scmp.eq.s32.totalorder %s15, 0
      %p91 = por %p89, %p90
      %s92 = ssub.s32 %s17, %s31
      %p93 = scmp.eq.s32.totalorder %s92, 0
      %s95 = sadd.s32 %s94, 1
      %s96 = scalar_select %p93, %s94, %s95
      %p99 = pneg %p93
      %p100 = scmp.eq.s32.totalorder %s9, 2
      %p101 = por %p99, %p100
      %p102 = scmp.ne.s32.totalorder %s94, %s97
      %p103 = scmp.eq.s32.totalorder %s9, 0
      %p104 = por %p102, %p103
      %p105 = scmp.ne.s32.totalorder %s94, %s97
      %p106 = scmp.eq.s32.totalorder %s14, 2
      %p107 = por %p105, %p106
      %p108 = scmp.ne.s32.totalorder %s97, %s98
      %p109 = scmp.eq.s32.totalorder %s14, 0
      %p110 = por %p108, %p109
      %p111 = scmp.ne.s32.totalorder %s97, %s98
      %p112 = scmp.eq.s32.totalorder %s15, 2
      %p113 = por %p111, %p112
      %p115 = scmp.ne.s32.totalorder %s98, %s114
      %p116 = scmp.eq.s32.totalorder %s15, 0
      %p117 = por %p115, %p116
      %s118 = ssub.s32 %s16, %s35
      %s119 = ssub.s32 %s17, %s31
      %s120 = sor.u32 %s118, %s119
      %p121 = scmp.eq.s32.totalorder %s120, 0
      %s123 = sadd.s32 %s122, 1
      %s124 = scalar_select %p121, %s122, %s123
      %p127 = pneg %p121
      %p128 = scmp.eq.s32.totalorder %s9, 2
      %p129 = por %p127, %p128
      %p130 = scmp.ne.s32.totalorder %s122, %s125
      %p131 = scmp.eq.s32.totalorder %s9, 0
      %p132 = por %p130, %p131
      %p133 = scmp.ne.s32.totalorder %s122, %s125
      %p134 = scmp.eq.s32.totalorder %s14, 2
      %p135 = por %p133, %p134
      %p136 = scmp.ne.s32.totalorder %s125, %s126
      %p137 = scmp.eq.s32.totalorder %s14, 0
      %p138 = por %p136, %p137
      %p139 = scmp.ne.s32.totalorder %s125, %s126
      %p140 = scmp.eq.s32.totalorder %s15, 2
      %p141 = por %p139, %p140
      %p143 = scmp.ne.s32.totalorder %s126, %s142
      %p144 = scmp.eq.s32.totalorder %s15, 0
      %p145 = por %p143, %p144
      %p146 = scmp.le.s32.totalorder 1, %s9
      %p147 = scmp.lt.s32.totalorder %s9, 4
      %p148 = pnand %p146, %p147
      %p149 = pneg %p148
      // Predicated region
      $region9: #{cnn_dqn_forward.6} parent=5 // pred_check
        _
      $region10: #{cnn_dqn_forward.6} parent=5 // pred_check_branch
        %151 = sbr.rel (%p148) target = $region12
      $region11: #{cnn_dqn_forward.6} parent=5 // pred_region
        %s152 = ssub.s32 %s9, 1
        // Predicated region
        $region13: #{cnn_dqn_forward.6} parent=11 // pred_check
          %p153 = pneg %p110
        $region14: #{cnn_dqn_forward.6} parent=11 // pred_check_branch
          %155 = sbr.rel (%p153) target = $region16
        $region15: #{cnn_dqn_forward.6} parent=11 // pred_region
          %p156 = scmp.lt.s32.totalorder %s20, 0
          %s157 = scalar_select %p156, %s20, 0
          %s158 = scalar_lea.vmem %s2, %s157
        $region16: #{cnn_dqn_forward.6} parent=11 // pred_fallthru
          _
      $region12: #{cnn_dqn_forward.6} parent=5 // pred_fallthru
        _
      %p159 = scmp.lt.s32.totalorder %s9, 3
      // Predicated region
      $region17: #{cnn_dqn_forward.6} parent=5 // pred_check
        %p160 = pneg %p159
      $region18: #{cnn_dqn_forward.6} parent=5 // pred_check_branch
        %162 = sbr.rel (%p160) target = $region20
      $region19: #{cnn_dqn_forward.6} parent=5 // pred_region
        // Predicated region
        $region21: #{cnn_dqn_forward.6} parent=19 // pred_check
          %p163 = pneg %p50
        $region22: #{cnn_dqn_forward.6} parent=19 // pred_check_branch
          %165 = sbr.rel (%p163) target = $region24
        $region23: #{cnn_dqn_forward.6} parent=19 // pred_region
          %s166 = sand.u32 %s40, 1
          %s167 = sand.u32 %s40, 1
          %s168 = smul.addr %s167, 32
          %s169 = scalar_lea.vmem [#allocation3], %s168
          %s170 = smul.u32 4, %s16
          %s171 = smul.u32 2, %s18
          %s172 = smul.addr %s170, 6
          %s173 = sadd.s32 %s171, %s172
          %s174 = smul.addr %s173, 4
          %s175 = scalar_lea.vmem %s0, %s174
          // Predicated region
          $region25: #{cnn_dqn_forward.6} parent=23 // pred_check
            _
          $region26: #{cnn_dqn_forward.6} parent=23 // pred_check_branch
            %177 = sbr.rel (0) target = $region28
          $region27: #{cnn_dqn_forward.6} parent=23 // pred_region
            // Predicated region
            $region29: #{cnn_dqn_forward.6} parent=27 // pred_check
              _
            $region30: #{cnn_dqn_forward.6} parent=27 // pred_check_branch
              %179 = sbr.rel (0) target = $region32
            $region31: #{cnn_dqn_forward.6} parent=27 // pred_region
              // Predicated region
              $region44: #{cnn_dqn_forward.6} parent=31 // pred_check
                _
              $region45: #{cnn_dqn_forward.6} parent=31 // pred_check_branch
                %201 = sbr.rel (0) target = $region47
              $region46: #{cnn_dqn_forward.6} parent=31 // pred_region
                loop: start=0, step=1, limit=1
                $region48: #{cnn_dqn_forward.6} parent=46 // loop_pre_header
                  _
                $region49: #{cnn_dqn_forward.6} parent=46 // loop_header
                  %s203 = sphi 0, %s207
                  %p204 = scmp.ge.s32.totalorder %s203, 1
                  %s208 = sphi %s175, %s175
                  %s209 = sphi %s169, %s169
                $region50: #{cnn_dqn_forward.6} parent=46 // loop_header_branch
                  %206 = sbr.rel (%p204) target = $region54
                $region51: #{cnn_dqn_forward.6} parent=46 // loop_body
                  %v210 = vld [vmem:[%s208] sm:$0xff]
                  %211 = vst [vmem:[%s209] sm:$0xff] %v210
                  %v212 = vld [vmem:[%s208 + $0x18] sm:$0xff]
                  %213 = vst [vmem:[%s209 + $0x8] sm:$0xff] %v212
                  %v214 = vld [vmem:[%s208 + $0x30] sm:$0xff]
                  %215 = vst [vmem:[%s209 + $0x10] sm:$0xff] %v214
                  %v216 = vld [vmem:[%s208 + $0x48] sm:$0xff]
                  %217 = vst [vmem:[%s209 + $0x18] sm:$0xff] %v216
                $region52: #{cnn_dqn_forward.6} parent=46 // loop_footer
                  %s207 = sadd.s32 1, %s203
                $region53: #{cnn_dqn_forward.6} parent=46 // loop_footer_branch
                  %202 = sbr.rel target = $region49
                $region54: #{cnn_dqn_forward.6} parent=46 // loop_exit
                  _
              $region47: #{cnn_dqn_forward.6} parent=31 // pred_fallthru
                _
              // Predicated region
              $region55: #{cnn_dqn_forward.6} parent=31 // pred_check
                _
              $region56: #{cnn_dqn_forward.6} parent=31 // pred_check_branch
                %219 = sbr.rel target = $region58
              $region57: #{cnn_dqn_forward.6} parent=31 // pred_region
                _
              $region58: #{cnn_dqn_forward.6} parent=31 // pred_fallthru
                _
            $region32: #{cnn_dqn_forward.6} parent=27 // pred_fallthru
              _
            // Predicated region
            $region33: #{cnn_dqn_forward.6} parent=27 // pred_check
              _
            $region34: #{cnn_dqn_forward.6} parent=27 // pred_check_branch
              %181 = sbr.rel target = $region36
            $region35: #{cnn_dqn_forward.6} parent=27 // pred_region
              %s183 = ssub.s32 256, 1
              loop: start=0, step=1, limit=1
              $region37: #{cnn_dqn_forward.6} parent=35 // loop_pre_header
                _
              $region38: #{cnn_dqn_forward.6} parent=35 // loop_header
                %s185 = sphi 0, %s189
                %p186 = scmp.ge.s32.totalorder %s185, 1
                %s190 = sphi %s175, %s175
                %s191 = sphi %s169, %s169
              $region39: #{cnn_dqn_forward.6} parent=35 // loop_header_branch
                %188 = sbr.rel (%p186) target = $region43
              $region40: #{cnn_dqn_forward.6} parent=35 // loop_body
                %v192 = vld [vmem:[%s190] sm:%s183]
                %193 = vst [vmem:[%s191] sm:%s183] %v192
                %v194 = vld [vmem:[%s190 + $0x18] sm:%s183]
                %195 = vst [vmem:[%s191 + $0x8] sm:%s183] %v194
                %v196 = vld [vmem:[%s190 + $0x30] sm:%s183]
                %197 = vst [vmem:[%s191 + $0x10] sm:%s183] %v196
                %v198 = vld [vmem:[%s190 + $0x48] sm:%s183]
                %199 = vst [vmem:[%s191 + $0x18] sm:%s183] %v198
              $region41: #{cnn_dqn_forward.6} parent=35 // loop_footer
                %s189 = sadd.s32 1, %s185
              $region42: #{cnn_dqn_forward.6} parent=35 // loop_footer_branch
                %184 = sbr.rel target = $region38
              $region43: #{cnn_dqn_forward.6} parent=35 // loop_exit
                _
            $region36: #{cnn_dqn_forward.6} parent=27 // pred_fallthru
              _
          $region28: #{cnn_dqn_forward.6} parent=23 // pred_fallthru
            _
          %220 = vnop
        $region24: #{cnn_dqn_forward.6} parent=19 // pred_fallthru
          _
        // Predicated region
        $region59: #{cnn_dqn_forward.6} parent=19 // pred_check
          %p221 = pneg %p78
        $region60: #{cnn_dqn_forward.6} parent=19 // pred_check_branch
          %223 = sbr.rel (%p221) target = $region62
        $region61: #{cnn_dqn_forward.6} parent=19 // pred_region
          %s224 = smul.u32 32, %s18
          %p225 = scmp.lt.s32.totalorder %s224, 95
          %s226 = scalar_select %p225, %s224, 95
          %p227 = scmp.lt.s32.totalorder %s17, 0
          %s228 = scalar_select %p227, %s17, 0
          %s229 = sadd.s32 %s228, %s226
          %s230 = smul.addr %s229, 4
          %s231 = scalar_lea.vmem %s1, %s230
          %s232 = smul.u32 32, %s18
        $region62: #{cnn_dqn_forward.6} parent=19 // pred_fallthru
          _
      $region20: #{cnn_dqn_forward.6} parent=5 // pred_fallthru
        _
      %p233 = scmp.le.s32.totalorder 1, %s9
      %p234 = scmp.lt.s32.totalorder %s9, 4
      %p235 = pnand %p233, %p234
      %p236 = pneg %p235
      // Predicated region
      $region63: #{cnn_dqn_forward.6} parent=5 // pred_check
        _
      $region64: #{cnn_dqn_forward.6} parent=5 // pred_check_branch
        %238 = sbr.rel (%p235) target = $region66
      $region65: #{cnn_dqn_forward.6} parent=5 // pred_region
        %s239 = ssub.s32 %s9, 1
        %s240 = sand.u32 %s43, 1
        %s241 = sand.u32 %s43, 1
        %s242 = smul.addr %s241, 32
        %s243 = scalar_lea.vmem [#allocation3], %s242
        // Predicated region
        $region67: #{cnn_dqn_forward.6} parent=65 // pred_check
          %p244 = pneg %p56
        $region68: #{cnn_dqn_forward.6} parent=65 // pred_check_branch
          %246 = sbr.rel (%p244) target = $region70
        $region69: #{cnn_dqn_forward.6} parent=65 // pred_region
          _
        $region70: #{cnn_dqn_forward.6} parent=65 // pred_fallthru
          _
        %s247 = sand.u32 %s43, 1
        %s248 = sand.u32 %s43, 1
        %s249 = smul.addr %s248, 32
        %s250 = scalar_lea.vmem [#allocation3], %s249
        %p251 = pneg %p56
        %p252 = pneg %p53
        %s253 = smul.u32 32, %s21
        %p254 = scmp.lt.s32.totalorder %s253, 95
        %s255 = scalar_select %p254, %s253, 95
        %p256 = scmp.lt.s32.totalorder %s20, 0
        %s257 = scalar_select %p256, %s20, 0
        %s258 = sadd.s32 %s257, %s255
        %s259 = smul.addr %s258, 4
        %s260 = scalar_lea.vmem %s1, %s259
        %p261 = pneg %p84
        %p262 = pneg %p81
        %p263 = scmp.lt.s32.totalorder %s20, 0
        %s264 = scalar_select %p263, %s20, 0
        %s265 = scalar_lea.vmem %s2, %s264
        %p266 = pneg %p110
        %p267 = pneg %p107
        %p268 = pneg %p138
        %p269 = pneg %p135
        %s270 = smul.u32 4, %s19
        %p271 = scmp.lt.s32.totalorder %s270, 3
        %s272 = scalar_select %p271, %s270, 3
        %p273 = scmp.lt.s32.totalorder %s20, 0
        %s274 = scalar_select %p273, %s20, 0
        %s275 = sadd.s32 %s274, %s272
        %s276 = smul.addr %s275, 4
        %s277 = scalar_lea.vmem %s3, %s276
        %s278 = smul.u32 4, %s19
        %s279 = smul.u32 2, %s21
        %s280 = smul.u32 32, %s21
        %p281 = scmp.lt.s32.totalorder %s280, 95
        %s282 = scalar_select %p281, %s280, 95
        %p283 = scmp.lt.s32.totalorder %s20, 0
        %s284 = scalar_select %p283, %s20, 0
        %s285 = sadd.s32 %s284, %s282
        %s286 = smul.addr %s285, 4
        %s287 = scalar_lea.vmem %s1, %s286
        %s288 = smul.u32 32, %s21
        %p289 = scmp.lt.s32.totalorder %s20, 0
        %s290 = scalar_select %p289, %s20, 0
        %s291 = scalar_lea.vmem %s2, %s290
        %s292 = smul.u32 4, %s19
        %p293 = scmp.lt.s32.totalorder %s292, 3
        %s294 = scalar_select %p293, %s292, 3
        %p295 = scmp.lt.s32.totalorder %s20, 0
        %s296 = scalar_select %p295, %s20, 0
        %s297 = sadd.s32 %s296, %s294
        %s298 = smul.addr %s297, 4
        %s299 = scalar_lea.vmem %s3, %s298
        %s300 = smul.u32 4, %s19
        %p302 = scmp.eq.s32.totalorder %s21, 0
        // Predicated region
        $region71: #{cnn_dqn_forward.6} parent=65 // pred_check
          %p303 = pneg %p302
        $region72: #{cnn_dqn_forward.6} parent=65 // pred_check_branch
          %305 = sbr.rel (%p303) target = $region74
        $region73: #{cnn_dqn_forward.6} parent=65 // pred_region
          %306 = vst [vmem:[#allocation2] sm:$0xff] 0.0
          %307 = vst [vmem:[#allocation2 + $0x8] sm:$0xff] 0.0
          %308 = vst [vmem:[#allocation2 + $0x10] sm:$0xff] 0.0
          %309 = vst [vmem:[#allocation2 + $0x18] sm:$0xff] 0.0
        $region74: #{cnn_dqn_forward.6} parent=65 // pred_fallthru
          _
        %v310 = vld [vmem:[#allocation2] sm:$0xff]
        %v311 = vld [vmem:[#allocation2 + $0x8] sm:$0xff]
        %v312 = vld [vmem:[#allocation2 + $0x10] sm:$0xff]
        %v313 = vld [vmem:[#allocation2 + $0x18] sm:$0xff]
        %v314 = vld [vmem:[%s243] sm:$0xff]
        %v315 = vld [vmem:[%s243 + $0x8] sm:$0xff]
        %v316 = vld [vmem:[%s243 + $0x10] sm:$0xff]
        %v317 = vld [vmem:[%s243 + $0x18] sm:$0xff]
        %v318 = vld [vmem:[%s287] sm:$0xf]
        %v319 = vld [vmem:[%s287 + $0x4] sm:$0xf]
        %v320 = vld [vmem:[%s287 + $0x8] sm:$0xf]
        %v321 = vld [vmem:[%s287 + $0xc] sm:$0xf]
        %v322 = vld [vmem:[%s287 + $0x10] sm:$0xf]
        %v323 = vld [vmem:[%s287 + $0x14] sm:$0xf]
        %v324 = vld [vmem:[%s287 + $0x18] sm:$0xf]
        %v325 = vld [vmem:[%s287 + $0x1c] sm:$0xf]
        %v326 = vld [vmem:[%s287 + $0x20] sm:$0xf]
        %v327 = vld [vmem:[%s287 + $0x24] sm:$0xf]
        %v328 = vld [vmem:[%s287 + $0x28] sm:$0xf]
        %v329 = vld [vmem:[%s287 + $0x2c] sm:$0xf]
        %v330 = vld [vmem:[%s287 + $0x30] sm:$0xf]
        %v331 = vld [vmem:[%s287 + $0x34] sm:$0xf]
        %v332 = vld [vmem:[%s287 + $0x38] sm:$0xf]
        %v333 = vld [vmem:[%s287 + $0x3c] sm:$0xf]
        %v334 = vld [vmem:[%s287 + $0x40] sm:$0xf]
        %v335 = vld [vmem:[%s287 + $0x44] sm:$0xf]
        %v336 = vld [vmem:[%s287 + $0x48] sm:$0xf]
        %v337 = vld [vmem:[%s287 + $0x4c] sm:$0xf]
        %v338 = vld [vmem:[%s287 + $0x50] sm:$0xf]
        %v339 = vld [vmem:[%s287 + $0x54] sm:$0xf]
        %v340 = vld [vmem:[%s287 + $0x58] sm:$0xf]
        %v341 = vld [vmem:[%s287 + $0x5c] sm:$0xf]
        %v342 = vld [vmem:[%s287 + $0x60] sm:$0xf]
        %v343 = vld [vmem:[%s287 + $0x64] sm:$0xf]
        %v344 = vld [vmem:[%s287 + $0x68] sm:$0xf]
        %v345 = vld [vmem:[%s287 + $0x6c] sm:$0xf]
        %v346 = vld [vmem:[%s287 + $0x70] sm:$0xf]
        %v347 = vld [vmem:[%s287 + $0x74] sm:$0xf]
        %v348 = vld [vmem:[%s287 + $0x78] sm:$0xf]
        %v349 = vld [vmem:[%s287 + $0x7c] sm:$0xf]
        %v354 = vunpack.c.l.b16 %v314
        %v355 = vunpack.c.h.b16 %v314
        %v356 = vunpack.c.l.b16 %v315
        %v357 = vunpack.c.h.b16 %v315
        %v358 = vunpack.c.l.b16 %v316
        %v359 = vunpack.c.h.b16 %v316
        %v360 = vunpack.c.l.b16 %v317
        %v361 = vunpack.c.h.b16 %v317
        %v362 = vpack.c.b16 %v356, %v354
        %v363 = vpack.c.b16 %v357, %v355
        %v364 = vpack.c.b16 %v360, %v358
        %v365 = vpack.c.b16 %v361, %v359
        %v402 = vunpack.c.l.b16 %v318
        %v403 = vunpack.c.l.b16 %v319
        %v404 = vunpack.c.l.b16 %v320
        %v405 = vunpack.c.l.b16 %v321
        %v406 = vunpack.c.l.b16 %v322
        %v407 = vunpack.c.l.b16 %v323
        %v408 = vunpack.c.l.b16 %v324
        %v409 = vunpack.c.l.b16 %v325
        %v410 = vunpack.c.l.b16 %v326
        %v411 = vunpack.c.l.b16 %v327
        %v412 = vunpack.c.l.b16 %v328
        %v413 = vunpack.c.l.b16 %v329
        %v414 = vunpack.c.l.b16 %v330
        %v415 = vunpack.c.l.b16 %v331
        %v416 = vunpack.c.l.b16 %v332
        %v417 = vunpack.c.l.b16 %v333
        %v418 = vunpack.c.l.b16 %v334
        %v419 = vunpack.c.l.b16 %v335
        %v420 = vunpack.c.l.b16 %v336
        %v421 = vunpack.c.l.b16 %v337
        %v422 = vunpack.c.l.b16 %v338
        %v423 = vunpack.c.l.b16 %v339
        %v424 = vunpack.c.l.b16 %v340
        %v425 = vunpack.c.l.b16 %v341
        %v426 = vunpack.c.l.b16 %v342
        %v427 = vunpack.c.l.b16 %v343
        %v428 = vunpack.c.l.b16 %v344
        %v429 = vunpack.c.l.b16 %v345
        %v430 = vunpack.c.l.b16 %v346
        %v431 = vunpack.c.l.b16 %v347
        %v432 = vunpack.c.l.b16 %v348
        %v433 = vunpack.c.l.b16 %v349
        %v434 = vpack.c.b16 %v403, %v402
        %v435 = vpack.c.b16 %v405, %v404
        %v436 = vpack.c.b16 %v407, %v406
        %v437 = vpack.c.b16 %v409, %v408
        %v438 = vpack.c.b16 %v411, %v410
        %v439 = vpack.c.b16 %v413, %v412
        %v440 = vpack.c.b16 %v415, %v414
        %v441 = vpack.c.b16 %v417, %v416
        %v442 = vpack.c.b16 %v419, %v418
        %v443 = vpack.c.b16 %v421, %v420
        %v444 = vpack.c.b16 %v423, %v422
        %v445 = vpack.c.b16 %v425, %v424
        %v446 = vpack.c.b16 %v427, %v426
        %v447 = vpack.c.b16 %v429, %v428
        %v448 = vpack.c.b16 %v431, %v430
        %v449 = vpack.c.b16 %v433, %v432
        %466 = vmatprep.subr.bf16.mxu0 0
        %467 = vmatpush1.bf16.msra.mxu0 %v441
        %468 = vmatprep.subr.bf16.mxu0 0
        %469 = vmatpush1.bf16.msra.mxu0 %v440
        %470 = vmatprep.subr.bf16.mxu0 0
        %471 = vmatpush1.bf16.msra.mxu0 %v439
        %472 = vmatprep.subr.bf16.mxu0 0
        %473 = vmatpush1.bf16.msra.mxu0 %v438
        %474 = vmatprep.subr.bf16.mxu0 0
        %475 = vmatpush1.bf16.msra.mxu0 %v437
        %476 = vmatprep.subr.bf16.mxu0 0
        %477 = vmatpush1.bf16.msra.mxu0 %v436
        %478 = vmatprep.subr.bf16.mxu0 0
        %479 = vmatpush1.bf16.msra.mxu0 %v435
        %480 = vmatprep.subr.bf16.mxu0 0
        %481 = vmatpush1.bf16.msra.mxu0 %v434
        %482 = vmatprep.subr.bf16.mxu0 0
        %483 = vmatpush2.bf16.msra.mxu0 %v449
        %484 = vmatprep.subr.bf16.mxu0 0
        %485 = vmatpush2.bf16.msra.mxu0 %v448
        %486 = vmatprep.subr.bf16.mxu0 0
        %487 = vmatpush2.bf16.msra.mxu0 %v447
        %488 = vmatprep.subr.bf16.mxu0 0
        %489 = vmatpush2.bf16.msra.mxu0 %v446
        %490 = vmatprep.subr.bf16.mxu0 0
        %491 = vmatpush2.bf16.msra.mxu0 %v445
        %492 = vmatprep.subr.bf16.mxu0 0
        %493 = vmatpush2.bf16.msra.mxu0 %v444
        %494 = vmatprep.subr.bf16.mxu0 0
        %495 = vmatpush2.bf16.msra.mxu0 %v443
        %496 = vmatprep.subr.bf16.mxu0 0
        %497 = vmatpush2.bf16.msra.mxu0 %v442
        %498 = vmatprep.mubr.bf16.mxu0 %v363
        %499 = vmatmul.mubr.bf16.gmra.mxu0 %v362
        %v500 = vpop.f32.mrf.mxu0
        %v501 = vadd.f32 0.0, %v500
        %v502 = vpop.f32.mrf.mxu0
        %v503 = vpop.f32.mrf.mxu0
        %v504 = vadd.f32 0.0, %v503
        %v505 = vpop.f32.mrf.mxu0
        %506 = vmatprep.mubr.bf16.mxu0 %v365
        %507 = vmatmul.mubr.bf16.gmra.mxu0 %v364
        %v508 = vpop.f32.mrf.mxu0
        %v509 = vadd.f32 0.0, %v508
        %v510 = vpop.f32.mrf.mxu0
        %v511 = vpop.f32.mrf.mxu0
        %v512 = vadd.f32 0.0, %v511
        %v513 = vpop.f32.mrf.mxu0
        %514 = vdwg.mxu0
        %v515 = vadd.f32 %v310, %v501
        %v516 = vadd.f32 %v311, %v504
        %v517 = vadd.f32 %v312, %v509
        %v518 = vadd.f32 %v313, %v512
        %519 = vst [vmem:[#allocation2] sm:$0xff] %v515
        %520 = vst [vmem:[#allocation2 + $0x8] sm:$0xff] %v516
        %521 = vst [vmem:[#allocation2 + $0x10] sm:$0xff] %v517
        %522 = vst [vmem:[#allocation2 + $0x18] sm:$0xff] %v518
        %p523 = scmp.eq.s32.totalorder %s21, 2
        // Predicated region
        $region75: #{cnn_dqn_forward.6} parent=65 // pred_check
          %p524 = pneg %p523
        $region76: #{cnn_dqn_forward.6} parent=65 // pred_check_branch
          %526 = sbr.rel (%p524) target = $region78
        $region77: #{cnn_dqn_forward.6} parent=65 // pred_region
          %v527 = vld [vmem:[#allocation2] sm:$0xff]
          %v528 = vld [vmem:[#allocation2 + $0x8] sm:$0xff]
          %v529 = vld [vmem:[#allocation2 + $0x10] sm:$0xff]
          %v530 = vld [vmem:[#allocation2 + $0x18] sm:$0xff]
          %v531 = vld [vmem:[%s291] sm:$0x1]
          %v533 = vlaneseq
          %v534 = vshrl.u32 %v533, 7
          %v535 = vsub.s32 0, %v534
          %v536 = vrot.slane %v531, %v535
          %v538 = vadd.f32 %v527, %v536
          %v539 = vadd.f32 %v528, %v536
          %v540 = vadd.f32 %v529, %v536
          %v541 = vadd.f32 %v530, %v536
          %v542 = vmax.f32 %v538, 0.0
          %v543 = vmax.f32 %v539, 0.0
          %v544 = vmax.f32 %v540, 0.0
          %v545 = vmax.f32 %v541, 0.0
          %v546 = vpack.c.bf16 %v543, %v542
          %v547 = vpack.c.bf16 %v545, %v544
          %v550 = vunpack.c.l.b16 %v546
          %v551 = vunpack.c.h.b16 %v546
          %v552 = vunpack.c.l.b16 %v547
          %v553 = vunpack.c.h.b16 %v547
          %v554 = vpack.c.b16 %v550, %v550
          %v555 = vpack.c.b16 %v551, %v551
          %v556 = vpack.c.b16 %v552, %v552
          %v557 = vpack.c.b16 %v553, %v553
          %562 = vst [vmem:[%s299] sm:$0xf] %v554
          %563 = vst [vmem:[%s299 + $0x4] sm:$0xf] %v555
          %564 = vst [vmem:[%s299 + $0x8] sm:$0xf] %v556
          %565 = vst [vmem:[%s299 + $0xc] sm:$0xf] %v557
        $region78: #{cnn_dqn_forward.6} parent=65 // pred_fallthru
          _
        %s566 = smul.u32 4, %s19
        %p567 = scmp.lt.s32.totalorder %s566, 3
        %s568 = scalar_select %p567, %s566, 3
        %p569 = scmp.lt.s32.totalorder %s20, 0
        %s570 = scalar_select %p569, %s20, 0
        %s571 = sadd.s32 %s570, %s568
        %s572 = smul.addr %s571, 4
        %s573 = scalar_lea.vmem %s3, %s572
        // Predicated region
        $region79: #{cnn_dqn_forward.6} parent=65 // pred_check
          %p574 = pneg %p135
        $region80: #{cnn_dqn_forward.6} parent=65 // pred_check_branch
          %576 = sbr.rel (%p574) target = $region82
        $region81: #{cnn_dqn_forward.6} parent=65 // pred_region
          %s577 = smul.u32 4, %s19
        $region82: #{cnn_dqn_forward.6} parent=65 // pred_fallthru
          _
        // Predicated region
        $region83: #{cnn_dqn_forward.6} parent=65 // pred_check
          %p578 = pneg %p135
        $region84: #{cnn_dqn_forward.6} parent=65 // pred_check_branch
          %580 = sbr.rel (%p578) target = $region86
        $region85: #{cnn_dqn_forward.6} parent=65 // pred_region
          %s581 = smul.u32 4, %s19
          %p582 = scmp.lt.s32.totalorder %s581, 3
          %s583 = scalar_select %p582, %s581, 3
          %p584 = scmp.lt.s32.totalorder %s20, 0
          %s585 = scalar_select %p584, %s20, 0
          %s586 = sadd.s32 %s585, %s583
          %s587 = smul.addr %s586, 4
          %s588 = scalar_lea.vmem %s3, %s587
        $region86: #{cnn_dqn_forward.6} parent=65 // pred_fallthru
          _
      $region66: #{cnn_dqn_forward.6} parent=5 // pred_fallthru
        _
      %p589 = scmp.le.s32.totalorder 2, %s9
      // Predicated region
      $region87: #{cnn_dqn_forward.6} parent=5 // pred_check
        %p590 = pneg %p589
      $region88: #{cnn_dqn_forward.6} parent=5 // pred_check_branch
        %592 = sbr.rel (%p590) target = $region90
      $region89: #{cnn_dqn_forward.6} parent=5 // pred_region
        %s593 = ssub.s32 %s9, 2
      $region90: #{cnn_dqn_forward.6} parent=5 // pred_fallthru
        _
    $region6: #{cnn_dqn_forward.6} parent=1 // loop_footer
      %s13 = sadd.s32 1, %s9
    $region7: #{cnn_dqn_forward.6} parent=1 // loop_footer_branch
      %8 = sbr.rel target = $region3
    $region8: #{cnn_dqn_forward.6} parent=1 // loop_exit
      _

// kernel: cnn_dqn_forward.7
$region0: #{cnn_dqn_forward.7}
  #allocation0 [shape = 'u32[]', space=smem, size = 0x4, offset = 0x4, fixed_abs, tag = 'smem constant byte address 0x4 - core index']
  #allocation1 [shape = 'u32[144,128]{1,0:T(1,128)}', space=vmem, size = 0x12000, scoped, tag = 'internal scratch']
  #allocation2 [shape = 'f32[16,512]{1,0:T(8,128)}', space=vmem, size = 0x8000, scoped, tag = 'scratch operand']
  %s0 = inlined_call_operand.vmem [shape: bf16[16,768], index: 0, kind: input, shape index: {}]
  %s1 = inlined_call_operand.vmem [shape: bf16[768,512], index: 1, kind: input, shape index: {}]
  %s2 = inlined_call_operand.vmem [shape: f32[1,512], index: 2, kind: input, shape index: {}]
  %s3 = inlined_call_operand.vmem [shape: bf16[512,128], index: 3, kind: input, shape index: {}]
  %s4 = inlined_call_operand.vmem [shape: f32[1,128], index: 4, kind: input, shape index: {}]
  %s5 = inlined_call_operand.vmem [shape: f32[16,128], index: 5, kind: output, shape index: {}]
  %s6 = sld [smem:[#allocation0]]
  $region99: #{cnn_dqn_forward.7} parent=0
    _
  %s8 = ssub.s32 1, %s6
  %s9 = scalar_select 0, %s8, %s6
  $region1: #{cnn_dqn_forward.7} parent=0
    #allocation3 [shape = 'u8[16384]{0}', space=vmem, size = 0x4000, scoped, tag = 'input window, operand 0']
    loop: start=0, step=1, limit=5
    $region2: #{cnn_dqn_forward.7} parent=1 // loop_pre_header
      _
    $region3: #{cnn_dqn_forward.7} parent=1 // loop_header
      %s11 = sphi 0, %s15
      %p12 = scmp.ge.s32.totalorder %s11, 5
      %s18 = sphi 0, %s30
      %s19 = sphi 0, %s26
      %s20 = sphi 0, %s18
      %s21 = sphi 0, %s19
      %s22 = sphi 0, %s20
      %s23 = sphi 0, %s21
      %s35 = sphi 0, %s37
      %s38 = sphi 0, %s35
      %s39 = sphi 0, %s38
      %s55 = sphi 0, %s39
      %s61 = sphi 0, %s63
      %s64 = sphi 0, %s61
      %s65 = sphi 0, %s64
      %s81 = sphi 0, %s65
      %s85 = sphi 0, %s85
      %s87 = sphi 0, %s85
      %s88 = sphi 0, %s87
      %s102 = sphi 0, %s88
      %s106 = sphi 0, %s106
      %s108 = sphi 0, %s106
      %s109 = sphi 0, %s108
      %s123 = sphi 0, %s109
      %s127 = sphi 0, %s127
      %s129 = sphi 0, %s127
      %s130 = sphi 0, %s129
      %s144 = sphi 0, %s130
      %s150 = sphi 0, %s152
      %s153 = sphi 0, %s150
      %s154 = sphi 0, %s153
      %s170 = sphi 0, %s154
    $region4: #{cnn_dqn_forward.7} parent=1 // loop_header_branch
      %14 = sbr.rel (%p12) target = $region8
    $region5: #{cnn_dqn_forward.7} parent=1 // loop_body
      %s16 = ssub.s32 %s11, 1
      %s17 = ssub.s32 %s11, 2
      %s24 = sadd.s32 1, %s19
      %p25 = scmp.ge.s32.totalorder %s24, 3
      %s26 = scalar_select %p25, 0, %s24
      %s27 = sadd.s32 1, %s18
      %s28 = scalar_select %p25, %s27, %s18
      %p29 = scmp.ge.s32.totalorder %s28, 1
      %s30 = scalar_select %p29, 0, %s28
      %s31 = ssub.s32 %s18, %s30
      %s32 = ssub.s32 %s19, %s26
      %s33 = sor.u32 %s31, %s32
      %p34 = scmp.eq.s32.totalorder %s33, 0
      %s36 = sadd.s32 %s35, 1
      %s37 = scalar_select %p34, %s35, %s36
      %p40 = pneg %p34
      %p41 = scmp.eq.s32.totalorder %s11, 2
      %p42 = por %p40, %p41
      %p43 = scmp.ne.s32.totalorder %s35, %s38
      %p44 = scmp.eq.s32.totalorder %s11, 0
      %p45 = por %p43, %p44
      %p46 = scmp.ne.s32.totalorder %s35, %s38
      %p47 = scmp.eq.s32.totalorder %s16, 2
      %p48 = por %p46, %p47
      %p49 = scmp.ne.s32.totalorder %s38, %s39
      %p50 = scmp.eq.s32.totalorder %s16, 0
      %p51 = por %p49, %p50
      %p52 = scmp.ne.s32.totalorder %s38, %s39
      %p53 = scmp.eq.s32.totalorder %s17, 2
      %p54 = por %p52, %p53
      %p56 = scmp.ne.s32.totalorder %s39, %s55
      %p57 = scmp.eq.s32.totalorder %s17, 0
      %p58 = por %p56, %p57
      %s59 = ssub.s32 %s19, %s26
      %p60 = scmp.eq.s32.totalorder %s59, 0
      %s62 = sadd.s32 %s61, 1
      %s63 = scalar_select %p60, %s61, %s62
      %p66 = pneg %p60
      %p67 = scmp.eq.s32.totalorder %s11, 2
      %p68 = por %p66, %p67
      %p69 = scmp.ne.s32.totalorder %s61, %s64
      %p70 = scmp.eq.s32.totalorder %s11, 0
      %p71 = por %p69, %p70
      %p72 = scmp.ne.s32.totalorder %s61, %s64
      %p73 = scmp.eq.s32.totalorder %s16, 2
      %p74 = por %p72, %p73
      %p75 = scmp.ne.s32.totalorder %s64, %s65
      %p76 = scmp.eq.s32.totalorder %s16, 0
      %p77 = por %p75, %p76
      %p78 = scmp.ne.s32.totalorder %s64, %s65
      %p79 = scmp.eq.s32.totalorder %s17, 2
      %p80 = por %p78, %p79
      %p82 = scmp.ne.s32.totalorder %s65, %s81
      %p83 = scmp.eq.s32.totalorder %s17, 0
      %p84 = por %p82, %p83
      %s86 = sadd.s32 %s85, 1
      %p89 = scmp.eq.s32.totalorder %s11, 2
      %p90 = scmp.ne.s32.totalorder %s85, %s87
      %p91 = scmp.eq.s32.totalorder %s11, 0
      %p92 = por %p90, %p91
      %p93 = scmp.ne.s32.totalorder %s85, %s87
      %p94 = scmp.eq.s32.totalorder %s16, 2
      %p95 = por %p93, %p94
      %p96 = scmp.ne.s32.totalorder %s87, %s88
      %p97 = scmp.eq.s32.totalorder %s16, 0
      %p98 = por %p96, %p97
      %p99 = scmp.ne.s32.totalorder %s87, %s88
      %p100 = scmp.eq.s32.totalorder %s17, 2
      %p101 = por %p99, %p100
      %p103 = scmp.ne.s32.totalorder %s88, %s102
      %p104 = scmp.eq.s32.totalorder %s17, 0
      %p105 = por %p103, %p104
      %s107 = sadd.s32 %s106, 1
      %p110 = scmp.eq.s32.totalorder %s11, 2
      %p111 = scmp.ne.s32.totalorder %s106, %s108
      %p112 = scmp.eq.s32.totalorder %s11, 0
      %p113 = por %p111, %p112
      %p114 = scmp.ne.s32.totalorder %s106, %s108
      %p115 = scmp.eq.s32.totalorder %s16, 2
      %p116 = por %p114, %p115
      %p117 = scmp.ne.s32.totalorder %s108, %s109
      %p118 = scmp.eq.s32.totalorder %s16, 0
      %p119 = por %p117, %p118
      %p120 = scmp.ne.s32.totalorder %s108, %s109
      %p121 = scmp.eq.s32.totalorder %s17, 2
      %p122 = por %p120, %p121
      %p124 = scmp.ne.s32.totalorder %s109, %s123
      %p125 = scmp.eq.s32.totalorder %s17, 0
      %p126 = por %p124, %p125
      %s128 = sadd.s32 %s127, 1
      %p131 = scmp.eq.s32.totalorder %s11, 2
      %p132 = scmp.ne.s32.totalorder %s127, %s129
      %p133 = scmp.eq.s32.totalorder %s11, 0
      %p134 = por %p132, %p133
      %p135 = scmp.ne.s32.totalorder %s127, %s129
      %p136 = scmp.eq.s32.totalorder %s16, 2
      %p137 = por %p135, %p136
      %p138 = scmp.ne.s32.totalorder %s129, %s130
      %p139 = scmp.eq.s32.totalorder %s16, 0
      %p140 = por %p138, %p139
      %p141 = scmp.ne.s32.totalorder %s129, %s130
      %p142 = scmp.eq.s32.totalorder %s17, 2
      %p143 = por %p141, %p142
      %p145 = scmp.ne.s32.totalorder %s130, %s144
      %p146 = scmp.eq.s32.totalorder %s17, 0
      %p147 = por %p145, %p146
      %s148 = ssub.s32 %s18, %s30
      %p149 = scmp.eq.s32.totalorder %s148, 0
      %s151 = sadd.s32 %s150, 1
      %s152 = scalar_select %p149, %s150, %s151
      %p155 = pneg %p149
      %p156 = scmp.eq.s32.totalorder %s11, 2
      %p157 = por %p155, %p156
      %p158 = scmp.ne.s32.totalorder %s150, %s153
      %p159 = scmp.eq.s32.totalorder %s11, 0
      %p160 = por %p158, %p159
      %p161 = scmp.ne.s32.totalorder %s150, %s153
      %p162 = scmp.eq.s32.totalorder %s16, 2
      %p163 = por %p161, %p162
      %p164 = scmp.ne.s32.totalorder %s153, %s154
      %p165 = scmp.eq.s32.totalorder %s16, 0
      %p166 = por %p164, %p165
      %p167 = scmp.ne.s32.totalorder %s153, %s154
      %p168 = scmp.eq.s32.totalorder %s17, 2
      %p169 = por %p167, %p168
      %p171 = scmp.ne.s32.totalorder %s154, %s170
      %p172 = scmp.eq.s32.totalorder %s17, 0
      %p173 = por %p171, %p172
      %p174 = scmp.le.s32.totalorder 1, %s11
      %p175 = scmp.lt.s32.totalorder %s11, 4
      %p176 = pnand %p174, %p175
      %p177 = pneg %p176
      // Predicated region
      $region9: #{cnn_dqn_forward.7} parent=5 // pred_check
        _
      $region10: #{cnn_dqn_forward.7} parent=5 // pred_check_branch
        %179 = sbr.rel (%p176) target = $region12
      $region11: #{cnn_dqn_forward.7} parent=5 // pred_region
        %s180 = ssub.s32 %s11, 1
        // Predicated region
        $region13: #{cnn_dqn_forward.7} parent=11 // pred_check
          %p181 = pneg %p98
        $region14: #{cnn_dqn_forward.7} parent=11 // pred_check_branch
          %183 = sbr.rel (%p181) target = $region16
        $region15: #{cnn_dqn_forward.7} parent=11 // pred_region
          _
        $region16: #{cnn_dqn_forward.7} parent=11 // pred_fallthru
          _
        // Predicated region
        $region17: #{cnn_dqn_forward.7} parent=11 // pred_check
          %p184 = pneg %p119
        $region18: #{cnn_dqn_forward.7} parent=11 // pred_check_branch
          %186 = sbr.rel (%p184) target = $region20
        $region19: #{cnn_dqn_forward.7} parent=11 // pred_region
          _
        $region20: #{cnn_dqn_forward.7} parent=11 // pred_fallthru
          _
        // Predicated region
        $region21: #{cnn_dqn_forward.7} parent=11 // pred_check
          %p187 = pneg %p140
        $region22: #{cnn_dqn_forward.7} parent=11 // pred_check_branch
          %189 = sbr.rel (%p187) target = $region24
        $region23: #{cnn_dqn_forward.7} parent=11 // pred_region
          _
        $region24: #{cnn_dqn_forward.7} parent=11 // pred_fallthru
          _
      $region12: #{cnn_dqn_forward.7} parent=5 // pred_fallthru
        _
      %p190 = scmp.lt.s32.totalorder %s11, 3
      // Predicated region
      $region25: #{cnn_dqn_forward.7} parent=5 // pred_check
        %p191 = pneg %p190
      $region26: #{cnn_dqn_forward.7} parent=5 // pred_check_branch
        %193 = sbr.rel (%p191) target = $region28
      $region27: #{cnn_dqn_forward.7} parent=5 // pred_region
        // Predicated region
        $region29: #{cnn_dqn_forward.7} parent=27 // pred_check
          %p194 = pneg %p45
        $region30: #{cnn_dqn_forward.7} parent=27 // pred_check_branch
          %196 = sbr.rel (%p194) target = $region32
        $region31: #{cnn_dqn_forward.7} parent=27 // pred_region
          %s197 = sand.u32 %s35, 1
          %s198 = sand.u32 %s35, 1
          %s199 = smul.addr %s198, 16
          %s200 = scalar_lea.vmem [#allocation3], %s199
          %s201 = smul.u32 2, %s18
          %s202 = smul.u32 2, %s19
          %s203 = smul.addr %s201, 6
          %s204 = sadd.s32 %s202, %s203
          %s205 = smul.addr %s204, 4
          %s206 = scalar_lea.vmem %s0, %s205
          // Predicated region
          $region33: #{cnn_dqn_forward.7} parent=31 // pred_check
            _
          $region34: #{cnn_dqn_forward.7} parent=31 // pred_check_branch
            %208 = sbr.rel (0) target = $region36
          $region35: #{cnn_dqn_forward.7} parent=31 // pred_region
            // Predicated region
            $region37: #{cnn_dqn_forward.7} parent=35 // pred_check
              _
            $region38: #{cnn_dqn_forward.7} parent=35 // pred_check_branch
              %210 = sbr.rel (0) target = $region40
            $region39: #{cnn_dqn_forward.7} parent=35 // pred_region
              // Predicated region
              $region52: #{cnn_dqn_forward.7} parent=39 // pred_check
                _
              $region53: #{cnn_dqn_forward.7} parent=39 // pred_check_branch
                %228 = sbr.rel (0) target = $region55
              $region54: #{cnn_dqn_forward.7} parent=39 // pred_region
                loop: start=0, step=1, limit=1
                $region56: #{cnn_dqn_forward.7} parent=54 // loop_pre_header
                  _
                $region57: #{cnn_dqn_forward.7} parent=54 // loop_header
                  %s230 = sphi 0, %s234
                  %p231 = scmp.ge.s32.totalorder %s230, 1
                  %s235 = sphi %s206, %s206
                  %s236 = sphi %s200, %s200
                $region58: #{cnn_dqn_forward.7} parent=54 // loop_header_branch
                  %233 = sbr.rel (%p231) target = $region62
                $region59: #{cnn_dqn_forward.7} parent=54 // loop_body
                  %v237 = vld [vmem:[%s235] sm:$0xff]
                  %238 = vst [vmem:[%s236] sm:$0xff] %v237
                  %v239 = vld [vmem:[%s235 + $0x18] sm:$0xff]
                  %240 = vst [vmem:[%s236 + $0x8] sm:$0xff] %v239
                $region60: #{cnn_dqn_forward.7} parent=54 // loop_footer
                  %s234 = sadd.s32 1, %s230
                $region61: #{cnn_dqn_forward.7} parent=54 // loop_footer_branch
                  %229 = sbr.rel target = $region57
                $region62: #{cnn_dqn_forward.7} parent=54 // loop_exit
                  _
              $region55: #{cnn_dqn_forward.7} parent=39 // pred_fallthru
                _
              // Predicated region
              $region63: #{cnn_dqn_forward.7} parent=39 // pred_check
                _
              $region64: #{cnn_dqn_forward.7} parent=39 // pred_check_branch
                %242 = sbr.rel target = $region66
              $region65: #{cnn_dqn_forward.7} parent=39 // pred_region
                _
              $region66: #{cnn_dqn_forward.7} parent=39 // pred_fallthru
                _
            $region40: #{cnn_dqn_forward.7} parent=35 // pred_fallthru
              _
            // Predicated region
            $region41: #{cnn_dqn_forward.7} parent=35 // pred_check
              _
            $region42: #{cnn_dqn_forward.7} parent=35 // pred_check_branch
              %212 = sbr.rel target = $region44
            $region43: #{cnn_dqn_forward.7} parent=35 // pred_region
              %s214 = ssub.s32 256, 1
              loop: start=0, step=1, limit=1
              $region45: #{cnn_dqn_forward.7} parent=43 // loop_pre_header
                _
              $region46: #{cnn_dqn_forward.7} parent=43 // loop_header
                %s216 = sphi 0, %s220
                %p217 = scmp.ge.s32.totalorder %s216, 1
                %s221 = sphi %s206, %s206
                %s222 = sphi %s200, %s200
              $region47: #{cnn_dqn_forward.7} parent=43 // loop_header_branch
                %219 = sbr.rel (%p217) target = $region51
              $region48: #{cnn_dqn_forward.7} parent=43 // loop_body
                %v223 = vld [vmem:[%s221] sm:%s214]
                %224 = vst [vmem:[%s222] sm:%s214] %v223
                %v225 = vld [vmem:[%s221 + $0x18] sm:%s214]
                %226 = vst [vmem:[%s222 + $0x8] sm:%s214] %v225
              $region49: #{cnn_dqn_forward.7} parent=43 // loop_footer
                %s220 = sadd.s32 1, %s216
              $region50: #{cnn_dqn_forward.7} parent=43 // loop_footer_branch
                %215 = sbr.rel target = $region46
              $region51: #{cnn_dqn_forward.7} parent=43 // loop_exit
                _
            $region44: #{cnn_dqn_forward.7} parent=35 // pred_fallthru
              _
          $region36: #{cnn_dqn_forward.7} parent=31 // pred_fallthru
            _
          %243 = vnop
        $region32: #{cnn_dqn_forward.7} parent=27 // pred_fallthru
          _
        // Predicated region
        $region67: #{cnn_dqn_forward.7} parent=27 // pred_check
          %p244 = pneg %p71
        $region68: #{cnn_dqn_forward.7} parent=27 // pred_check_branch
          %246 = sbr.rel (%p244) target = $region70
        $region69: #{cnn_dqn_forward.7} parent=27 // pred_region
          %s247 = smul.u32 32, %s19
          %p248 = scmp.lt.s32.totalorder %s247, 95
          %s249 = scalar_select %p248, %s247, 95
          %s250 = smul.addr %s249, 4
          %s251 = smul.addr %s250, 4
          %s252 = scalar_lea.vmem %s1, %s251
          %s253 = smul.u32 32, %s19
        $region70: #{cnn_dqn_forward.7} parent=27 // pred_fallthru
          _
      $region28: #{cnn_dqn_forward.7} parent=5 // pred_fallthru
        _
      %p254 = scmp.le.s32.totalorder 1, %s11
      %p255 = scmp.lt.s32.totalorder %s11, 4
      %p256 = pnand %p254, %p255
      %p257 = pneg %p256
      // Predicated region
      $region71: #{cnn_dqn_forward.7} parent=5 // pred_check
        _
      $region72: #{cnn_dqn_forward.7} parent=5 // pred_check_branch
        %259 = sbr.rel (%p256) target = $region74
      $region73: #{cnn_dqn_forward.7} parent=5 // pred_region
        %s260 = ssub.s32 %s11, 1
        %s261 = sand.u32 %s38, 1
        %s262 = sand.u32 %s38, 1
        %s263 = smul.addr %s262, 16
        %s264 = scalar_lea.vmem [#allocation3], %s263
        // Predicated region
        $region75: #{cnn_dqn_forward.7} parent=73 // pred_check
          %p265 = pneg %p51
        $region76: #{cnn_dqn_forward.7} parent=73 // pred_check_branch
          %267 = sbr.rel (%p265) target = $region78
        $region77: #{cnn_dqn_forward.7} parent=73 // pred_region
          _
        $region78: #{cnn_dqn_forward.7} parent=73 // pred_fallthru
          _
        %s268 = sand.u32 %s38, 1
        %s269 = sand.u32 %s38, 1
        %s270 = smul.addr %s269, 16
        %s271 = scalar_lea.vmem [#allocation3], %s270
        %p272 = pneg %p51
        %p273 = pneg %p48
        %s274 = smul.u32 32, %s21
        %p275 = scmp.lt.s32.totalorder %s274, 95
        %s276 = scalar_select %p275, %s274, 95
        %s277 = smul.addr %s276, 4
        %s278 = smul.addr %s277, 4
        %s279 = scalar_lea.vmem %s1, %s278
        %p280 = pneg %p77
        %p281 = pneg %p74
        %p282 = pneg %p98
        %p283 = pneg %p95
        %p284 = pneg %p119
        %p285 = pneg %p116
        %p286 = pneg %p140
        %p287 = pneg %p137
        %p288 = pneg %p166
        %p289 = pneg %p163
        %s290 = smul.u32 2, %s20
        %p291 = scmp.lt.s32.totalorder %s290, 1
        %s292 = scalar_select %p291, %s290, 1
        %s293 = smul.addr %s292, 8
        %s294 = scalar_lea.vmem %s5, %s293
        %s295 = smul.u32 2, %s20
        %s296 = smul.u32 2, %s21
        %s297 = smul.u32 32, %s21
        %p298 = scmp.lt.s32.totalorder %s297, 95
        %s299 = scalar_select %p298, %s297, 95
        %s300 = smul.addr %s299, 4
        %s301 = smul.addr %s300, 4
        %s302 = scalar_lea.vmem %s1, %s301
        %s303 = smul.u32 32, %s21
        %s304 = smul.u32 2, %s20
        %p305 = scmp.lt.s32.totalorder %s304, 1
        %s306 = scalar_select %p305, %s304, 1
        %s307 = smul.addr %s306, 8
        %s308 = scalar_lea.vmem %s5, %s307
        %s309 = smul.u32 2, %s20
        %p311 = scmp.eq.s32.totalorder %s21, 0
        // Predicated region
        $region79: #{cnn_dqn_forward.7} parent=73 // pred_check
          %p312 = pneg %p311
        $region80: #{cnn_dqn_forward.7} parent=73 // pred_check_branch
          %314 = sbr.rel (%p312) target = $region82
        $region81: #{cnn_dqn_forward.7} parent=73 // pred_region
          %315 = vst [vmem:[#allocation2] sm:$0xff] 0.0
          %316 = vst [vmem:[#allocation2 + $0x8] sm:$0xff] 0.0
          %317 = vst [vmem:[#allocation2 + $0x10] sm:$0xff] 0.0
          %318 = vst [vmem:[#allocation2 + $0x18] sm:$0xff] 0.0
          %319 = vst [vmem:[#allocation2 + $0x20] sm:$0xff] 0.0
          %320 = vst [vmem:[#allocation2 + $0x28] sm:$0xff] 0.0
          %321 = vst [vmem:[#allocation2 + $0x30] sm:$0xff] 0.0
          %322 = vst [vmem:[#allocation2 + $0x38] sm:$0xff] 0.0
        $region82: #{cnn_dqn_forward.7} parent=73 // pred_fallthru
          _
        %v323 = vld [vmem:[#allocation2] sm:$0xff]
        %v324 = vld [vmem:[#allocation2 + $0x8] sm:$0xff]
        %v325 = vld [vmem:[#allocation2 + $0x10] sm:$0xff]
        %v326 = vld [vmem:[#allocation2 + $0x18] sm:$0xff]
        %v327 = vld [vmem:[#allocation2 + $0x20] sm:$0xff]
        %v328 = vld [vmem:[#allocation2 + $0x28] sm:$0xff]
        %v329 = vld [vmem:[#allocation2 + $0x30] sm:$0xff]
        %v330 = vld [vmem:[#allocation2 + $0x38] sm:$0xff]
        %v331 = vld [vmem:[%s264] sm:$0xff]
        %v332 = vld [vmem:[%s264 + $0x8] sm:$0xff]
        %v333 = vld [vmem:[%s302] sm:$0xff]
        %v334 = vld [vmem:[%s302 + $0x8] sm:$0xff]
        %v335 = vld [vmem:[%s302 + $0x10] sm:$0xff]
        %v336 = vld [vmem:[%s302 + $0x18] sm:$0xff]
        %v337 = vld [vmem:[%s302 + $0x20] sm:$0xff]
        %v338 = vld [vmem:[%s302 + $0x28] sm:$0xff]
        %v339 = vld [vmem:[%s302 + $0x30] sm:$0xff]
        %v340 = vld [vmem:[%s302 + $0x38] sm:$0xff]
        %v341 = vld [vmem:[%s302 + $0x40] sm:$0xff]
        %v342 = vld [vmem:[%s302 + $0x48] sm:$0xff]
        %v343 = vld [vmem:[%s302 + $0x50] sm:$0xff]
        %v344 = vld [vmem:[%s302 + $0x58] sm:$0xff]
        %v345 = vld [vmem:[%s302 + $0x60] sm:$0xff]
        %v346 = vld [vmem:[%s302 + $0x68] sm:$0xff]
        %v347 = vld [vmem:[%s302 + $0x70] sm:$0xff]
        %v348 = vld [vmem:[%s302 + $0x78] sm:$0xff]
        %v349 = vld [vmem:[%s302 + $0x80] sm:$0xff]
        %v350 = vld [vmem:[%s302 + $0x88] sm:$0xff]
        %v351 = vld [vmem:[%s302 + $0x90] sm:$0xff]
        %v352 = vld [vmem:[%s302 + $0x98] sm:$0xff]
        %v353 = vld [vmem:[%s302 + $0xa0] sm:$0xff]
        %v354 = vld [vmem:[%s302 + $0xa8] sm:$0xff]
        %v355 = vld [vmem:[%s302 + $0xb0] sm:$0xff]
        %v356 = vld [vmem:[%s302 + $0xb8] sm:$0xff]
        %v357 = vld [vmem:[%s302 + $0xc0] sm:$0xff]
        %v358 = vld [vmem:[%s302 + $0xc8] sm:$0xff]
        %v359 = vld [vmem:[%s302 + $0xd0] sm:$0xff]
        %v360 = vld [vmem:[%s302 + $0xd8] sm:$0xff]
        %v361 = vld [vmem:[%s302 + $0xe0] sm:$0xff]
        %v362 = vld [vmem:[%s302 + $0xe8] sm:$0xff]
        %v363 = vld [vmem:[%s302 + $0xf0] sm:$0xff]
        %v364 = vld [vmem:[%s302 + $0xf8] sm:$0xff]
        %v365 = vld [vmem:[%s302 + $0x100] sm:$0xff]
        %v366 = vld [vmem:[%s302 + $0x108] sm:$0xff]
        %v367 = vld [vmem:[%s302 + $0x110] sm:$0xff]
        %v368 = vld [vmem:[%s302 + $0x118] sm:$0xff]
        %v369 = vld [vmem:[%s302 + $0x120] sm:$0xff]
        %v370 = vld [vmem:[%s302 + $0x128] sm:$0xff]
        %v371 = vld [vmem:[%s302 + $0x130] sm:$0xff]
        %v372 = vld [vmem:[%s302 + $0x138] sm:$0xff]
        %v373 = vld [vmem:[%s302 + $0x140] sm:$0xff]
        %v374 = vld [vmem:[%s302 + $0x148] sm:$0xff]
        %v375 = vld [vmem:[%s302 + $0x150] sm:$0xff]
        %v376 = vld [vmem:[%s302 + $0x158] sm:$0xff]
        %v377 = vld [vmem:[%s302 + $0x160] sm:$0xff]
        %v378 = vld [vmem:[%s302 + $0x168] sm:$0xff]
        %v379 = vld [vmem:[%s302 + $0x170] sm:$0xff]
        %v380 = vld [vmem:[%s302 + $0x178] sm:$0xff]
        %v381 = vld [vmem:[%s302 + $0x180] sm:$0xff]
        %v382 = vld [vmem:[%s302 + $0x188] sm:$0xff]
        %v383 = vld [vmem:[%s302 + $0x190] sm:$0xff]
        %v384 = vld [vmem:[%s302 + $0x198] sm:$0xff]
        %v385 = vld [vmem:[%s302 + $0x1a0] sm:$0xff]
        %v386 = vld [vmem:[%s302 + $0x1a8] sm:$0xff]
        %v387 = vld [vmem:[%s302 + $0x1b0] sm:$0xff]
        %v388 = vld [vmem:[%s302 + $0x1b8] sm:$0xff]
        %v389 = vld [vmem:[%s302 + $0x1c0] sm:$0xff]
        %v390 = vld [vmem:[%s302 + $0x1c8] sm:$0xff]
        %v391 = vld [vmem:[%s302 + $0x1d0] sm:$0xff]
        %v392 = vld [vmem:[%s302 + $0x1d8] sm:$0xff]
        %v393 = vld [vmem:[%s302 + $0x1e0] sm:$0xff]
        %v394 = vld [vmem:[%s302 + $0x1e8] sm:$0xff]
        %v395 = vld [vmem:[%s302 + $0x1f0] sm:$0xff]
        %v396 = vld [vmem:[%s302 + $0x1f8] sm:$0xff]
        %v399 = vunpack.c.l.b16 %v331
        %v400 = vunpack.c.h.b16 %v331
        %v401 = vunpack.c.l.b16 %v332
        %v402 = vunpack.c.h.b16 %v332
        %v403 = vpack.c.b16 %v401, %v399
        %v404 = vpack.c.b16 %v402, %v400
        %v471 = vunpack.c.l.b16 %v333
        %v472 = vunpack.c.h.b16 %v333
        %v473 = vunpack.c.l.b16 %v334
        %v474 = vunpack.c.h.b16 %v334
        %v475 = vunpack.c.l.b16 %v335
        %v476 = vunpack.c.h.b16 %v335
        %v477 = vunpack.c.l.b16 %v336
        %v478 = vunpack.c.h.b16 %v336
        %v479 = vunpack.c.l.b16 %v337
        %v480 = vunpack.c.h.b16 %v337
        %v481 = vunpack.c.l.b16 %v338
        %v482 = vunpack.c.h.b16 %v338
        %v483 = vunpack.c.l.b16 %v339
        %v484 = vunpack.c.h.b16 %v339
        %v485 = vunpack.c.l.b16 %v340
        %v486 = vunpack.c.h.b16 %v340
        %v487 = vunpack.c.l.b16 %v341
        %v488 = vunpack.c.h.b16 %v341
        %v489 = vunpack.c.l.b16 %v342
        %v490 = vunpack.c.h.b16 %v342
        %v491 = vunpack.c.l.b16 %v343
        %v492 = vunpack.c.h.b16 %v343
        %v493 = vunpack.c.l.b16 %v344
        %v494 = vunpack.c.h.b16 %v344
        %v495 = vunpack.c.l.b16 %v345
        %v496 = vunpack.c.h.b16 %v345
        %v497 = vunpack.c.l.b16 %v346
        %v498 = vunpack.c.h.b16 %v346
        %v499 = vunpack.c.l.b16 %v347
        %v500 = vunpack.c.h.b16 %v347
        %v501 = vunpack.c.l.b16 %v348
        %v502 = vunpack.c.h.b16 %v348
        %v503 = vunpack.c.l.b16 %v349
        %v504 = vunpack.c.h.b16 %v349
        %v505 = vunpack.c.l.b16 %v350
        %v506 = vunpack.c.h.b16 %v350
        %v507 = vunpack.c.l.b16 %v351
        %v508 = vunpack.c.h.b16 %v351
        %v509 = vunpack.c.l.b16 %v352
        %v510 = vunpack.c.h.b16 %v352
        %v511 = vunpack.c.l.b16 %v353
        %v512 = vunpack.c.h.b16 %v353
        %v513 = vunpack.c.l.b16 %v354
        %v514 = vunpack.c.h.b16 %v354
        %v515 = vunpack.c.l.b16 %v355
        %v516 = vunpack.c.h.b16 %v355
        %v517 = vunpack.c.l.b16 %v356
        %v518 = vunpack.c.h.b16 %v356
        %v519 = vunpack.c.l.b16 %v357
        %v520 = vunpack.c.h.b16 %v357
        %v521 = vunpack.c.l.b16 %v358
        %v522 = vunpack.c.h.b16 %v358
        %v523 = vunpack.c.l.b16 %v359
        %v524 = vunpack.c.h.b16 %v359
        %v525 = vunpack.c.l.b16 %v360
        %v526 = vunpack.c.h.b16 %v360
        %v527 = vunpack.c.l.b16 %v361
        %v528 = vunpack.c.h.b16 %v361
        %v529 = vunpack.c.l.b16 %v362
        %v530 = vunpack.c.h.b16 %v362
        %v531 = vunpack.c.l.b16 %v363
        %v532 = vunpack.c.h.b16 %v363
        %v533 = vunpack.c.l.b16 %v364
        %v534 = vunpack.c.h.b16 %v364
        %v535 = vunpack.c.l.b16 %v365
        %v536 = vunpack.c.h.b16 %v365
        %v537 = vunpack.c.l.b16 %v366
        %v538 = vunpack.c.h.b16 %v366
        %v539 = vunpack.c.l.b16 %v367
        %v540 = vunpack.c.h.b16 %v367
        %v541 = vunpack.c.l.b16 %v368
        %v542 = vunpack.c.h.b16 %v368
        %v543 = vunpack.c.l.b16 %v369
        %v544 = vunpack.c.h.b16 %v369
        %v545 = vunpack.c.l.b16 %v370
        %v546 = vunpack.c.h.b16 %v370
        %v547 = vunpack.c.l.b16 %v371
        %v548 = vunpack.c.h.b16 %v371
        %v549 = vunpack.c.l.b16 %v372
        %v550 = vunpack.c.h.b16 %v372
        %v551 = vunpack.c.l.b16 %v373
        %v552 = vunpack.c.h.b16 %v373
        %v553 = vunpack.c.l.b16 %v374
        %v554 = vunpack.c.h.b16 %v374
        %v555 = vunpack.c.l.b16 %v375
        %v556 = vunpack.c.h.b16 %v375
        %v557 = vunpack.c.l.b16 %v376
        %v558 = vunpack.c.h.b16 %v376
        %v559 = vunpack.c.l.b16 %v377
        %v560 = vunpack.c.h.b16 %v377
        %v561 = vunpack.c.l.b16 %v378
        %v562 = vunpack.c.h.b16 %v378
        %v563 = vunpack.c.l.b16 %v379
        %v564 = vunpack.c.h.b16 %v379
        %v565 = vunpack.c.l.b16 %v380
        %v566 = vunpack.c.h.b16 %v380
        %v567 = vunpack.c.l.b16 %v381
        %v568 = vunpack.c.h.b16 %v381
        %v569 = vunpack.c.l.b16 %v382
        %v570 = vunpack.c.h.b16 %v382
        %v571 = vunpack.c.l.b16 %v383
        %v572 = vunpack.c.h.b16 %v383
        %v573 = vunpack.c.l.b16 %v384
        %v574 = vunpack.c.h.b16 %v384
        %v575 = vunpack.c.l.b16 %v385
        %v576 = vunpack.c.h.b16 %v385
        %v577 = vunpack.c.l.b16 %v386
        %v578 = vunpack.c.h.b16 %v386
        %v579 = vunpack.c.l.b16 %v387
        %v580 = vunpack.c.h.b16 %v387
        %v581 = vunpack.c.l.b16 %v388
        %v582 = vunpack.c.h.b16 %v388
        %v583 = vunpack.c.l.b16 %v389
        %v584 = vunpack.c.h.b16 %v389
        %v585 = vunpack.c.l.b16 %v390
        %v586 = vunpack.c.h.b16 %v390
        %v587 = vunpack.c.l.b16 %v391
        %v588 = vunpack.c.h.b16 %v391
        %v589 = vunpack.c.l.b16 %v392
        %v590 = vunpack.c.h.b16 %v392
        %v591 = vunpack.c.l.b16 %v393
        %v592 = vunpack.c.h.b16 %v393
        %v593 = vunpack.c.l.b16 %v394
        %v594 = vunpack.c.h.b16 %v394
        %v595 = vunpack.c.l.b16 %v395
        %v596 = vunpack.c.h.b16 %v395
        %v597 = vunpack.c.l.b16 %v396
        %v598 = vunpack.c.h.b16 %v396
        %v599 = vpack.c.b16 %v475, %v471
        %v600 = vpack.c.b16 %v476, %v472
        %v601 = vpack.c.b16 %v477, %v473
        %v602 = vpack.c.b16 %v478, %v474
        %v603 = vpack.c.b16 %v483, %v479
        %v604 = vpack.c.b16 %v484, %v480
        %v605 = vpack.c.b16 %v485, %v481
        %v606 = vpack.c.b16 %v486, %v482
        %v607 = vpack.c.b16 %v491, %v487
        %v608 = vpack.c.b16 %v492, %v488
        %v609 = vpack.c.b16 %v493, %v489
        %v610 = vpack.c.b16 %v494, %v490
        %v611 = vpack.c.b16 %v499, %v495
        %v612 = vpack.c.b16 %v500, %v496
        %v613 = vpack.c.b16 %v501, %v497
        %v614 = vpack.c.b16 %v502, %v498
        %v615 = vpack.c.b16 %v507, %v503
        %v616 = vpack.c.b16 %v508, %v504
        %v617 = vpack.c.b16 %v509, %v505
        %v618 = vpack.c.b16 %v510, %v506
        %v619 = vpack.c.b16 %v515, %v511
        %v620 = vpack.c.b16 %v516, %v512
        %v621 = vpack.c.b16 %v517, %v513
        %v622 = vpack.c.b16 %v518, %v514
        %v623 = vpack.c.b16 %v523, %v519
        %v624 = vpack.c.b16 %v524, %v520
        %v625 = vpack.c.b16 %v525, %v521
        %v626 = vpack.c.b16 %v526, %v522
        %v627 = vpack.c.b16 %v531, %v527
        %v628 = vpack.c.b16 %v532, %v528
        %v629 = vpack.c.b16 %v533, %v529
        %v630 = vpack.c.b16 %v534, %v530
        %v631 = vpack.c.b16 %v539, %v535
        %v632 = vpack.c.b16 %v540, %v536
        %v633 = vpack.c.b16 %v541, %v537
        %v634 = vpack.c.b16 %v542, %v538
        %v635 = vpack.c.b16 %v547, %v543
        %v636 = vpack.c.b16 %v548, %v544
        %v637 = vpack.c.b16 %v549, %v545
        %v638 = vpack.c.b16 %v550, %v546
        %v639 = vpack.c.b16 %v555, %v551
        %v640 = vpack.c.b16 %v556, %v552
        %v641 = vpack.c.b16 %v557, %v553
        %v642 = vpack.c.b16 %v558, %v554
        %v643 = vpack.c.b16 %v563, %v559
        %v644 = vpack.c.b16 %v564, %v560
        %v645 = vpack.c.b16 %v565, %v561
        %v646 = vpack.c.b16 %v566, %v562
        %v647 = vpack.c.b16 %v571, %v567
        %v648 = vpack.c.b16 %v572, %v568
        %v649 = vpack.c.b16 %v573, %v569
        %v650 = vpack.c.b16 %v574, %v570
        %v651 = vpack.c.b16 %v579, %v575
        %v652 = vpack.c.b16 %v580, %v576
        %v653 = vpack.c.b16 %v581, %v577
        %v654 = vpack.c.b16 %v582, %v578
        %v655 = vpack.c.b16 %v587, %v583
        %v656 = vpack.c.b16 %v588, %v584
        %v657 = vpack.c.b16 %v589, %v585
        %v658 = vpack.c.b16 %v590, %v586
        %v659 = vpack.c.b16 %v595, %v591
        %v660 = vpack.c.b16 %v596, %v592
        %v661 = vpack.c.b16 %v597, %v593
        %v662 = vpack.c.b16 %v598, %v594
        %727 = vmatprep.subr.bf16.mxu0 %v628
        %728 = vmatpush1.bf16.msra.mxu0 %v627
        %729 = vmatprep.subr.bf16.mxu0 %v624
        %730 = vmatpush1.bf16.msra.mxu0 %v623
        %731 = vmatprep.subr.bf16.mxu0 %v620
        %732 = vmatpush1.bf16.msra.mxu0 %v619
        %733 = vmatprep.subr.bf16.mxu0 %v616
        %734 = vmatpush1.bf16.msra.mxu0 %v615
        %735 = vmatprep.subr.bf16.mxu0 %v612
        %736 = vmatpush1.bf16.msra.mxu0 %v611
        %737 = vmatprep.subr.bf16.mxu0 %v608
        %738 = vmatpush1.bf16.msra.mxu0 %v607
        %739 = vmatprep.subr.bf16.mxu0 %v604
        %740 = vmatpush1.bf16.msra.mxu0 %v603
        %741 = vmatprep.subr.bf16.mxu0 %v600
        %742 = vmatpush1.bf16.msra.mxu0 %v599
        %743 = vmatprep.subr.bf16.mxu0 %v660
        %744 = vmatpush2.bf16.msra.mxu0 %v659
        %745 = vmatprep.subr.bf16.mxu0 %v656
        %746 = vmatpush2.bf16.msra.mxu0 %v655
        %747 = vmatprep.subr.bf16.mxu0 %v652
        %748 = vmatpush2.bf16.msra.mxu0 %v651
        %749 = vmatprep.subr.bf16.mxu0 %v648
        %750 = vmatpush2.bf16.msra.mxu0 %v647
        %751 = vmatprep.subr.bf16.mxu0 %v644
        %752 = vmatpush2.bf16.msra.mxu0 %v643
        %753 = vmatprep.subr.bf16.mxu0 %v640
        %754 = vmatpush2.bf16.msra.mxu0 %v639
        %755 = vmatprep.subr.bf16.mxu0 %v636
        %756 = vmatpush2.bf16.msra.mxu0 %v635
        %757 = vmatprep.subr.bf16.mxu0 %v632
        %758 = vmatpush2.bf16.msra.mxu0 %v631
        %759 = vmatprep.mubr.bf16.mxu0 %v404
        %760 = vmatmul.mubr.bf16.gmra.mxu0 %v403
        %v761 = vpop.f32.mrf.mxu0
        %v762 = vadd.f32 0.0, %v761
        %v763 = vpop.f32.mrf.mxu0
        %v764 = vadd.f32 0.0, %v763
        %v765 = vpop.f32.mrf.mxu0
        %v766 = vadd.f32 0.0, %v765
        %v767 = vpop.f32.mrf.mxu0
        %v768 = vadd.f32 0.0, %v767
        %769 = vdwg.mxu0
        %770 = vmatprep.subr.bf16.mxu0 %v630
        %771 = vmatpush1.bf16.msra.mxu0 %v629
        %772 = vmatprep.subr.bf16.mxu0 %v626
        %773 = vmatpush1.bf16.msra.mxu0 %v625
        %774 = vmatprep.subr.bf16.mxu0 %v622
        %775 = vmatpush1.bf16.msra.mxu0 %v621
        %776 = vmatprep.subr.bf16.mxu0 %v618
        %777 = vmatpush1.bf16.msra.mxu0 %v617
        %778 = vmatprep.subr.bf16.mxu0 %v614
        %779 = vmatpush1.bf16.msra.mxu0 %v613
        %780 = vmatprep.subr.bf16.mxu0 %v610
        %781 = vmatpush1.bf16.msra.mxu0 %v609
        %782 = vmatprep.subr.bf16.mxu0 %v606
        %783 = vmatpush1.bf16.msra.mxu0 %v605
        %784 = vmatprep.subr.bf16.mxu0 %v602
        %785 = vmatpush1.bf16.msra.mxu0 %v601
        %786 = vmatprep.subr.bf16.mxu0 %v662
        %787 = vmatpush2.bf16.msra.mxu0 %v661
        %788 = vmatprep.subr.bf16.mxu0 %v658
        %789 = vmatpush2.bf16.msra.mxu0 %v657
        %790 = vmatprep.subr.bf16.mxu0 %v654
        %791 = vmatpush2.bf16.msra.mxu0 %v653
        %792 = vmatprep.subr.bf16.mxu0 %v650
        %793 = vmatpush2.bf16.msra.mxu0 %v649
        %794 = vmatprep.subr.bf16.mxu0 %v646
        %795 = vmatpush2.bf16.msra.mxu0 %v645
        %796 = vmatprep.subr.bf16.mxu0 %v642
        %797 = vmatpush2.bf16.msra.mxu0 %v641
        %798 = vmatprep.subr.bf16.mxu0 %v638
        %799 = vmatpush2.bf16.msra.mxu0 %v637
        %800 = vmatprep.subr.bf16.mxu0 %v634
        %801 = vmatpush2.bf16.msra.mxu0 %v633
        %802 = vmatprep.mubr.bf16.mxu0 %v404
        %803 = vmatmul.mubr.bf16.gmra.mxu0 %v403
        %v804 = vpop.f32.mrf.mxu0
        %v805 = vadd.f32 0.0, %v804
        %v806 = vpop.f32.mrf.mxu0
        %v807 = vadd.f32 0.0, %v806
        %v808 = vpop.f32.mrf.mxu0
        %v809 = vadd.f32 0.0, %v808
        %v810 = vpop.f32.mrf.mxu0
        %v811 = vadd.f32 0.0, %v810
        %812 = vdwg.mxu0
        %v813 = vadd.f32 %v323, %v762
        %v814 = vadd.f32 %v324, %v764
        %v815 = vadd.f32 %v325, %v805
        %v816 = vadd.f32 %v326, %v807
        %v817 = vadd.f32 %v327, %v766
        %v818 = vadd.f32 %v328, %v768
        %v819 = vadd.f32 %v329, %v809
        %v820 = vadd.f32 %v330, %v811
        %821 = vst [vmem:[#allocation2] sm:$0xff] %v813
        %822 = vst [vmem:[#allocation2 + $0x8] sm:$0xff] %v814
        %823 = vst [vmem:[#allocation2 + $0x10] sm:$0xff] %v815
        %824 = vst [vmem:[#allocation2 + $0x18] sm:$0xff] %v816
        %825 = vst [vmem:[#allocation2 + $0x20] sm:$0xff] %v817
        %826 = vst [vmem:[#allocation2 + $0x28] sm:$0xff] %v818
        %827 = vst [vmem:[#allocation2 + $0x30] sm:$0xff] %v819
        %828 = vst [vmem:[#allocation2 + $0x38] sm:$0xff] %v820
        %p829 = scmp.eq.s32.totalorder %s21, 2
        // Predicated region
        $region83: #{cnn_dqn_forward.7} parent=73 // pred_check
          %p830 = pneg %p829
        $region84: #{cnn_dqn_forward.7} parent=73 // pred_check_branch
          %832 = sbr.rel (%p830) target = $region86
        $region85: #{cnn_dqn_forward.7} parent=73 // pred_region
          %v833 = vld [vmem:[#allocation2] sm:$0xff]
          %v834 = vld [vmem:[#allocation2 + $0x8] sm:$0xff]
          %v835 = vld [vmem:[#allocation2 + $0x10] sm:$0xff]
          %v836 = vld [vmem:[#allocation2 + $0x18] sm:$0xff]
          %v837 = vld [vmem:[#allocation2 + $0x20] sm:$0xff]
          %v838 = vld [vmem:[#allocation2 + $0x28] sm:$0xff]
          %v839 = vld [vmem:[#allocation2 + $0x30] sm:$0xff]
          %v840 = vld [vmem:[#allocation2 + $0x38] sm:$0xff]
          %v841 = vld [vmem:[%s2] sm:$0xf]
          %v843 = vlaneseq
          %v844 = vshrl.u32 %v843, 7
          %v845 = vsub.s32 0, %v844
          %v846 = vrot.slane %v841, %v845
          %v847 = vlaneseq
          %v848 = vshrl.u32 %v847, 7
          %v849 = vsub.s32 1, %v848
          %v850 = vrot.slane %v841, %v849
          %v851 = vlaneseq
          %v852 = vshrl.u32 %v851, 7
          %v853 = vsub.s32 2, %v852
          %v854 = vrot.slane %v841, %v853
          %v855 = vlaneseq
          %v856 = vshrl.u32 %v855, 7
          %v857 = vsub.s32 3, %v856
          %v858 = vrot.slane %v841, %v857
          %v863 = vadd.f32 %v833, %v846
          %v864 = vadd.f32 %v834, %v850
          %v865 = vadd.f32 %v835, %v854
          %v866 = vadd.f32 %v836, %v858
          %v867 = vadd.f32 %v837, %v846
          %v868 = vadd.f32 %v838, %v850
          %v869 = vadd.f32 %v839, %v854
          %v870 = vadd.f32 %v840, %v858
          %v871 = vmax.f32 %v863, 0.0
          %v872 = vmax.f32 %v864, 0.0
          %v873 = vmax.f32 %v865, 0.0
          %v874 = vmax.f32 %v866, 0.0
          %v875 = vmax.f32 %v867, 0.0
          %v876 = vmax.f32 %v868, 0.0
          %v877 = vmax.f32 %v869, 0.0
          %v878 = vmax.f32 %v870, 0.0
          %v879 = vpack.c.bf16 %v875, %v871
          %v880 = vpack.c.bf16 %v876, %v872
          %v881 = vpack.c.bf16 %v877, %v873
          %v882 = vpack.c.bf16 %v878, %v874
          %v883 = vld [vmem:[%s3] sm:$0xf]
          %v884 = vld [vmem:[%s3 + $0x4] sm:$0xf]
          %v885 = vld [vmem:[%s3 + $0x8] sm:$0xf]
          %v886 = vld [vmem:[%s3 + $0xc] sm:$0xf]
          %v887 = vld [vmem:[%s3 + $0x10] sm:$0xf]
          %v888 = vld [vmem:[%s3 + $0x14] sm:$0xf]
          %v889 = vld [vmem:[%s3 + $0x18] sm:$0xf]
          %v890 = vld [vmem:[%s3 + $0x1c] sm:$0xf]
          %v891 = vld [vmem:[%s3 + $0x20] sm:$0xf]
          %v892 = vld [vmem:[%s3 + $0x24] sm:$0xf]
          %v893 = vld [vmem:[%s3 + $0x28] sm:$0xf]
          %v894 = vld [vmem:[%s3 + $0x2c] sm:$0xf]
          %v895 = vld [vmem:[%s3 + $0x30] sm:$0xf]
          %v896 = vld [vmem:[%s3 + $0x34] sm:$0xf]
          %v897 = vld [vmem:[%s3 + $0x38] sm:$0xf]
          %v898 = vld [vmem:[%s3 + $0x3c] sm:$0xf]
          %v899 = vld [vmem:[%s3 + $0x40] sm:$0xf]
          %v900 = vld [vmem:[%s3 + $0x44] sm:$0xf]
          %v901 = vld [vmem:[%s3 + $0x48] sm:$0xf]
          %v902 = vld [vmem:[%s3 + $0x4c] sm:$0xf]
          %v903 = vld [vmem:[%s3 + $0x50] sm:$0xf]
          %v904 = vld [vmem:[%s3 + $0x54] sm:$0xf]
          %v905 = vld [vmem:[%s3 + $0x58] sm:$0xf]
          %v906 = vld [vmem:[%s3 + $0x5c] sm:$0xf]
          %v907 = vld [vmem:[%s3 + $0x60] sm:$0xf]
          %v908 = vld [vmem:[%s3 + $0x64] sm:$0xf]
          %v909 = vld [vmem:[%s3 + $0x68] sm:$0xf]
          %v910 = vld [vmem:[%s3 + $0x6c] sm:$0xf]
          %v911 = vld [vmem:[%s3 + $0x70] sm:$0xf]
          %v912 = vld [vmem:[%s3 + $0x74] sm:$0xf]
          %v913 = vld [vmem:[%s3 + $0x78] sm:$0xf]
          %v914 = vld [vmem:[%s3 + $0x7c] sm:$0xf]
          %v915 = vld [vmem:[%s3 + $0x80] sm:$0xf]
          %v916 = vld [vmem:[%s3 + $0x84] sm:$0xf]
          %v917 = vld [vmem:[%s3 + $0x88] sm:$0xf]
          %v918 = vld [vmem:[%s3 + $0x8c] sm:$0xf]
          %v919 = vld [vmem:[%s3 + $0x90] sm:$0xf]
          %v920 = vld [vmem:[%s3 + $0x94] sm:$0xf]
          %v921 = vld [vmem:[%s3 + $0x98] sm:$0xf]
          %v922 = vld [vmem:[%s3 + $0x9c] sm:$0xf]
          %v923 = vld [vmem:[%s3 + $0xa0] sm:$0xf]
          %v924 = vld [vmem:[%s3 + $0xa4] sm:$0xf]
          %v925 = vld [vmem:[%s3 + $0xa8] sm:$0xf]
          %v926 = vld [vmem:[%s3 + $0xac] sm:$0xf]
          %v927 = vld [vmem:[%s3 + $0xb0] sm:$0xf]
          %v928 = vld [vmem:[%s3 + $0xb4] sm:$0xf]
          %v929 = vld [vmem:[%s3 + $0xb8] sm:$0xf]
          %v930 = vld [vmem:[%s3 + $0xbc] sm:$0xf]
          %v931 = vld [vmem:[%s3 + $0xc0] sm:$0xf]
          %v932 = vld [vmem:[%s3 + $0xc4] sm:$0xf]
          %v933 = vld [vmem:[%s3 + $0xc8] sm:$0xf]
          %v934 = vld [vmem:[%s3 + $0xcc] sm:$0xf]
          %v935 = vld [vmem:[%s3 + $0xd0] sm:$0xf]
          %v936 = vld [vmem:[%s3 + $0xd4] sm:$0xf]
          %v937 = vld [vmem:[%s3 + $0xd8] sm:$0xf]
          %v938 = vld [vmem:[%s3 + $0xdc] sm:$0xf]
          %v939 = vld [vmem:[%s3 + $0xe0] sm:$0xf]
          %v940 = vld [vmem:[%s3 + $0xe4] sm:$0xf]
          %v941 = vld [vmem:[%s3 + $0xe8] sm:$0xf]
          %v942 = vld [vmem:[%s3 + $0xec] sm:$0xf]
          %v943 = vld [vmem:[%s3 + $0xf0] sm:$0xf]
          %v944 = vld [vmem:[%s3 + $0xf4] sm:$0xf]
          %v945 = vld [vmem:[%s3 + $0xf8] sm:$0xf]
          %v946 = vld [vmem:[%s3 + $0xfc] sm:$0xf]
          %v947 = vld [vmem:[%s4] sm:$0x1]
          %v949 = vlaneseq
          %v950 = vshrl.u32 %v949, 7
          %v951 = vsub.s32 0, %v950
          %v952 = vrot.slane %v947, %v951
          %v1018 = vunpack.c.l.b16 %v883
          %v1019 = vunpack.c.l.b16 %v884
          %v1020 = vunpack.c.l.b16 %v885
          %v1021 = vunpack.c.l.b16 %v886
          %v1022 = vunpack.c.l.b16 %v887
          %v1023 = vunpack.c.l.b16 %v888
          %v1024 = vunpack.c.l.b16 %v889
          %v1025 = vunpack.c.l.b16 %v890
          %v1026 = vunpack.c.l.b16 %v891
          %v1027 = vunpack.c.l.b16 %v892
          %v1028 = vunpack.c.l.b16 %v893
          %v1029 = vunpack.c.l.b16 %v894
          %v1030 = vunpack.c.l.b16 %v895
          %v1031 = vunpack.c.l.b16 %v896
          %v1032 = vunpack.c.l.b16 %v897
          %v1033 = vunpack.c.l.b16 %v898
          %v1034 = vunpack.c.l.b16 %v899
          %v1035 = vunpack.c.l.b16 %v900
          %v1036 = vunpack.c.l.b16 %v901
          %v1037 = vunpack.c.l.b16 %v902
          %v1038 = vunpack.c.l.b16 %v903
          %v1039 = vunpack.c.l.b16 %v904
          %v1040 = vunpack.c.l.b16 %v905
          %v1041 = vunpack.c.l.b16 %v906
          %v1042 = vunpack.c.l.b16 %v907
          %v1043 = vunpack.c.l.b16 %v908
          %v1044 = vunpack.c.l.b16 %v909
          %v1045 = vunpack.c.l.b16 %v910
          %v1046 = vunpack.c.l.b16 %v911
          %v1047 = vunpack.c.l.b16 %v912
          %v1048 = vunpack.c.l.b16 %v913
          %v1049 = vunpack.c.l.b16 %v914
          %v1050 = vunpack.c.l.b16 %v915
          %v1051 = vunpack.c.l.b16 %v916
          %v1052 = vunpack.c.l.b16 %v917
          %v1053 = vunpack.c.l.b16 %v918
          %v1054 = vunpack.c.l.b16 %v919
          %v1055 = vunpack.c.l.b16 %v920
          %v1056 = vunpack.c.l.b16 %v921
          %v1057 = vunpack.c.l.b16 %v922
          %v1058 = vunpack.c.l.b16 %v923
          %v1059 = vunpack.c.l.b16 %v924
          %v1060 = vunpack.c.l.b16 %v925
          %v1061 = vunpack.c.l.b16 %v926
          %v1062 = vunpack.c.l.b16 %v927
          %v1063 = vunpack.c.l.b16 %v928
          %v1064 = vunpack.c.l.b16 %v929
          %v1065 = vunpack.c.l.b16 %v930
          %v1066 = vunpack.c.l.b16 %v931
          %v1067 = vunpack.c.l.b16 %v932
          %v1068 = vunpack.c.l.b16 %v933
          %v1069 = vunpack.c.l.b16 %v934
          %v1070 = vunpack.c.l.b16 %v935
          %v1071 = vunpack.c.l.b16 %v936
          %v1072 = vunpack.c.l.b16 %v937
          %v1073 = vunpack.c.l.b16 %v938
          %v1074 = vunpack.c.l.b16 %v939
          %v1075 = vunpack.c.l.b16 %v940
          %v1076 = vunpack.c.l.b16 %v941
          %v1077 = vunpack.c.l.b16 %v942
          %v1078 = vunpack.c.l.b16 %v943
          %v1079 = vunpack.c.l.b16 %v944
          %v1080 = vunpack.c.l.b16 %v945
          %v1081 = vunpack.c.l.b16 %v946
          %v1082 = vpack.c.b16 %v1019, %v1018
          %v1083 = vpack.c.b16 %v1021, %v1020
          %v1084 = vpack.c.b16 %v1023, %v1022
          %v1085 = vpack.c.b16 %v1025, %v1024
          %v1086 = vpack.c.b16 %v1027, %v1026
          %v1087 = vpack.c.b16 %v1029, %v1028
          %v1088 = vpack.c.b16 %v1031, %v1030
          %v1089 = vpack.c.b16 %v1033, %v1032
          %v1090 = vpack.c.b16 %v1035, %v1034
          %v1091 = vpack.c.b16 %v1037, %v1036
          %v1092 = vpack.c.b16 %v1039, %v1038
          %v1093 = vpack.c.b16 %v1041, %v1040
          %v1094 = vpack.c.b16 %v1043, %v1042
          %v1095 = vpack.c.b16 %v1045, %v1044
          %v1096 = vpack.c.b16 %v1047, %v1046
          %v1097 = vpack.c.b16 %v1049, %v1048
          %v1098 = vpack.c.b16 %v1051, %v1050
          %v1099 = vpack.c.b16 %v1053, %v1052
          %v1100 = vpack.c.b16 %v1055, %v1054
          %v1101 = vpack.c.b16 %v1057, %v1056
          %v1102 = vpack.c.b16 %v1059, %v1058
          %v1103 = vpack.c.b16 %v1061, %v1060
          %v1104 = vpack.c.b16 %v1063, %v1062
          %v1105 = vpack.c.b16 %v1065, %v1064
          %v1106 = vpack.c.b16 %v1067, %v1066
          %v1107 = vpack.c.b16 %v1069, %v1068
          %v1108 = vpack.c.b16 %v1071, %v1070
          %v1109 = vpack.c.b16 %v1073, %v1072
          %v1110 = vpack.c.b16 %v1075, %v1074
          %v1111 = vpack.c.b16 %v1077, %v1076
          %v1112 = vpack.c.b16 %v1079, %v1078
          %v1113 = vpack.c.b16 %v1081, %v1080
          %1146 = vmatprep.subr.bf16.mxu0 0
          %1147 = vmatpush1.bf16.msra.mxu0 %v1089
          %1148 = vmatprep.subr.bf16.mxu0 0
          %1149 = vmatpush1.bf16.msra.mxu0 %v1088
          %1150 = vmatprep.subr.bf16.mxu0 0
          %1151 = vmatpush1.bf16.msra.mxu0 %v1087
          %1152 = vmatprep.subr.bf16.mxu0 0
          %1153 = vmatpush1.bf16.msra.mxu0 %v1086
          %1154 = vmatprep.subr.bf16.mxu0 0
          %1155 = vmatpush1.bf16.msra.mxu0 %v1085
          %1156 = vmatprep.subr.bf16.mxu0 0
          %1157 = vmatpush1.bf16.msra.mxu0 %v1084
          %1158 = vmatprep.subr.bf16.mxu0 0
          %1159 = vmatpush1.bf16.msra.mxu0 %v1083
          %1160 = vmatprep.subr.bf16.mxu0 0
          %1161 = vmatpush1.bf16.msra.mxu0 %v1082
          %1162 = vmatprep.subr.bf16.mxu0 0
          %1163 = vmatpush2.bf16.msra.mxu0 %v1097
          %1164 = vmatprep.subr.bf16.mxu0 0
          %1165 = vmatpush2.bf16.msra.mxu0 %v1096
          %1166 = vmatprep.subr.bf16.mxu0 0
          %1167 = vmatpush2.bf16.msra.mxu0 %v1095
          %1168 = vmatprep.subr.bf16.mxu0 0
          %1169 = vmatpush2.bf16.msra.mxu0 %v1094
          %1170 = vmatprep.subr.bf16.mxu0 0
          %1171 = vmatpush2.bf16.msra.mxu0 %v1093
          %1172 = vmatprep.subr.bf16.mxu0 0
          %1173 = vmatpush2.bf16.msra.mxu0 %v1092
          %1174 = vmatprep.subr.bf16.mxu0 0
          %1175 = vmatpush2.bf16.msra.mxu0 %v1091
          %1176 = vmatprep.subr.bf16.mxu0 0
          %1177 = vmatpush2.bf16.msra.mxu0 %v1090
          %1178 = vmatprep.mubr.bf16.mxu0 %v880
          %1179 = vmatmul.mubr.bf16.gmra.mxu0 %v879
          %v1180 = vpop.f32.mrf.mxu0
          %v1181 = vadd.f32 %v952, %v1180
          %v1182 = vpop.f32.mrf.mxu0
          %v1183 = vpop.f32.mrf.mxu0
          %v1184 = vadd.f32 %v952, %v1183
          %v1185 = vpop.f32.mrf.mxu0
          %1186 = vdwg.mxu0
          %1187 = vmatprep.subr.bf16.mxu0 0
          %1188 = vmatpush1.bf16.msra.mxu0 %v1105
          %1189 = vmatprep.subr.bf16.mxu0 0
          %1190 = vmatpush1.bf16.msra.mxu0 %v1104
          %1191 = vmatprep.subr.bf16.mxu0 0
          %1192 = vmatpush1.bf16.msra.mxu0 %v1103
          %1193 = vmatprep.subr.bf16.mxu0 0
          %1194 = vmatpush1.bf16.msra.mxu0 %v1102
          %1195 = vmatprep.subr.bf16.mxu0 0
          %1196 = vmatpush1.bf16.msra.mxu0 %v1101
          %1197 = vmatprep.subr.bf16.mxu0 0
          %1198 = vmatpush1.bf16.msra.mxu0 %v1100
          %1199 = vmatprep.subr.bf16.mxu0 0
          %1200 = vmatpush1.bf16.msra.mxu0 %v1099
          %1201 = vmatprep.subr.bf16.mxu0 0
          %1202 = vmatpush1.bf16.msra.mxu0 %v1098
          %1203 = vmatprep.subr.bf16.mxu0 0
          %1204 = vmatpush2.bf16.msra.mxu0 %v1113
          %1205 = vmatprep.subr.bf16.mxu0 0
          %1206 = vmatpush2.bf16.msra.mxu0 %v1112
          %1207 = vmatprep.subr.bf16.mxu0 0
          %1208 = vmatpush2.bf16.msra.mxu0 %v1111
          %1209 = vmatprep.subr.bf16.mxu0 0
          %1210 = vmatpush2.bf16.msra.mxu0 %v1110
          %1211 = vmatprep.subr.bf16.mxu0 0
          %1212 = vmatpush2.bf16.msra.mxu0 %v1109
          %1213 = vmatprep.subr.bf16.mxu0 0
          %1214 = vmatpush2.bf16.msra.mxu0 %v1108
          %1215 = vmatprep.subr.bf16.mxu0 0
          %1216 = vmatpush2.bf16.msra.mxu0 %v1107
          %1217 = vmatprep.subr.bf16.mxu0 0
          %1218 = vmatpush2.bf16.msra.mxu0 %v1106
          %1219 = vmatprep.mubr.bf16.mxu0 %v882
          %1220 = vmatmul.mubr.bf16.gmra.mxu0 %v881
          %v1221 = vpop.f32.mrf.mxu0
          %v1222 = vadd.f32 %v1181, %v1221
          %v1223 = vpop.f32.mrf.mxu0
          %v1224 = vpop.f32.mrf.mxu0
          %v1225 = vadd.f32 %v1184, %v1224
          %v1226 = vpop.f32.mrf.mxu0
          %1227 = vdwg.mxu0
          %1228 = vst [vmem:[%s308] sm:$0xff] %v1222
          %1229 = vst [vmem:[%s308 + $0x8] sm:$0xff] %v1225
        $region86: #{cnn_dqn_forward.7} parent=73 // pred_fallthru
          _
        %s1230 = smul.u32 2, %s20
        %p1231 = scmp.lt.s32.totalorder %s1230, 1
        %s1232 = scalar_select %p1231, %s1230, 1
        %s1233 = smul.addr %s1232, 8
        %s1234 = scalar_lea.vmem %s5, %s1233
        // Predicated region
        $region87: #{cnn_dqn_forward.7} parent=73 // pred_check
          %p1235 = pneg %p163
        $region88: #{cnn_dqn_forward.7} parent=73 // pred_check_branch
          %1237 = sbr.rel (%p1235) target = $region90
        $region89: #{cnn_dqn_forward.7} parent=73 // pred_region
          %s1238 = smul.u32 2, %s20
        $region90: #{cnn_dqn_forward.7} parent=73 // pred_fallthru
          _
        // Predicated region
        $region91: #{cnn_dqn_forward.7} parent=73 // pred_check
          %p1239 = pneg %p163
        $region92: #{cnn_dqn_forward.7} parent=73 // pred_check_branch
          %1241 = sbr.rel (%p1239) target = $region94
        $region93: #{cnn_dqn_forward.7} parent=73 // pred_region
          %s1242 = smul.u32 2, %s20
          %p1243 = scmp.lt.s32.totalorder %s1242, 1
          %s1244 = scalar_select %p1243, %s1242, 1
          %s1245 = smul.addr %s1244, 8
          %s1246 = scalar_lea.vmem %s5, %s1245
        $region94: #{cnn_dqn_forward.7} parent=73 // pred_fallthru
          _
      $region74: #{cnn_dqn_forward.7} parent=5 // pred_fallthru
        _
      %p1247 = scmp.le.s32.totalorder 2, %s11
      // Predicated region
      $region95: #{cnn_dqn_forward.7} parent=5 // pred_check
        %p1248 = pneg %p1247
      $region96: #{cnn_dqn_forward.7} parent=5 // pred_check_branch
        %1250 = sbr.rel (%p1248) target = $region98
      $region97: #{cnn_dqn_forward.7} parent=5 // pred_region
        %s1251 = ssub.s32 %s11, 2
      $region98: #{cnn_dqn_forward.7} parent=5 // pred_fallthru
        _
    $region6: #{cnn_dqn_forward.7} parent=1 // loop_footer
      %s15 = sadd.s32 1, %s11
    $region7: #{cnn_dqn_forward.7} parent=1 // loop_footer_branch
      %10 = sbr.rel target = $region3
    $region8: #{cnn_dqn_forward.7} parent=1 // loop_exit
      _

</llo_original>
